<compile_context>
chip_gen: v6e
topology: v6e:2x2x1
jax: 0.10.0
libtpu: 0.0.40
codegen_flags: <defaults>
</compile_context>

<pallas_src>
import jax
import jax.numpy as jnp
from jax.experimental import pallas as pl
from jax.experimental.pallas import tpu as pltpu


def _round_up(a, m):
    return ((a + m - 1) // m) * m


# ----------------------------------------------------------------------------- kernel
def lstm_model_kernel(x_ref, wxt_ref, bt_ref, wa_ref, bg_ref,
                      whh_ref, w1_ref, b1_ref, out_ref, gates_ref):
    S, Bt, D = x_ref.shape
    Hp4 = whh_ref.shape[1]
    Hp = Hp4 // 4
    Kp = bt_ref.shape[1]
    bf16 = jnp.bfloat16

    # ---- precompute (all timesteps at once, off the serial path) -------------------
    # Fused x-matmul: x @ [Wt | Wx]  -> sine-features block and direct-gate block.
    x2 = x_ref[...].reshape(S * Bt, D).astype(bf16)                        # (S*Bt, D)
    xw = jnp.dot(x2, wxt_ref[...], preferred_element_type=jnp.float32)     # (S*Bt, Kp+4Hp)
    v1 = jnp.sin(xw[:, :Kp] + bt_ref[...])                                 # (S*Bt, Kp)
    gates_x = (jnp.dot(v1.astype(bf16), wa_ref[...],
                       preferred_element_type=jnp.float32)
               + xw[:, Kp:] + bg_ref[...])                                 # (S*Bt, 4Hp)
    # Time-major scratch so the per-step read is a leading-axis (sublane) slice.
    gates_ref[...] = gates_x.reshape(S, Bt, Hp4)

    # ---- single-layer LSTM recurrence (PyTorch gate order i, f, g, o), h0=c0=0 -----
    # i/f/o gate columns of all gate weights were pre-scaled by 0.5 in fold_params,
    # so sigmoid(z) == 0.5 * tanh(gates) + 0.5 -> one tanh per step over the whole
    # 4Hp tile.  Padded gate lanes are 0 -> i=f=o=0.5, g=0 -> padded h, c stay 0.
    whh = whh_ref[...]                                                     # (Hp, 4Hp) bf16

    def step(t, carry):
        h, c = carry
        gates = gates_ref[t] + jnp.dot(h.astype(bf16), whh,
                                       preferred_element_type=jnp.float32)  # (Bt, 4Hp)
        tg = jnp.tanh(gates)
        i_g = 0.5 * tg[:, 0 * Hp:1 * Hp] + 0.5
        f_g = 0.5 * tg[:, 1 * Hp:2 * Hp] + 0.5
        g_g = tg[:, 2 * Hp:3 * Hp]
        o_g = 0.5 * tg[:, 3 * Hp:4 * Hp] + 0.5
        c = f_g * c + i_g * g_g
        h = o_g * jnp.tanh(c)
        return h, c

    h0 = jnp.zeros((Bt, Hp), jnp.float32)
    c0 = jnp.zeros((Bt, Hp), jnp.float32)
    h, _ = jax.lax.fori_loop(0, S, step, (h0, c0), unroll=(S <= 16))

    # ---- layer1 on the last hidden state (lane-dense Op=128 output) ----------------
    out_ref[...] = (jnp.dot(h.astype(bf16), w1_ref[...],
                            preferred_element_type=jnp.float32) + b1_ref[...])


# --------------------------------------------------------------------------- wrapper
def lstm_model_forward(x, fparams):
    """x: (B, S, D) float32 (batch-first, like torch).  Returns (B, O) float32."""
    if x.ndim < 3:
        x = x[:, None, :]                       # matches torch unsqueeze(1)
    B, S, D = x.shape
    Hp, Kp, Op, O = fparams["Hp"], fparams["Kp"], fparams["Op"], fparams["O"]

    # ---- batch tile selection -------------------------------------------------------
    # (a) >= 2 programs whenever the batch allows -> v7x megacore sharding via
    #     dimension_semantics=("parallel",); the extra ~0.35us/step on 1-TC chips
    #     is negligible for this kernel.
    # (b) cap the per-tile f32 live footprint (gates scratch + fused xw + v1) to
    #     ~8 MiB so the kernel never outgrows v7x's scoped VMEM as S grows.
    B8 = _round_up(B, 8)
    per_row_bytes = 4 * S * ((Kp + 4 * Hp) + Kp + 4 * Hp)
    vmem_budget = 8 << 20
    cap = max(8, min(128, (vmem_budget // max(per_row_bytes, 1)) // 8 * 8))
    if B8 >= 16:
        B_tile = min(cap, _round_up(pl.cdiv(B8, 2), 8))
    else:
        B_tile = min(cap, B8)
    Bp = _round_up(B8, B_tile)
    grid = (Bp // B_tile,)

    # Time-major layout + zero-pad batch up to the tile size (rows are independent).
    x_tm = jnp.transpose(x.astype(jnp.float32), (1, 0, 2))                 # (S, B, D)
    if Bp != B:
        x_tm = jnp.pad(x_tm, ((0, 0), (0, Bp - B), (0, 0)))

    weights = (fparams["wxt"], fparams["bt"], fparams["wa"], fparams["b_gx"],
               fparams["whh"], fparams["w1"], fparams["b1"])

    def full_spec(a):   # whole array, VMEM-resident across all batch tiles
        return pl.BlockSpec(a.shape, lambda i, nd=a.ndim: (0,) * nd)

    # Advisory cost estimate so XLA schedules surrounding ops around the call.
    flops = int(2 * S * Bp * D * (Kp + 4 * Hp)        # fused x @ [Wt | Wx]
                + 2 * S * Bp * Kp * 4 * Hp            # v1 @ Wa
                + 2 * S * Bp * Hp * 4 * Hp            # recurrent h @ Whh
                + 2 * Bp * Hp * Op)                   # output projection
    transcendentals = int(S * Bp * (Kp + 4 * Hp + Hp))   # sin + tanh(gates) + tanh(c)
    bytes_accessed = int(x_tm.size * x_tm.dtype.itemsize
                         + sum(int(w.size) * w.dtype.itemsize for w in weights)
                         + Bp * Op * 4)

    out = pl.pallas_call(
        lstm_model_kernel,
        out_shape=jax.ShapeDtypeStruct((Bp, Op), jnp.float32),
        grid=grid,
        in_specs=[pl.BlockSpec((S, B_tile, D), lambda i: (0, i, 0))]
                 + [full_spec(w) for w in weights],
        out_specs=pl.BlockSpec((B_tile, Op), lambda i: (i, 0)),
        scratch_shapes=[pltpu.VMEM((S, B_tile, 4 * Hp), jnp.float32)],
        compiler_params=pltpu.CompilerParams(dimension_semantics=("parallel",)),
        cost_estimate=pl.CostEstimate(flops=flops, transcendentals=transcendentals,
                                      bytes_accessed=bytes_accessed),
    )(x_tm, *weights)
    return out[:B, :O]


# ------------------------------------------------------------------ parameter set-up
def init_params(key, input_size, hidden_size, output_size):
    """Deterministic synthetic parameters, shaped exactly like the torch module."""
    ks = jax.random.split(key, 12)
    D, H, O = input_size, hidden_size, output_size
    return {
        # SineActivation(in=D, out=16): w (D,15), b (15,), w0 (D,1), b0 (1,)
        "t2v_w":  jax.random.normal(ks[0], (D, 15), jnp.float32),
        "t2v_b":  jax.random.normal(ks[1], (15,), jnp.float32),
        "t2v_w0": jax.random.normal(ks[2], (D, 1), jnp.float32),
        "t2v_b0": jax.random.normal(ks[3], (1,), jnp.float32),
        # layer0 = nn.Linear(16, D): weight (D, 16), bias (D,)
        "l0_w": 0.1 * jax.random.normal(ks[4], (D, 16), jnp.float32),
        "l0_b": 0.1 * jax.random.normal(ks[5], (D,), jnp.float32),
        # LSTM: weight_ih (4H, D), weight_hh (4H, H), biases (4H,)
        "lstm_wih": 0.1 * jax.random.normal(ks[6], (4 * H, D), jnp.float32),
        "lstm_whh": 0.1 * jax.random.normal(ks[7], (4 * H, H), jnp.float32),
        "lstm_bih": 0.1 * jax.random.normal(ks[8], (4 * H,), jnp.float32),
        "lstm_bhh": 0.1 * jax.random.normal(ks[9], (4 * H,), jnp.float32),
        # layer1 = nn.Linear(H, O): weight (O, H), bias (O,)
        "w1": 0.1 * jax.random.normal(ks[10], (O, H), jnp.float32),
        "b1": 0.1 * jax.random.normal(ks[11], (O,), jnp.float32),
    }


def fold_params(raw):
    """Wrapper-side precompute:
       * fold the linear chain (t2v v2-branch -> layer0 -> LSTM input projection),
       * scale i/f/o gate weight columns by 0.5 (sigmoid -> single tanh in-kernel),
       * pad every gate to a 128-lane block, sine features to 128 lanes, output to
         128 lanes (lane-dense store), fuse [Wt | Wx] for one x-matmul,
       * cast all matmul operands to bf16 (biases stay f32)."""
    D = raw["t2v_w"].shape[0]
    H = raw["lstm_whh"].shape[1]
    O = raw["b1"].shape[-1]
    t2v_k = raw["t2v_w"].shape[1]                     # 15
    Hp = _round_up(H, 128)                            # per-gate padded lane width
    Kp = _round_up(t2v_k, 128)                        # padded sine-feature width
    Op = _round_up(O, 128)                            # padded output lane width

    wih_t = raw["lstm_wih"].T                         # (D, 4H)
    whh_t = raw["lstm_whh"].T                         # (H, 4H)
    b_lstm = raw["lstm_bih"] + raw["lstm_bhh"]        # (4H,)

    l0_wt = raw["l0_w"].T                             # (16, D)
    wl0a, wl0b = l0_wt[:t2v_k], l0_wt[t2v_k:]         # (15, D), (1, D)
    bl0 = raw["l0_b"]                                 # (D,)

    # gates_x = sin(x@Wt + bt) @ Wa + x @ Wx + b_gx
    wa = wl0a @ wih_t                                 # (15, 4H)
    wx = raw["t2v_w0"] @ (wl0b @ wih_t)               # (D, 4H)
    b_gx = (raw["t2v_b0"][0] * wl0b[0] + bl0) @ wih_t + b_lstm   # (4H,)

    # Pre-scale i/f/o gate columns by 0.5:  sigmoid(z) = 0.5 * tanh(0.5*z) + 0.5.
    gate_scale = jnp.concatenate([jnp.full((H,), 0.5), jnp.full((H,), 0.5),
                                  jnp.ones((H,)), jnp.full((H,), 0.5)])    # (4H,)
    wa = wa * gate_scale
    wx = wx * gate_scale
    whh_s = whh_t * gate_scale
    b_gx = b_gx * gate_scale

    def pad_gates(m):                                 # (..., 4H) -> (..., 4*Hp)
        blocks = jnp.split(m, 4, axis=-1)
        pad = [(0, 0)] * (m.ndim - 1) + [(0, Hp - H)]
        return jnp.concatenate([jnp.pad(b, pad) for b in blocks], axis=-1)

    bf16 = jnp.bfloat16
    wt_p = jnp.pad(raw["t2v_w"], ((0, 0), (0, Kp - t2v_k)))                # (D, Kp)
    wx_p = pad_gates(wx)                                                   # (D, 4Hp)
    return {
        # fused x-matmul weight: [Wt | Wx]
        "wxt": jnp.concatenate([wt_p, wx_p], axis=1).astype(bf16),         # (D, Kp+4Hp)
        "bt": jnp.pad(raw["t2v_b"], ((0, Kp - t2v_k),))[None, :].astype(jnp.float32),  # (1, Kp)
        "wa": jnp.pad(pad_gates(wa), ((0, Kp - t2v_k), (0, 0))).astype(bf16),          # (Kp, 4Hp)
        "b_gx": pad_gates(b_gx[None, :]).astype(jnp.float32),              # (1, 4Hp)
        "whh": pad_gates(jnp.pad(whh_s, ((0, Hp - H), (0, 0)))).astype(bf16),          # (Hp, 4Hp)
        "w1": jnp.pad(raw["w1"].T, ((0, Hp - H), (0, Op - O))).astype(bf16),           # (Hp, Op)
        "b1": jnp.pad(raw["b1"], ((0, Op - O),))[None, :].astype(jnp.float32),         # (1, Op)
        "Hp": Hp, "Kp": Kp, "Op": Op, "O": O,
    }


# ---------------------------------------------------------------------- references
def reference_forward_f32(x, raw):
    """Pure-f32 JAX re-implementation of the original torch module's math."""
    if x.ndim < 3:
        x = x[:, None, :]
    B, S, D = x.shape
    H = raw["lstm_whh"].shape[1]
    x2 = x.reshape(B * S, D)
    v1 = jnp.sin(x2 @ raw["t2v_w"] + raw["t2v_b"])
    v2 = x2 @ raw["t2v_w0"] + raw["t2v_b0"]
    z = (jnp.concatenate([v1, v2], -1) @ raw["l0_w"].T + raw["l0_b"]).reshape(B, S, D)
    wih_t, whh_t = raw["lstm_wih"].T, raw["lstm_whh"].T
    bias = raw["lstm_bih"] + raw["lstm_bhh"]
    h = jnp.zeros((B, H)); c = jnp.zeros((B, H))
    for t in range(S):
        g = z[:, t, :] @ wih_t + h @ whh_t + bias
        i_g = jax.nn.sigmoid(g[:, :H]); f_g = jax.nn.sigmoid(g[:, H:2 * H])
        g_g = jnp.tanh(g[:, 2 * H:3 * H]); o_g = jax.nn.sigmoid(g[:, 3 * H:])
        c = f_g * c + i_g * g_g
        h = o_g * jnp.tanh(c)
    return h @ raw["w1"].T + raw["b1"]


def reference_forward_folded(x, fp):
    """Pure-JAX twin of exactly the kernel math (fold + bf16 operands + tanh gates)."""
    if x.ndim < 3:
        x = x[:, None, :]
    B, S, D = x.shape
    Hp, Kp = fp["Hp"], fp["Kp"]
    bf16 = jnp.bfloat16
    x2 = jnp.transpose(x, (1, 0, 2)).reshape(S * B, D).astype(bf16)
    xw = jnp.dot(x2, fp["wxt"], preferred_element_type=jnp.float32)
    v1 = jnp.sin(xw[:, :Kp] + fp["bt"])
    gx = (jnp.dot(v1.astype(bf16), fp["wa"], preferred_element_type=jnp.float32)
          + xw[:, Kp:] + fp["b_gx"]).reshape(S, B, 4 * Hp)
    h = jnp.zeros((B, Hp), jnp.float32); c = jnp.zeros((B, Hp), jnp.float32)
    for t in range(S):
        g = gx[t] + jnp.dot(h.astype(bf16), fp["whh"], preferred_element_type=jnp.float32)
        tg = jnp.tanh(g)
        i_g = 0.5 * tg[:, :Hp] + 0.5
        f_g = 0.5 * tg[:, Hp:2 * Hp] + 0.5
        g_g = tg[:, 2 * Hp:3 * Hp]
        o_g = 0.5 * tg[:, 3 * Hp:] + 0.5
        c = f_g * c + i_g * g_g
        h = o_g * jnp.tanh(c)
    out = jnp.dot(h.astype(bf16), fp["w1"], preferred_element_type=jnp.float32) + fp["b1"]
    return out[:, :fp["O"]]


if __name__ == "__main__":
    input_size, hidden_size, output_size = 4, 32, 3
    B, S = 2, 8

    key = jax.random.PRNGKey(0)
    k_x, k_p = jax.random.split(key)
    x = jax.random.normal(k_x, (B, S, input_size), jnp.float32)
    raw = init_params(k_p, input_size, hidden_size, output_size)
    fparams = fold_params(raw)

    out = lstm_model_forward(x, fparams)
    out = jax.block_until_ready(out)
    assert out.shape == (B, output_size)

    # 1) tight check vs a pure-JAX twin of the kernel math (same fold / bf16 / tanh gates)
    ref_folded = reference_forward_folded(x, fparams)
    assert jnp.allclose(out, ref_folded, atol=2e-3, rtol=2e-3), "mismatch vs folded reference"

    # 2) semantic check vs the original unfused f32 module math; tolerance covers the
    #    bf16-operand casts (input quantization + per-step h recast, compounding over S).
    ref_f32 = reference_forward_f32(x, raw)
    assert jnp.allclose(out, ref_f32, atol=2e-2, rtol=2e-2), "mismatch vs f32 reference"

    print("KERNEL_OK")
</pallas_src>

<mosaic_0001>
module attributes {stable_mosaic.version = 11 : i64} {
  func.func @lstm_model_kernel(%arg0: i32, %arg1: memref<8x8x4xf32, #tpu.memory_space<vmem>>, %arg2: memref<4x640xbf16, #tpu.memory_space<vmem>>, %arg3: memref<1x128xf32, #tpu.memory_space<vmem>>, %arg4: memref<128x512xbf16, #tpu.memory_space<vmem>>, %arg5: memref<1x512xf32, #tpu.memory_space<vmem>>, %arg6: memref<128x512xbf16, #tpu.memory_space<vmem>>, %arg7: memref<128x128xbf16, #tpu.memory_space<vmem>>, %arg8: memref<1x128xf32, #tpu.memory_space<vmem>>, %arg9: memref<8x128xf32, #tpu.memory_space<vmem>>, %arg10: memref<8x8x512xf32, #tpu.memory_space<vmem>>) attributes {dimension_semantics = [#tpu.dimension_semantics<parallel>], iteration_bounds = array<i64: 1>, scalar_prefetch = 0 : i64, scratch_operands = 1 : i64, tpu.core_type = #tpu.core_type<tc>, window_params = [{transform_indices = @transform_0, window_bounds = array<i64: 8, 8, 4>}, {pipeline_mode = #tpu.pipeline_mode<synchronous>, transform_indices = @transform_1, window_bounds = array<i64: 4, 640>}, {pipeline_mode = #tpu.pipeline_mode<synchronous>, transform_indices = @transform_2, window_bounds = array<i64: 1, 128>}, {pipeline_mode = #tpu.pipeline_mode<synchronous>, transform_indices = @transform_3, window_bounds = array<i64: 128, 512>}, {pipeline_mode = #tpu.pipeline_mode<synchronous>, transform_indices = @transform_4, window_bounds = array<i64: 1, 512>}, {pipeline_mode = #tpu.pipeline_mode<synchronous>, transform_indices = @transform_5, window_bounds = array<i64: 128, 512>}, {pipeline_mode = #tpu.pipeline_mode<synchronous>, transform_indices = @transform_6, window_bounds = array<i64: 128, 128>}, {pipeline_mode = #tpu.pipeline_mode<synchronous>, transform_indices = @transform_7, window_bounds = array<i64: 1, 128>}, {transform_indices = @transform_8, window_bounds = array<i64: 8, 128>}]} {
    %c0 = arith.constant 0 : index
    %c0_0 = arith.constant 0 : index
    %c0_1 = arith.constant 0 : index
    %0 = vector.load %arg1[%c0, %c0_0, %c0_1] : memref<8x8x4xf32, #tpu.memory_space<vmem>>, vector<8x8x4xf32>
    %1 = vector.shape_cast %0 : vector<8x8x4xf32> to vector<64x4xf32>
    %2 = arith.truncf %1 : vector<64x4xf32> to vector<64x4xbf16>
    %c0_2 = arith.constant 0 : index
    %c0_3 = arith.constant 0 : index
    %3 = vector.load %arg2[%c0_2, %c0_3] : memref<4x640xbf16, #tpu.memory_space<vmem>>, vector<4x640xbf16>
    %cst = arith.constant dense<0.000000e+00> : vector<64x640xf32>
    %4 = tpu.matmul %2, %3, %cst {dimension_numbers = #tpu.dot_dimension_numbers<[1], [0], [0], [1], [0, 0, 1, 1], [], []>} : vector<64x4xbf16>, vector<4x640xbf16>, vector<64x640xf32> -> vector<64x640xf32>
    %5 = vector.extract_strided_slice %4 {offsets = [0, 0], sizes = [64, 128], strides = [1, 1]} : vector<64x640xf32> to vector<64x128xf32>
    %c0_4 = arith.constant 0 : index
    %c0_5 = arith.constant 0 : index
    %6 = vector.load %arg3[%c0_4, %c0_5] : memref<1x128xf32, #tpu.memory_space<vmem>>, vector<1x128xf32>
    %7 = vector.broadcast %6 : vector<1x128xf32> to vector<64x128xf32>
    %8 = arith.addf %5, %7 : vector<64x128xf32>
    %9 = math.sin %8 : vector<64x128xf32>
    %10 = arith.truncf %9 : vector<64x128xf32> to vector<64x128xbf16>
    %c0_6 = arith.constant 0 : index
    %c0_7 = arith.constant 0 : index
    %11 = vector.load %arg4[%c0_6, %c0_7] : memref<128x512xbf16, #tpu.memory_space<vmem>>, vector<128x512xbf16>
    %cst_8 = arith.constant dense<0.000000e+00> : vector<64x512xf32>
    %12 = tpu.matmul %10, %11, %cst_8 {dimension_numbers = #tpu.dot_dimension_numbers<[1], [0], [0], [1], [0, 0, 1, 1], [], []>} : vector<64x128xbf16>, vector<128x512xbf16>, vector<64x512xf32> -> vector<64x512xf32>
    %13 = vector.extract_strided_slice %4 {offsets = [0, 128], sizes = [64, 512], strides = [1, 1]} : vector<64x640xf32> to vector<64x512xf32>
    %14 = arith.addf %12, %13 : vector<64x512xf32>
    %c0_9 = arith.constant 0 : index
    %c0_10 = arith.constant 0 : index
    %15 = vector.load %arg5[%c0_9, %c0_10] : memref<1x512xf32, #tpu.memory_space<vmem>>, vector<1x512xf32>
    %16 = vector.broadcast %15 : vector<1x512xf32> to vector<64x512xf32>
    %17 = arith.addf %14, %16 : vector<64x512xf32>
    %18 = vector.shape_cast %17 : vector<64x512xf32> to vector<8x8x512xf32>
    %c0_11 = arith.constant 0 : index
    %c0_12 = arith.constant 0 : index
    %c0_13 = arith.constant 0 : index
    %19 = vector.load %arg10[%c0_11, %c0_12, %c0_13] : memref<8x8x512xf32, #tpu.memory_space<vmem>>, vector<8x8x512xf32>
    tpu.vector_store %arg10[%c0_11, %c0_12, %c0_13], %18 {strides = array<i32>} : memref<8x8x512xf32, #tpu.memory_space<vmem>>, vector<8x8x512xf32>,
    %c0_14 = arith.constant 0 : index
    %c0_15 = arith.constant 0 : index
    %20 = vector.load %arg6[%c0_14, %c0_15] : memref<128x512xbf16, #tpu.memory_space<vmem>>, vector<128x512xbf16>
    %cst_16 = arith.constant 0.000000e+00 : f32
    %21 = vector.broadcast %cst_16 : f32 to vector<8x128xf32>
    %cst_17 = arith.constant 0.000000e+00 : f32
    %22 = vector.broadcast %cst_17 : f32 to vector<8x128xf32>
    %c0_i32 = arith.constant 0 : i32
    %23 = arith.index_cast %c0_i32 : i32 to index
    %c0_18 = arith.constant 0 : index
    %c0_19 = arith.constant 0 : index
    %24 = vector.load %arg10[%23, %c0_18, %c0_19] : memref<8x8x512xf32, #tpu.memory_space<vmem>>, vector<1x8x512xf32>
    %25 = vector.shape_cast %24 : vector<1x8x512xf32> to vector<8x512xf32>
    %26 = arith.truncf %21 : vector<8x128xf32> to vector<8x128xbf16>
    %cst_20 = arith.constant dense<0.000000e+00> : vector<8x512xf32>
    %27 = tpu.matmul %26, %20, %cst_20 {dimension_numbers = #tpu.dot_dimension_numbers<[1], [0], [0], [1], [0, 0, 1, 1], [], []>} : vector<8x128xbf16>, vector<128x512xbf16>, vector<8x512xf32> -> vector<8x512xf32>
    %28 = arith.addf %25, %27 : vector<8x512xf32>
    %29 = math.tanh %28 : vector<8x512xf32>
    %30 = vector.extract_strided_slice %29 {offsets = [0, 0], sizes = [8, 128], strides = [1, 1]} : vector<8x512xf32> to vector<8x128xf32>
    %cst_21 = arith.constant 5.000000e-01 : f32
    %31 = vector.broadcast %cst_21 : f32 to vector<8x128xf32>
    %32 = arith.mulf %31, %30 : vector<8x128xf32>
    %cst_22 = arith.constant 5.000000e-01 : f32
    %33 = vector.broadcast %cst_22 : f32 to vector<8x128xf32>
    %34 = arith.addf %32, %33 : vector<8x128xf32>
    %35 = vector.extract_strided_slice %29 {offsets = [0, 128], sizes = [8, 128], strides = [1, 1]} : vector<8x512xf32> to vector<8x128xf32>
    %cst_23 = arith.constant 5.000000e-01 : f32
    %36 = vector.broadcast %cst_23 : f32 to vector<8x128xf32>
    %37 = arith.mulf %36, %35 : vector<8x128xf32>
    %cst_24 = arith.constant 5.000000e-01 : f32
    %38 = vector.broadcast %cst_24 : f32 to vector<8x128xf32>
    %39 = arith.addf %37, %38 : vector<8x128xf32>
    %40 = vector.extract_strided_slice %29 {offsets = [0, 256], sizes = [8, 128], strides = [1, 1]} : vector<8x512xf32> to vector<8x128xf32>
    %41 = vector.extract_strided_slice %29 {offsets = [0, 384], sizes = [8, 128], strides = [1, 1]} : vector<8x512xf32> to vector<8x128xf32>
    %cst_25 = arith.constant 5.000000e-01 : f32
    %42 = vector.broadcast %cst_25 : f32 to vector<8x128xf32>
    %43 = arith.mulf %42, %41 : vector<8x128xf32>
    %cst_26 = arith.constant 5.000000e-01 : f32
    %44 = vector.broadcast %cst_26 : f32 to vector<8x128xf32>
    %45 = arith.addf %43, %44 : vector<8x128xf32>
    %46 = arith.mulf %39, %22 : vector<8x128xf32>
    %47 = arith.mulf %34, %40 : vector<8x128xf32>
    %48 = arith.addf %46, %47 : vector<8x128xf32>
    %49 = math.tanh %48 : vector<8x128xf32>
    %50 = arith.mulf %45, %49 : vector<8x128xf32>
    %c1_i32 = arith.constant 1 : i32
    %51 = arith.index_cast %c1_i32 : i32 to index
    %c0_27 = arith.constant 0 : index
    %c0_28 = arith.constant 0 : index
    %52 = vector.load %arg10[%51, %c0_27, %c0_28] : memref<8x8x512xf32, #tpu.memory_space<vmem>>, vector<1x8x512xf32>
    %53 = vector.shape_cast %52 : vector<1x8x512xf32> to vector<8x512xf32>
    %54 = arith.truncf %50 : vector<8x128xf32> to vector<8x128xbf16>
    %cst_29 = arith.constant dense<0.000000e+00> : vector<8x512xf32>
    %55 = tpu.matmul %54, %20, %cst_29 {dimension_numbers = #tpu.dot_dimension_numbers<[1], [0], [0], [1], [0, 0, 1, 1], [], []>} : vector<8x128xbf16>, vector<128x512xbf16>, vector<8x512xf32> -> vector<8x512xf32>
    %56 = arith.addf %53, %55 : vector<8x512xf32>
    %57 = math.tanh %56 : vector<8x512xf32>
    %58 = vector.extract_strided_slice %57 {offsets = [0, 0], sizes = [8, 128], strides = [1, 1]} : vector<8x512xf32> to vector<8x128xf32>
    %cst_30 = arith.constant 5.000000e-01 : f32
    %59 = vector.broadcast %cst_30 : f32 to vector<8x128xf32>
    %60 = arith.mulf %59, %58 : vector<8x128xf32>
    %cst_31 = arith.constant 5.000000e-01 : f32
    %61 = vector.broadcast %cst_31 : f32 to vector<8x128xf32>
    %62 = arith.addf %60, %61 : vector<8x128xf32>
    %63 = vector.extract_strided_slice %57 {offsets = [0, 128], sizes = [8, 128], strides = [1, 1]} : vector<8x512xf32> to vector<8x128xf32>
    %cst_32 = arith.constant 5.000000e-01 : f32
    %64 = vector.broadcast %cst_32 : f32 to vector<8x128xf32>
    %65 = arith.mulf %64, %63 : vector<8x128xf32>
    %cst_33 = arith.constant 5.000000e-01 : f32
    %66 = vector.broadcast %cst_33 : f32 to vector<8x128xf32>
    %67 = arith.addf %65, %66 : vector<8x128xf32>
    %68 = vector.extract_strided_slice %57 {offsets = [0, 256], sizes = [8, 128], strides = [1, 1]} : vector<8x512xf32> to vector<8x128xf32>
    %69 = vector.extract_strided_slice %57 {offsets = [0, 384], sizes = [8, 128], strides = [1, 1]} : vector<8x512xf32> to vector<8x128xf32>
    %cst_34 = arith.constant 5.000000e-01 : f32
    %70 = vector.broadcast %cst_34 : f32 to vector<8x128xf32>
    %71 = arith.mulf %70, %69 : vector<8x128xf32>
    %cst_35 = arith.constant 5.000000e-01 : f32
    %72 = vector.broadcast %cst_35 : f32 to vector<8x128xf32>
    %73 = arith.addf %71, %72 : vector<8x128xf32>
    %74 = arith.mulf %67, %48 : vector<8x128xf32>
    %75 = arith.mulf %62, %68 : vector<8x128xf32>
    %76 = arith.addf %74, %75 : vector<8x128xf32>
    %77 = math.tanh %76 : vector<8x128xf32>
    %78 = arith.mulf %73, %77 : vector<8x128xf32>
    %c2_i32 = arith.constant 2 : i32
    %79 = arith.index_cast %c2_i32 : i32 to index
    %c0_36 = arith.constant 0 : index
    %c0_37 = arith.constant 0 : index
    %80 = vector.load %arg10[%79, %c0_36, %c0_37] : memref<8x8x512xf32, #tpu.memory_space<vmem>>, vector<1x8x512xf32>
    %81 = vector.shape_cast %80 : vector<1x8x512xf32> to vector<8x512xf32>
    %82 = arith.truncf %78 : vector<8x128xf32> to vector<8x128xbf16>
    %cst_38 = arith.constant dense<0.000000e+00> : vector<8x512xf32>
    %83 = tpu.matmul %82, %20, %cst_38 {dimension_numbers = #tpu.dot_dimension_numbers<[1], [0], [0], [1], [0, 0, 1, 1], [], []>} : vector<8x128xbf16>, vector<128x512xbf16>, vector<8x512xf32> -> vector<8x512xf32>
    %84 = arith.addf %81, %83 : vector<8x512xf32>
    %85 = math.tanh %84 : vector<8x512xf32>
    %86 = vector.extract_strided_slice %85 {offsets = [0, 0], sizes = [8, 128], strides = [1, 1]} : vector<8x512xf32> to vector<8x128xf32>
    %cst_39 = arith.constant 5.000000e-01 : f32
    %87 = vector.broadcast %cst_39 : f32 to vector<8x128xf32>
    %88 = arith.mulf %87, %86 : vector<8x128xf32>
    %cst_40 = arith.constant 5.000000e-01 : f32
    %89 = vector.broadcast %cst_40 : f32 to vector<8x128xf32>
    %90 = arith.addf %88, %89 : vector<8x128xf32>
    %91 = vector.extract_strided_slice %85 {offsets = [0, 128], sizes = [8, 128], strides = [1, 1]} : vector<8x512xf32> to vector<8x128xf32>
    %cst_41 = arith.constant 5.000000e-01 : f32
    %92 = vector.broadcast %cst_41 : f32 to vector<8x128xf32>
    %93 = arith.mulf %92, %91 : vector<8x128xf32>
    %cst_42 = arith.constant 5.000000e-01 : f32
    %94 = vector.broadcast %cst_42 : f32 to vector<8x128xf32>
    %95 = arith.addf %93, %94 : vector<8x128xf32>
    %96 = vector.extract_strided_slice %85 {offsets = [0, 256], sizes = [8, 128], strides = [1, 1]} : vector<8x512xf32> to vector<8x128xf32>
    %97 = vector.extract_strided_slice %85 {offsets = [0, 384], sizes = [8, 128], strides = [1, 1]} : vector<8x512xf32> to vector<8x128xf32>
    %cst_43 = arith.constant 5.000000e-01 : f32
    %98 = vector.broadcast %cst_43 : f32 to vector<8x128xf32>
    %99 = arith.mulf %98, %97 : vector<8x128xf32>
    %cst_44 = arith.constant 5.000000e-01 : f32
    %100 = vector.broadcast %cst_44 : f32 to vector<8x128xf32>
    %101 = arith.addf %99, %100 : vector<8x128xf32>
    %102 = arith.mulf %95, %76 : vector<8x128xf32>
    %103 = arith.mulf %90, %96 : vector<8x128xf32>
    %104 = arith.addf %102, %103 : vector<8x128xf32>
    %105 = math.tanh %104 : vector<8x128xf32>
    %106 = arith.mulf %101, %105 : vector<8x128xf32>
    %c3_i32 = arith.constant 3 : i32
    %107 = arith.index_cast %c3_i32 : i32 to index
    %c0_45 = arith.constant 0 : index
    %c0_46 = arith.constant 0 : index
    %108 = vector.load %arg10[%107, %c0_45, %c0_46] : memref<8x8x512xf32, #tpu.memory_space<vmem>>, vector<1x8x512xf32>
    %109 = vector.shape_cast %108 : vector<1x8x512xf32> to vector<8x512xf32>
    %110 = arith.truncf %106 : vector<8x128xf32> to vector<8x128xbf16>
    %cst_47 = arith.constant dense<0.000000e+00> : vector<8x512xf32>
    %111 = tpu.matmul %110, %20, %cst_47 {dimension_numbers = #tpu.dot_dimension_numbers<[1], [0], [0], [1], [0, 0, 1, 1], [], []>} : vector<8x128xbf16>, vector<128x512xbf16>, vector<8x512xf32> -> vector<8x512xf32>
    %112 = arith.addf %109, %111 : vector<8x512xf32>
    %113 = math.tanh %112 : vector<8x512xf32>
    %114 = vector.extract_strided_slice %113 {offsets = [0, 0], sizes = [8, 128], strides = [1, 1]} : vector<8x512xf32> to vector<8x128xf32>
    %cst_48 = arith.constant 5.000000e-01 : f32
    %115 = vector.broadcast %cst_48 : f32 to vector<8x128xf32>
    %116 = arith.mulf %115, %114 : vector<8x128xf32>
    %cst_49 = arith.constant 5.000000e-01 : f32
    %117 = vector.broadcast %cst_49 : f32 to vector<8x128xf32>
    %118 = arith.addf %116, %117 : vector<8x128xf32>
    %119 = vector.extract_strided_slice %113 {offsets = [0, 128], sizes = [8, 128], strides = [1, 1]} : vector<8x512xf32> to vector<8x128xf32>
    %cst_50 = arith.constant 5.000000e-01 : f32
    %120 = vector.broadcast %cst_50 : f32 to vector<8x128xf32>
    %121 = arith.mulf %120, %119 : vector<8x128xf32>
    %cst_51 = arith.constant 5.000000e-01 : f32
    %122 = vector.broadcast %cst_51 : f32 to vector<8x128xf32>
    %123 = arith.addf %121, %122 : vector<8x128xf32>
    %124 = vector.extract_strided_slice %113 {offsets = [0, 256], sizes = [8, 128], strides = [1, 1]} : vector<8x512xf32> to vector<8x128xf32>
    %125 = vector.extract_strided_slice %113 {offsets = [0, 384], sizes = [8, 128], strides = [1, 1]} : vector<8x512xf32> to vector<8x128xf32>
    %cst_52 = arith.constant 5.000000e-01 : f32
    %126 = vector.broadcast %cst_52 : f32 to vector<8x128xf32>
    %127 = arith.mulf %126, %125 : vector<8x128xf32>
    %cst_53 = arith.constant 5.000000e-01 : f32
    %128 = vector.broadcast %cst_53 : f32 to vector<8x128xf32>
    %129 = arith.addf %127, %128 : vector<8x128xf32>
    %130 = arith.mulf %123, %104 : vector<8x128xf32>
    %131 = arith.mulf %118, %124 : vector<8x128xf32>
    %132 = arith.addf %130, %131 : vector<8x128xf32>
    %133 = math.tanh %132 : vector<8x128xf32>
    %134 = arith.mulf %129, %133 : vector<8x128xf32>
    %c4_i32 = arith.constant 4 : i32
    %135 = arith.index_cast %c4_i32 : i32 to index
    %c0_54 = arith.constant 0 : index
    %c0_55 = arith.constant 0 : index
    %136 = vector.load %arg10[%135, %c0_54, %c0_55] : memref<8x8x512xf32, #tpu.memory_space<vmem>>, vector<1x8x512xf32>
    %137 = vector.shape_cast %136 : vector<1x8x512xf32> to vector<8x512xf32>
    %138 = arith.truncf %134 : vector<8x128xf32> to vector<8x128xbf16>
    %cst_56 = arith.constant dense<0.000000e+00> : vector<8x512xf32>
    %139 = tpu.matmul %138, %20, %cst_56 {dimension_numbers = #tpu.dot_dimension_numbers<[1], [0], [0], [1], [0, 0, 1, 1], [], []>} : vector<8x128xbf16>, vector<128x512xbf16>, vector<8x512xf32> -> vector<8x512xf32>
    %140 = arith.addf %137, %139 : vector<8x512xf32>
    %141 = math.tanh %140 : vector<8x512xf32>
    %142 = vector.extract_strided_slice %141 {offsets = [0, 0], sizes = [8, 128], strides = [1, 1]} : vector<8x512xf32> to vector<8x128xf32>
    %cst_57 = arith.constant 5.000000e-01 : f32
    %143 = vector.broadcast %cst_57 : f32 to vector<8x128xf32>
    %144 = arith.mulf %143, %142 : vector<8x128xf32>
    %cst_58 = arith.constant 5.000000e-01 : f32
    %145 = vector.broadcast %cst_58 : f32 to vector<8x128xf32>
    %146 = arith.addf %144, %145 : vector<8x128xf32>
    %147 = vector.extract_strided_slice %141 {offsets = [0, 128], sizes = [8, 128], strides = [1, 1]} : vector<8x512xf32> to vector<8x128xf32>
    %cst_59 = arith.constant 5.000000e-01 : f32
    %148 = vector.broadcast %cst_59 : f32 to vector<8x128xf32>
    %149 = arith.mulf %148, %147 : vector<8x128xf32>
    %cst_60 = arith.constant 5.000000e-01 : f32
    %150 = vector.broadcast %cst_60 : f32 to vector<8x128xf32>
    %151 = arith.addf %149, %150 : vector<8x128xf32>
    %152 = vector.extract_strided_slice %141 {offsets = [0, 256], sizes = [8, 128], strides = [1, 1]} : vector<8x512xf32> to vector<8x128xf32>
    %153 = vector.extract_strided_slice %141 {offsets = [0, 384], sizes = [8, 128], strides = [1, 1]} : vector<8x512xf32> to vector<8x128xf32>
    %cst_61 = arith.constant 5.000000e-01 : f32
    %154 = vector.broadcast %cst_61 : f32 to vector<8x128xf32>
    %155 = arith.mulf %154, %153 : vector<8x128xf32>
    %cst_62 = arith.constant 5.000000e-01 : f32
    %156 = vector.broadcast %cst_62 : f32 to vector<8x128xf32>
    %157 = arith.addf %155, %156 : vector<8x128xf32>
    %158 = arith.mulf %151, %132 : vector<8x128xf32>
    %159 = arith.mulf %146, %152 : vector<8x128xf32>
    %160 = arith.addf %158, %159 : vector<8x128xf32>
    %161 = math.tanh %160 : vector<8x128xf32>
    %162 = arith.mulf %157, %161 : vector<8x128xf32>
    %c5_i32 = arith.constant 5 : i32
    %163 = arith.index_cast %c5_i32 : i32 to index
    %c0_63 = arith.constant 0 : index
    %c0_64 = arith.constant 0 : index
    %164 = vector.load %arg10[%163, %c0_63, %c0_64] : memref<8x8x512xf32, #tpu.memory_space<vmem>>, vector<1x8x512xf32>
    %165 = vector.shape_cast %164 : vector<1x8x512xf32> to vector<8x512xf32>
    %166 = arith.truncf %162 : vector<8x128xf32> to vector<8x128xbf16>
    %cst_65 = arith.constant dense<0.000000e+00> : vector<8x512xf32>
    %167 = tpu.matmul %166, %20, %cst_65 {dimension_numbers = #tpu.dot_dimension_numbers<[1], [0], [0], [1], [0, 0, 1, 1], [], []>} : vector<8x128xbf16>, vector<128x512xbf16>, vector<8x512xf32> -> vector<8x512xf32>
    %168 = arith.addf %165, %167 : vector<8x512xf32>
    %169 = math.tanh %168 : vector<8x512xf32>
    %170 = vector.extract_strided_slice %169 {offsets = [0, 0], sizes = [8, 128], strides = [1, 1]} : vector<8x512xf32> to vector<8x128xf32>
    %cst_66 = arith.constant 5.000000e-01 : f32
    %171 = vector.broadcast %cst_66 : f32 to vector<8x128xf32>
    %172 = arith.mulf %171, %170 : vector<8x128xf32>
    %cst_67 = arith.constant 5.000000e-01 : f32
    %173 = vector.broadcast %cst_67 : f32 to vector<8x128xf32>
    %174 = arith.addf %172, %173 : vector<8x128xf32>
    %175 = vector.extract_strided_slice %169 {offsets = [0, 128], sizes = [8, 128], strides = [1, 1]} : vector<8x512xf32> to vector<8x128xf32>
    %cst_68 = arith.constant 5.000000e-01 : f32
    %176 = vector.broadcast %cst_68 : f32 to vector<8x128xf32>
    %177 = arith.mulf %176, %175 : vector<8x128xf32>
    %cst_69 = arith.constant 5.000000e-01 : f32
    %178 = vector.broadcast %cst_69 : f32 to vector<8x128xf32>
    %179 = arith.addf %177, %178 : vector<8x128xf32>
    %180 = vector.extract_strided_slice %169 {offsets = [0, 256], sizes = [8, 128], strides = [1, 1]} : vector<8x512xf32> to vector<8x128xf32>
    %181 = vector.extract_strided_slice %169 {offsets = [0, 384], sizes = [8, 128], strides = [1, 1]} : vector<8x512xf32> to vector<8x128xf32>
    %cst_70 = arith.constant 5.000000e-01 : f32
    %182 = vector.broadcast %cst_70 : f32 to vector<8x128xf32>
    %183 = arith.mulf %182, %181 : vector<8x128xf32>
    %cst_71 = arith.constant 5.000000e-01 : f32
    %184 = vector.broadcast %cst_71 : f32 to vector<8x128xf32>
    %185 = arith.addf %183, %184 : vector<8x128xf32>
    %186 = arith.mulf %179, %160 : vector<8x128xf32>
    %187 = arith.mulf %174, %180 : vector<8x128xf32>
    %188 = arith.addf %186, %187 : vector<8x128xf32>
    %189 = math.tanh %188 : vector<8x128xf32>
    %190 = arith.mulf %185, %189 : vector<8x128xf32>
    %c6_i32 = arith.constant 6 : i32
    %191 = arith.index_cast %c6_i32 : i32 to index
    %c0_72 = arith.constant 0 : index
    %c0_73 = arith.constant 0 : index
    %192 = vector.load %arg10[%191, %c0_72, %c0_73] : memref<8x8x512xf32, #tpu.memory_space<vmem>>, vector<1x8x512xf32>
    %193 = vector.shape_cast %192 : vector<1x8x512xf32> to vector<8x512xf32>
    %194 = arith.truncf %190 : vector<8x128xf32> to vector<8x128xbf16>
    %cst_74 = arith.constant dense<0.000000e+00> : vector<8x512xf32>
    %195 = tpu.matmul %194, %20, %cst_74 {dimension_numbers = #tpu.dot_dimension_numbers<[1], [0], [0], [1], [0, 0, 1, 1], [], []>} : vector<8x128xbf16>, vector<128x512xbf16>, vector<8x512xf32> -> vector<8x512xf32>
    %196 = arith.addf %193, %195 : vector<8x512xf32>
    %197 = math.tanh %196 : vector<8x512xf32>
    %198 = vector.extract_strided_slice %197 {offsets = [0, 0], sizes = [8, 128], strides = [1, 1]} : vector<8x512xf32> to vector<8x128xf32>
    %cst_75 = arith.constant 5.000000e-01 : f32
    %199 = vector.broadcast %cst_75 : f32 to vector<8x128xf32>
    %200 = arith.mulf %199, %198 : vector<8x128xf32>
    %cst_76 = arith.constant 5.000000e-01 : f32
    %201 = vector.broadcast %cst_76 : f32 to vector<8x128xf32>
    %202 = arith.addf %200, %201 : vector<8x128xf32>
    %203 = vector.extract_strided_slice %197 {offsets = [0, 128], sizes = [8, 128], strides = [1, 1]} : vector<8x512xf32> to vector<8x128xf32>
    %cst_77 = arith.constant 5.000000e-01 : f32
    %204 = vector.broadcast %cst_77 : f32 to vector<8x128xf32>
    %205 = arith.mulf %204, %203 : vector<8x128xf32>
    %cst_78 = arith.constant 5.000000e-01 : f32
    %206 = vector.broadcast %cst_78 : f32 to vector<8x128xf32>
    %207 = arith.addf %205, %206 : vector<8x128xf32>
    %208 = vector.extract_strided_slice %197 {offsets = [0, 256], sizes = [8, 128], strides = [1, 1]} : vector<8x512xf32> to vector<8x128xf32>
    %209 = vector.extract_strided_slice %197 {offsets = [0, 384], sizes = [8, 128], strides = [1, 1]} : vector<8x512xf32> to vector<8x128xf32>
    %cst_79 = arith.constant 5.000000e-01 : f32
    %210 = vector.broadcast %cst_79 : f32 to vector<8x128xf32>
    %211 = arith.mulf %210, %209 : vector<8x128xf32>
    %cst_80 = arith.constant 5.000000e-01 : f32
    %212 = vector.broadcast %cst_80 : f32 to vector<8x128xf32>
    %213 = arith.addf %211, %212 : vector<8x128xf32>
    %214 = arith.mulf %207, %188 : vector<8x128xf32>
    %215 = arith.mulf %202, %208 : vector<8x128xf32>
    %216 = arith.addf %214, %215 : vector<8x128xf32>
    %217 = math.tanh %216 : vector<8x128xf32>
    %218 = arith.mulf %213, %217 : vector<8x128xf32>
    %c7_i32 = arith.constant 7 : i32
    %219 = arith.index_cast %c7_i32 : i32 to index
    %c0_81 = arith.constant 0 : index
    %c0_82 = arith.constant 0 : index
    %220 = vector.load %arg10[%219, %c0_81, %c0_82] : memref<8x8x512xf32, #tpu.memory_space<vmem>>, vector<1x8x512xf32>
    %221 = vector.shape_cast %220 : vector<1x8x512xf32> to vector<8x512xf32>
    %222 = arith.truncf %218 : vector<8x128xf32> to vector<8x128xbf16>
    %cst_83 = arith.constant dense<0.000000e+00> : vector<8x512xf32>
    %223 = tpu.matmul %222, %20, %cst_83 {dimension_numbers = #tpu.dot_dimension_numbers<[1], [0], [0], [1], [0, 0, 1, 1], [], []>} : vector<8x128xbf16>, vector<128x512xbf16>, vector<8x512xf32> -> vector<8x512xf32>
    %224 = arith.addf %221, %223 : vector<8x512xf32>
    %225 = math.tanh %224 : vector<8x512xf32>
    %226 = vector.extract_strided_slice %225 {offsets = [0, 0], sizes = [8, 128], strides = [1, 1]} : vector<8x512xf32> to vector<8x128xf32>
    %cst_84 = arith.constant 5.000000e-01 : f32
    %227 = vector.broadcast %cst_84 : f32 to vector<8x128xf32>
    %228 = arith.mulf %227, %226 : vector<8x128xf32>
    %cst_85 = arith.constant 5.000000e-01 : f32
    %229 = vector.broadcast %cst_85 : f32 to vector<8x128xf32>
    %230 = arith.addf %228, %229 : vector<8x128xf32>
    %231 = vector.extract_strided_slice %225 {offsets = [0, 128], sizes = [8, 128], strides = [1, 1]} : vector<8x512xf32> to vector<8x128xf32>
    %cst_86 = arith.constant 5.000000e-01 : f32
    %232 = vector.broadcast %cst_86 : f32 to vector<8x128xf32>
    %233 = arith.mulf %232, %231 : vector<8x128xf32>
    %cst_87 = arith.constant 5.000000e-01 : f32
    %234 = vector.broadcast %cst_87 : f32 to vector<8x128xf32>
    %235 = arith.addf %233, %234 : vector<8x128xf32>
    %236 = vector.extract_strided_slice %225 {offsets = [0, 256], sizes = [8, 128], strides = [1, 1]} : vector<8x512xf32> to vector<8x128xf32>
    %237 = vector.extract_strided_slice %225 {offsets = [0, 384], sizes = [8, 128], strides = [1, 1]} : vector<8x512xf32> to vector<8x128xf32>
    %cst_88 = arith.constant 5.000000e-01 : f32
    %238 = vector.broadcast %cst_88 : f32 to vector<8x128xf32>
    %239 = arith.mulf %238, %237 : vector<8x128xf32>
    %cst_89 = arith.constant 5.000000e-01 : f32
    %240 = vector.broadcast %cst_89 : f32 to vector<8x128xf32>
    %241 = arith.addf %239, %240 : vector<8x128xf32>
    %242 = arith.mulf %235, %216 : vector<8x128xf32>
    %243 = arith.mulf %230, %236 : vector<8x128xf32>
    %244 = arith.addf %242, %243 : vector<8x128xf32>
    %245 = math.tanh %244 : vector<8x128xf32>
    %246 = arith.mulf %241, %245 : vector<8x128xf32>
    %c8_i32 = arith.constant 8 : i32
    %247 = arith.truncf %246 : vector<8x128xf32> to vector<8x128xbf16>
    %c0_90 = arith.constant 0 : index
    %c0_91 = arith.constant 0 : index
    %248 = vector.load %arg7[%c0_90, %c0_91] : memref<128x128xbf16, #tpu.memory_space<vmem>>, vector<128x128xbf16>
    %cst_92 = arith.constant dense<0.000000e+00> : vector<8x128xf32>
    %249 = tpu.matmul %247, %248, %cst_92 {dimension_numbers = #tpu.dot_dimension_numbers<[1], [0], [0], [1], [0, 0, 1, 1], [], []>} : vector<8x128xbf16>, vector<128x128xbf16>, vector<8x128xf32> -> vector<8x128xf32>
    %c0_93 = arith.constant 0 : index
    %c0_94 = arith.constant 0 : index
    %250 = vector.load %arg8[%c0_93, %c0_94] : memref<1x128xf32, #tpu.memory_space<vmem>>, vector<1x128xf32>
    %251 = vector.broadcast %250 : vector<1x128xf32> to vector<8x128xf32>
    %252 = arith.addf %249, %251 : vector<8x128xf32>
    %c0_95 = arith.constant 0 : index
    %c0_96 = arith.constant 0 : index
    %253 = vector.load %arg9[%c0_95, %c0_96] : memref<8x128xf32, #tpu.memory_space<vmem>>, vector<8x128xf32>
    tpu.vector_store %arg9[%c0_95, %c0_96], %252 {strides = array<i32>} : memref<8x128xf32, #tpu.memory_space<vmem>>, vector<8x128xf32>,
    return
  }
  func.func @transform_0(%arg0: i32) -> (i32, i32, i32) {
    %c0_i32 = arith.constant 0 : i32
    %c0_i32_0 = arith.constant 0 : i32
    %c0_i32_1 = arith.constant 0 : i32
    return %c0_i32, %arg0, %c0_i32_0 : i32, i32, i32
  }
  func.func @transform_1(%arg0: i32) -> (i32, i32) {
    %c0_i32 = arith.constant 0 : i32
    %c0_i32_0 = arith.constant 0 : i32
    %c0_i32_1 = arith.constant 0 : i32
    return %c0_i32, %c0_i32_0 : i32, i32
  }
  func.func @transform_2(%arg0: i32) -> (i32, i32) {
    %c0_i32 = arith.constant 0 : i32
    %c0_i32_0 = arith.constant 0 : i32
    %c0_i32_1 = arith.constant 0 : i32
    return %c0_i32, %c0_i32_0 : i32, i32
  }
  func.func @transform_3(%arg0: i32) -> (i32, i32) {
    %c0_i32 = arith.constant 0 : i32
    %c0_i32_0 = arith.constant 0 : i32
    %c0_i32_1 = arith.constant 0 : i32
    return %c0_i32, %c0_i32_0 : i32, i32
  }
  func.func @transform_4(%arg0: i32) -> (i32, i32) {
    %c0_i32 = arith.constant 0 : i32
    %c0_i32_0 = arith.constant 0 : i32
    %c0_i32_1 = arith.constant 0 : i32
    return %c0_i32, %c0_i32_0 : i32, i32
  }
  func.func @transform_5(%arg0: i32) -> (i32, i32) {
    %c0_i32 = arith.constant 0 : i32
    %c0_i32_0 = arith.constant 0 : i32
    %c0_i32_1 = arith.constant 0 : i32
    return %c0_i32, %c0_i32_0 : i32, i32
  }
  func.func @transform_6(%arg0: i32) -> (i32, i32) {
    %c0_i32 = arith.constant 0 : i32
    %c0_i32_0 = arith.constant 0 : i32
    %c0_i32_1 = arith.constant 0 : i32
    return %c0_i32, %c0_i32_0 : i32, i32
  }
  func.func @transform_7(%arg0: i32) -> (i32, i32) {
    %c0_i32 = arith.constant 0 : i32
    %c0_i32_0 = arith.constant 0 : i32
    %c0_i32_1 = arith.constant 0 : i32
    return %c0_i32, %c0_i32_0 : i32, i32
  }
  func.func @transform_8(%arg0: i32) -> (i32, i32) {
    %c0_i32 = arith.constant 0 : i32
    %c0_i32_0 = arith.constant 0 : i32
    return %arg0, %c0_i32 : i32, i32
  }
}

</mosaic_0001>

<llo_original>
// kernel: tpu_custom_call.1
$region0: #{tpu_custom_call.1}
  #allocation0 [shape = 'u32[]', space=smem, size = 0x4, offset = 0x4, fixed_abs, tag = 'smem constant byte address 0x4 - core index']
  #allocation1 [shape = 'u32[144,128]{1,0:T(1,128)}', space=vmem, size = 0x12000, scoped, tag = 'internal scratch']
  #allocation2 [shape = 'f32[8,8,512]{2,1,0:T(8,128)}', space=vmem, size = 0x20000, scoped, tag = 'scratch operand']
  %s0 = inlined_call_operand.vmem [shape: f32[8,8,4], index: 0, kind: input, shape index: {}]
  %s1 = inlined_call_operand.vmem [shape: bf16[4,640], index: 1, kind: input, shape index: {}]
  %s2 = inlined_call_operand.vmem [shape: f32[1,128], index: 2, kind: input, shape index: {}]
  %s3 = inlined_call_operand.hbm [shape: bf16[128,512], index: 3, kind: input, shape index: {}]
  %s4 = inlined_call_operand.vmem [shape: f32[1,512], index: 4, kind: input, shape index: {}]
  %s5 = inlined_call_operand.hbm [shape: bf16[128,512], index: 5, kind: input, shape index: {}]
  %s6 = inlined_call_operand.vmem [shape: bf16[128,128], index: 6, kind: input, shape index: {}]
  %s7 = inlined_call_operand.vmem [shape: f32[1,128], index: 7, kind: input, shape index: {}]
  %s8 = inlined_call_operand.hbm [shape: f32[8,128], index: 8, kind: output, shape index: {}]
  %s9 = sld [smem:[#allocation0]]
  $region50: #{tpu_custom_call.1} parent=0
    _
  %s11 = ssub.s32 1, %s9
  %s12 = scalar_select 0, %s11, %s9
  $region1: #{tpu_custom_call.1} parent=0
    #allocation3 [shape = 'u8[131072]{0}', space=vmem, size = 0x20000, scoped, tag = 'input window, operand 3, single buffered']
    #allocation4 [shape = 's32[1]{0}', space=sflag, size = 0x4, scoped, tag = 'scoped memory for tpu_custom_call.1']
    #allocation5 [shape = 's32[1]{0}', space=sflag, size = 0x4, scoped, tag = 'scoped memory for tpu_custom_call.1']
    #allocation6 [shape = 'u8[131072]{0}', space=vmem, size = 0x20000, scoped, tag = 'input window, operand 5, single buffered']
    #allocation7 [shape = 's32[1]{0}', space=sflag, size = 0x4, scoped, tag = 'scoped memory for tpu_custom_call.1']
    #allocation8 [shape = 'u8[4096]{0}', space=vmem, size = 0x1000, scoped, tag = 'output window, operand 0, single buffered']
    %13 = vsyncpa [#allocation4], 0
    %14 = vsyncpa [#allocation7], 0
    %15 = vsyncpa [#allocation5], 0
    // Predicated region
    $region2: #{tpu_custom_call.1} parent=1 // pred_check
      _
    $region3: #{tpu_custom_call.1} parent=1 // pred_check_branch
      %17 = sbr.rel (0) target = $region5
    $region4: #{tpu_custom_call.1} parent=1 // pred_region
      _
    $region5: #{tpu_custom_call.1} parent=1 // pred_fallthru
      _
    // Predicated region
    $region6: #{tpu_custom_call.1} parent=1 // pred_check
      _
    $region7: #{tpu_custom_call.1} parent=1 // pred_check_branch
      %19 = sbr.rel (0) target = $region9
    $region8: #{tpu_custom_call.1} parent=1 // pred_region
      _
    $region9: #{tpu_custom_call.1} parent=1 // pred_fallthru
      _
    // Predicated region
    $region10: #{tpu_custom_call.1} parent=1 // pred_check
      _
    $region11: #{tpu_custom_call.1} parent=1 // pred_check_branch
      %21 = sbr.rel (0) target = $region13
    $region12: #{tpu_custom_call.1} parent=1 // pred_region
      _
    $region13: #{tpu_custom_call.1} parent=1 // pred_fallthru
      _
    // Predicated region
    $region14: #{tpu_custom_call.1} parent=1 // pred_check
      _
    $region15: #{tpu_custom_call.1} parent=1 // pred_check_branch
      %23 = sbr.rel (0) target = $region17
    $region16: #{tpu_custom_call.1} parent=1 // pred_region
      %s25 = ssub.s32 4096, 4096
      %26 = vsyncadd [#allocation4], %s25
      %s27 = sshll.u32 [#allocation3], 4
      %s28 = int_to_ptr.vmem [resolvable:$true] %s27
      %33 = dma.hbm_to_vmem [thread:$0]  %s3, 4096, %s28, [#allocation4], 256, 256, 16
    $region17: #{tpu_custom_call.1} parent=1 // pred_fallthru
      _
    // Predicated region
    $region18: #{tpu_custom_call.1} parent=1 // pred_check
      _
    $region19: #{tpu_custom_call.1} parent=1 // pred_check_branch
      %35 = sbr.rel (0) target = $region21
    $region20: #{tpu_custom_call.1} parent=1 // pred_region
      _
    $region21: #{tpu_custom_call.1} parent=1 // pred_fallthru
      _
    // Predicated region
    $region22: #{tpu_custom_call.1} parent=1 // pred_check
      _
    $region23: #{tpu_custom_call.1} parent=1 // pred_check_branch
      %37 = sbr.rel (0) target = $region25
    $region24: #{tpu_custom_call.1} parent=1 // pred_region
      %s39 = ssub.s32 4096, 4096
      %40 = vsyncadd [#allocation7], %s39
      %s41 = sshll.u32 [#allocation6], 4
      %s42 = int_to_ptr.vmem [resolvable:$true] %s41
      %47 = dma.hbm_to_vmem [thread:$0]  %s5, 4096, %s42, [#allocation7], 256, 256, 16
    $region25: #{tpu_custom_call.1} parent=1 // pred_fallthru
      _
    // Predicated region
    $region26: #{tpu_custom_call.1} parent=1 // pred_check
      _
    $region27: #{tpu_custom_call.1} parent=1 // pred_check_branch
      %49 = sbr.rel (0) target = $region29
    $region28: #{tpu_custom_call.1} parent=1 // pred_region
      _
    $region29: #{tpu_custom_call.1} parent=1 // pred_fallthru
      _
    // Predicated region
    $region30: #{tpu_custom_call.1} parent=1 // pred_check
      _
    $region31: #{tpu_custom_call.1} parent=1 // pred_check_branch
      %51 = sbr.rel (0) target = $region33
    $region32: #{tpu_custom_call.1} parent=1 // pred_region
      _
    $region33: #{tpu_custom_call.1} parent=1 // pred_fallthru
      _
    // Predicated region
    $region34: #{tpu_custom_call.1} parent=1 // pred_check
      _
    $region35: #{tpu_custom_call.1} parent=1 // pred_check_branch
      %53 = sbr.rel (0) target = $region37
    $region36: #{tpu_custom_call.1} parent=1 // pred_region
      %54 = dma.done [#allocation4], 4096
    $region37: #{tpu_custom_call.1} parent=1 // pred_fallthru
      _
    // Predicated region
    $region38: #{tpu_custom_call.1} parent=1 // pred_check
      _
    $region39: #{tpu_custom_call.1} parent=1 // pred_check_branch
      %56 = sbr.rel (0) target = $region41
    $region40: #{tpu_custom_call.1} parent=1 // pred_region
      %57 = dma.done [#allocation7], 4096
    $region41: #{tpu_custom_call.1} parent=1 // pred_fallthru
      _
    %v59 = vld [vmem:[%s0] sm:$0xff]
    %v60 = vld [vmem:[%s0 + $0x8] sm:$0xff]
    %v61 = vld [vmem:[%s0 + $0x10] sm:$0xff]
    %v62 = vld [vmem:[%s0 + $0x18] sm:$0xff]
    %v63 = vld [vmem:[%s0 + $0x20] sm:$0xff]
    %v64 = vld [vmem:[%s0 + $0x28] sm:$0xff]
    %v65 = vld [vmem:[%s0 + $0x30] sm:$0xff]
    %v66 = vld [vmem:[%s0 + $0x38] sm:$0xff]
    %v67 = vpack.c.bf16 %v60, %v59
    %v68 = vpack.c.bf16 %v62, %v61
    %v69 = vpack.c.bf16 %v64, %v63
    %v70 = vpack.c.bf16 %v66, %v65
    %v71 = vld [vmem:[%s1] sm:$0xff]
    %v72 = vld [vmem:[%s1 + $0x8] sm:$0x3]
    %v75 = vcombine.high %v71, %v71
    %v77 = vunpack.c.l.s4 1983009808
    %v78 = vunpack.c.0.s8 %v77
    %v79 = vlaneseq
    %v80 = vshrl.u32 %v79, 7
    %v81 = vsub.s32 %v78, %v80
    %v82 = vrot.slane %v71, %v81
    %v84 = vunpack.c.l.s4 1983009808
    %v85 = vunpack.c.0.s8 %v84
    %v86 = vlaneseq
    %v87 = vshrl.u32 %v86, 7
    %v88 = vsub.s32 %v85, %v87
    %v89 = vrot.slane %v75, %v88
    %v90 = vcombine.high %v82, %v82
    %v91 = vcombine.high %v89, %v89
    %v93 = vunpack.c.l.s4 1983009808
    %v94 = vunpack.c.0.s8 %v93
    %v95 = vlaneseq
    %v96 = vshrl.u32 %v95, 7
    %v97 = vsub.s32 %v94, %v96
    %v98 = vrot.slane %v72, %v97
    %vm99 = vcmask 31744
    %v101 = vsel %vm99, %v67, 0
    %v104 = vsel %vm99, %v68, 0
    %v107 = vsel %vm99, %v69, 0
    %v110 = vsel %vm99, %v70, 0
    %vm112 = vcmask 1041408
    %v114 = vsel %vm112, %v82, 0
    %v117 = vsel %vm112, %v90, 0
    %v120 = vsel %vm112, %v89, 0
    %v123 = vsel %vm112, %v91, 0
    %v126 = vsel %vm112, %v98, 0
    %128 = vmatprep.subr.bf16.mxu0 0
    %129 = vmatpush1.bf16.msra.mxu0 0
    %130 = vmatprep.subr.bf16.mxu0 0
    %131 = vmatpush1.bf16.msra.mxu0 0
    %132 = vmatprep.subr.bf16.mxu0 0
    %133 = vmatpush1.bf16.msra.mxu0 0
    %134 = vmatprep.subr.bf16.mxu0 0
    %135 = vmatpush1.bf16.msra.mxu0 0
    %136 = vmatprep.subr.bf16.mxu0 0
    %137 = vmatpush1.bf16.msra.mxu0 0
    %138 = vmatprep.subr.bf16.mxu0 0
    %139 = vmatpush1.bf16.msra.mxu0 0
    %140 = vmatprep.subr.bf16.mxu0 0
    %141 = vmatpush1.bf16.msra.mxu0 0
    %142 = vmatprep.subr.bf16.mxu0 %v117
    %143 = vmatpush1.bf16.msra.mxu0 %v114
    %144 = vmatprep.subr.bf16.mxu0 0
    %145 = vmatpush2.bf16.msra.mxu0 0
    %146 = vmatprep.subr.bf16.mxu0 0
    %147 = vmatpush2.bf16.msra.mxu0 0
    %148 = vmatprep.subr.bf16.mxu0 0
    %149 = vmatpush2.bf16.msra.mxu0 0
    %150 = vmatprep.subr.bf16.mxu0 0
    %151 = vmatpush2.bf16.msra.mxu0 0
    %152 = vmatprep.subr.bf16.mxu0 0
    %153 = vmatpush2.bf16.msra.mxu0 0
    %154 = vmatprep.subr.bf16.mxu0 0
    %155 = vmatpush2.bf16.msra.mxu0 0
    %156 = vmatprep.subr.bf16.mxu0 0
    %157 = vmatpush2.bf16.msra.mxu0 0
    %158 = vmatprep.subr.bf16.mxu0 0
    %159 = vmatpush2.bf16.msra.mxu0 0
    %160 = vmatprep.mubr.bf16.mxu0 0
    %161 = vmatmul.mubr.bf16.gmra.mxu0 %v101
    %v162 = vpop.f32.mrf.mxu0
    %v163 = vadd.f32 0.0, %v162
    %v164 = vpop.f32.mrf.mxu0
    %v165 = vadd.f32 0.0, %v164
    %v166 = vpop.f32.mrf.mxu0
    %v167 = vadd.f32 0.0, %v166
    %v168 = vpop.f32.mrf.mxu0
    %v169 = vadd.f32 0.0, %v168
    %170 = vmatprep.mubr.bf16.mxu0 0
    %171 = vmatmul.mubr.bf16.gmra.mxu0 %v104
    %v172 = vpop.f32.mrf.mxu0
    %v173 = vadd.f32 0.0, %v172
    %v174 = vpop.f32.mrf.mxu0
    %v175 = vadd.f32 0.0, %v174
    %v176 = vpop.f32.mrf.mxu0
    %v177 = vadd.f32 0.0, %v176
    %v178 = vpop.f32.mrf.mxu0
    %v179 = vadd.f32 0.0, %v178
    %180 = vmatprep.mubr.bf16.mxu0 0
    %181 = vmatmul.mubr.bf16.gmra.mxu0 %v107
    %v182 = vpop.f32.mrf.mxu0
    %v183 = vadd.f32 0.0, %v182
    %v184 = vpop.f32.mrf.mxu0
    %v185 = vadd.f32 0.0, %v184
    %v186 = vpop.f32.mrf.mxu0
    %v187 = vadd.f32 0.0, %v186
    %v188 = vpop.f32.mrf.mxu0
    %v189 = vadd.f32 0.0, %v188
    %190 = vmatprep.mubr.bf16.mxu0 0
    %191 = vmatmul.mubr.bf16.gmra.mxu0 %v110
    %v192 = vpop.f32.mrf.mxu0
    %v193 = vadd.f32 0.0, %v192
    %v194 = vpop.f32.mrf.mxu0
    %v195 = vadd.f32 0.0, %v194
    %v196 = vpop.f32.mrf.mxu0
    %v197 = vadd.f32 0.0, %v196
    %v198 = vpop.f32.mrf.mxu0
    %v199 = vadd.f32 0.0, %v198
    %200 = vdwg.mxu0
    %201 = vmatprep.subr.bf16.mxu0 0
    %202 = vmatpush1.bf16.msra.mxu0 0
    %203 = vmatprep.subr.bf16.mxu0 0
    %204 = vmatpush1.bf16.msra.mxu0 0
    %205 = vmatprep.subr.bf16.mxu0 0
    %206 = vmatpush1.bf16.msra.mxu0 0
    %207 = vmatprep.subr.bf16.mxu0 0
    %208 = vmatpush1.bf16.msra.mxu0 0
    %209 = vmatprep.subr.bf16.mxu0 0
    %210 = vmatpush1.bf16.msra.mxu0 0
    %211 = vmatprep.subr.bf16.mxu0 0
    %212 = vmatpush1.bf16.msra.mxu0 0
    %213 = vmatprep.subr.bf16.mxu0 0
    %214 = vmatpush1.bf16.msra.mxu0 0
    %215 = vmatprep.subr.bf16.mxu0 %v123
    %216 = vmatpush1.bf16.msra.mxu0 %v120
    %217 = vmatprep.subr.bf16.mxu0 0
    %218 = vmatpush2.bf16.msra.mxu0 0
    %219 = vmatprep.subr.bf16.mxu0 0
    %220 = vmatpush2.bf16.msra.mxu0 0
    %221 = vmatprep.subr.bf16.mxu0 0
    %222 = vmatpush2.bf16.msra.mxu0 0
    %223 = vmatprep.subr.bf16.mxu0 0
    %224 = vmatpush2.bf16.msra.mxu0 0
    %225 = vmatprep.subr.bf16.mxu0 0
    %226 = vmatpush2.bf16.msra.mxu0 0
    %227 = vmatprep.subr.bf16.mxu0 0
    %228 = vmatpush2.bf16.msra.mxu0 0
    %229 = vmatprep.subr.bf16.mxu0 0
    %230 = vmatpush2.bf16.msra.mxu0 0
    %231 = vmatprep.subr.bf16.mxu0 0
    %232 = vmatpush2.bf16.msra.mxu0 0
    %233 = vmatprep.mubr.bf16.mxu0 0
    %234 = vmatmul.mubr.bf16.gmra.mxu0 %v101
    %v235 = vpop.f32.mrf.mxu0
    %v236 = vadd.f32 0.0, %v235
    %v237 = vpop.f32.mrf.mxu0
    %v238 = vadd.f32 0.0, %v237
    %v239 = vpop.f32.mrf.mxu0
    %v240 = vadd.f32 0.0, %v239
    %v241 = vpop.f32.mrf.mxu0
    %v242 = vadd.f32 0.0, %v241
    %243 = vmatprep.mubr.bf16.mxu0 0
    %244 = vmatmul.mubr.bf16.gmra.mxu0 %v104
    %v245 = vpop.f32.mrf.mxu0
    %v246 = vadd.f32 0.0, %v245
    %v247 = vpop.f32.mrf.mxu0
    %v248 = vadd.f32 0.0, %v247
    %v249 = vpop.f32.mrf.mxu0
    %v250 = vadd.f32 0.0, %v249
    %v251 = vpop.f32.mrf.mxu0
    %v252 = vadd.f32 0.0, %v251
    %253 = vmatprep.mubr.bf16.mxu0 0
    %254 = vmatmul.mubr.bf16.gmra.mxu0 %v107
    %v255 = vpop.f32.mrf.mxu0
    %v256 = vadd.f32 0.0, %v255
    %v257 = vpop.f32.mrf.mxu0
    %v258 = vadd.f32 0.0, %v257
    %v259 = vpop.f32.mrf.mxu0
    %v260 = vadd.f32 0.0, %v259
    %v261 = vpop.f32.mrf.mxu0
    %v262 = vadd.f32 0.0, %v261
    %263 = vmatprep.mubr.bf16.mxu0 0
    %264 = vmatmul.mubr.bf16.gmra.mxu0 %v110
    %v265 = vpop.f32.mrf.mxu0
    %v266 = vadd.f32 0.0, %v265
    %v267 = vpop.f32.mrf.mxu0
    %v268 = vadd.f32 0.0, %v267
    %v269 = vpop.f32.mrf.mxu0
    %v270 = vadd.f32 0.0, %v269
    %v271 = vpop.f32.mrf.mxu0
    %v272 = vadd.f32 0.0, %v271
    %273 = vdwg.mxu0
    %274 = vmatprep.subr.bf16.mxu0 0
    %275 = vmatpush1.bf16.msra.mxu0 0
    %276 = vmatprep.subr.bf16.mxu0 0
    %277 = vmatpush1.bf16.msra.mxu0 0
    %278 = vmatprep.subr.bf16.mxu0 0
    %279 = vmatpush1.bf16.msra.mxu0 0
    %280 = vmatprep.subr.bf16.mxu0 0
    %281 = vmatpush1.bf16.msra.mxu0 0
    %282 = vmatprep.subr.bf16.mxu0 0
    %283 = vmatpush1.bf16.msra.mxu0 0
    %284 = vmatprep.subr.bf16.mxu0 0
    %285 = vmatpush1.bf16.msra.mxu0 0
    %286 = vmatprep.subr.bf16.mxu0 0
    %287 = vmatpush1.bf16.msra.mxu0 0
    %288 = vmatprep.subr.bf16.mxu0 0
    %289 = vmatpush1.bf16.msra.mxu0 %v126
    %290 = vmatprep.subr.bf16.mxu0 0
    %291 = vmatpush2.bf16.msra.mxu0 0
    %292 = vmatprep.subr.bf16.mxu0 0
    %293 = vmatpush2.bf16.msra.mxu0 0
    %294 = vmatprep.subr.bf16.mxu0 0
    %295 = vmatpush2.bf16.msra.mxu0 0
    %296 = vmatprep.subr.bf16.mxu0 0
    %297 = vmatpush2.bf16.msra.mxu0 0
    %298 = vmatprep.subr.bf16.mxu0 0
    %299 = vmatpush2.bf16.msra.mxu0 0
    %300 = vmatprep.subr.bf16.mxu0 0
    %301 = vmatpush2.bf16.msra.mxu0 0
    %302 = vmatprep.subr.bf16.mxu0 0
    %303 = vmatpush2.bf16.msra.mxu0 0
    %304 = vmatprep.subr.bf16.mxu0 0
    %305 = vmatpush2.bf16.msra.mxu0 0
    %306 = vmatprep.mubr.bf16.mxu0 0
    %307 = vmatmul.mubr.bf16.gmra.mxu0 %v101
    %v308 = vpop.f32.mrf.mxu0
    %v309 = vadd.f32 0.0, %v308
    %v310 = vpop.f32.mrf.mxu0
    %v311 = vpop.f32.mrf.mxu0
    %v312 = vadd.f32 0.0, %v311
    %v313 = vpop.f32.mrf.mxu0
    %314 = vmatprep.mubr.bf16.mxu0 0
    %315 = vmatmul.mubr.bf16.gmra.mxu0 %v104
    %v316 = vpop.f32.mrf.mxu0
    %v317 = vadd.f32 0.0, %v316
    %v318 = vpop.f32.mrf.mxu0
    %v319 = vpop.f32.mrf.mxu0
    %v320 = vadd.f32 0.0, %v319
    %v321 = vpop.f32.mrf.mxu0
    %322 = vmatprep.mubr.bf16.mxu0 0
    %323 = vmatmul.mubr.bf16.gmra.mxu0 %v107
    %v324 = vpop.f32.mrf.mxu0
    %v325 = vadd.f32 0.0, %v324
    %v326 = vpop.f32.mrf.mxu0
    %v327 = vpop.f32.mrf.mxu0
    %v328 = vadd.f32 0.0, %v327
    %v329 = vpop.f32.mrf.mxu0
    %330 = vmatprep.mubr.bf16.mxu0 0
    %331 = vmatmul.mubr.bf16.gmra.mxu0 %v110
    %v332 = vpop.f32.mrf.mxu0
    %v333 = vadd.f32 0.0, %v332
    %v334 = vpop.f32.mrf.mxu0
    %v335 = vpop.f32.mrf.mxu0
    %v336 = vadd.f32 0.0, %v335
    %v337 = vpop.f32.mrf.mxu0
    %338 = vdwg.mxu0
    %v339 = vld [vmem:[%s2] sm:$0x1]
    %v341 = vlaneseq
    %v342 = vshrl.u32 %v341, 7
    %v343 = vsub.s32 0, %v342
    %v344 = vrot.slane %v339, %v343
    %v346 = vadd.f32 %v163, %v344
    %v347 = vadd.f32 %v167, %v344
    %v348 = vadd.f32 %v173, %v344
    %v349 = vadd.f32 %v177, %v344
    %v350 = vadd.f32 %v183, %v344
    %v351 = vadd.f32 %v187, %v344
    %v352 = vadd.f32 %v193, %v344
    %v353 = vadd.f32 %v197, %v344
    %v354 = vand.u32 2147483647, %v346
    %vm355 = vcmp.le.f32.partialorder %v354, 0.7853982
    %vm356 = vcmp.lt.s32.totalorder %v346, 0
    %v357 = vand.u32 %v346, 2139095040
    %v358 = vshrl.u32 %v357, 23
    %v359 = vsub.s32 %v358, 127
    %v360 = vand.u32 2147483647, %v346
    %v361 = vand.u32 %v360, 8388607
    %v362 = vor.u32 %v361, 8388608
    %v363 = vsub.s32 0, %v362
    %v364 = vadd.s32 %v359, 1
    %vm365 = vcmp.gt.s32.totalorder %v364, 0
    %v366 = vsel %vm365, %v364, 0
    %v367 = vshrl.u32 %v366, 5
    %v368 = vand.u32 %v366, 31
    %v369 = vsub.s32 32, %v368
    %v370 = vshrl.u32 683565275, %v369
    %v371 = vshll.u32 683565275, %v368
    %v372 = vshrl.u32 2475754826, %v369
    %v373 = vor.u32 %v371, %v372
    %v374 = vshll.u32 2475754826, %v368
    %v375 = vshrl.u32 2131351028, %v369
    %v376 = vor.u32 %v374, %v375
    %v377 = vshll.u32 2131351028, %v368
    %v378 = vshrl.u32 2102212464, %v369
    %v379 = vor.u32 %v377, %v378
    %v380 = vshll.u32 2102212464, %v368
    %v381 = vshrl.u32 920167782, %v369
    %v382 = vor.u32 %v380, %v381
    %v383 = vshll.u32 920167782, %v368
    %v384 = vshrl.u32 1326507024, %v369
    %v385 = vor.u32 %v383, %v384
    %vm386 = vcmp.lt.s32.totalorder %v367, 1
    %vm387 = vcmp.lt.s32.totalorder %v367, 2
    %vm388 = vcmp.lt.s32.totalorder %v367, 3
    %vm389 = vcmp.lt.s32.totalorder %v367, 4
    %v390 = vsel %vm386, %v370, %v373
    %v391 = vsel %vm389, %v379, 2102212464
    %v392 = vsel %vm388, %v376, %v391
    %v393 = vsel %vm387, %v390, %v392
    %v394 = vsel %vm386, %v373, %v376
    %v395 = vsel %vm389, %v382, 920167782
    %v396 = vsel %vm388, %v379, %v395
    %v397 = vsel %vm387, %v394, %v396
    %v398 = vsel %vm386, %v376, %v379
    %v399 = vsel %vm389, %v385, 1326507024
    %v400 = vsel %vm388, %v382, %v399
    %v401 = vsel %vm387, %v398, %v400
    %v402 = vshll.u32 %v362, 8
    %v403 = vmul.u32.u64.compose %v402, %v401
    %v404 = vextract.low.u32 %v403
    %v405 = vextract.high.u32 %v403
    %v406 = vmul.u32.u64.compose %v402, %v397
    %v407 = vextract.low.u32 %v406
    %v408 = vextract.high.u32 %v406
    %v409 = vmul.u32 %v402, %v393
    %v410 = vadd.s32 %v405, %v407
    %vm411 = vc.u32 %v405, %v407
    %v412 = vadd.s32 %v408, 1
    %v413 = vsel %vm411, %v412, %v408
    %v414 = vadd.s32 %v409, %v413
    %v415 = vadd.s32 %v414, 536870912
    %v416 = vshrl.u32 %v415, 30
    %v417 = vshll.u32 %v416, 30
    %v418 = vsub.s32 %v414, %v417
    %vm419 = vcmp.lt.s32.totalorder %v418, 0
    %v420 = vsub.s32 0, %v418
    %v421 = vsel %vm419, %v420, %v418
    %v422 = vclz %v421
    %v423 = vsub.s32 %v422, 2
    %vm424 = vcmp.gt.s32.totalorder 0, %v423
    %v425 = vsel %vm424, 0, %v423
    %v426 = vsub.s32 32, %v425
    %v427 = vshll.u32 %v418, %v425
    %v428 = vshrl.u32 %v410, %v426
    %v429 = vor.u32 %v427, %v428
    %v430 = vsub.s32 4294967266, %v425
    %v431 = vadd.s32 %v430, 127
    %v432 = vshll.u32 %v431, 23
    %v433 = vor.u32 4788187, %v432
    %v434 = vand.u32 2147483647, %v433
    %v436 = vcvt.s32.f32 %v429
    %v437 = vmul.f32 %v436, %v434
    %v438 = vxor.u32 %v437, 2147483648
    %v439 = vsel %vm356, %v438, %v437
    %v440 = vsub.s32 4, %v416
    %v441 = vsel %vm356, %v440, %v416
    %v442 = vsel %vm355, %v346, %v439
    %v443 = vsel %vm355, 0, %v441
    %v444 = vcosq.f32.pop %v442
    %v445 = vsinq.f32.pop %v442
    %vm446 = vweird.f32 %v346
    %v447 = vadd.s32 %v443, 3
    %v448 = vand.u32 %v447, 3
    %vm449 = vcmp.lt.s32.totalorder %v448, 2
    %vm450 = vcmp.eq.s32.totalorder %v448, 0
    %v451 = vxor.u32 %v445, 2147483648
    %v452 = vsel %vm450, %v444, %v451
    %vm453 = vcmp.eq.s32.totalorder %v448, 2
    %v454 = vxor.u32 %v444, 2147483648
    %v455 = vsel %vm453, %v454, %v445
    %v456 = vsel %vm449, %v452, %v455
    %v457 = vsel %vm446, nan, %v456
    %v458 = vand.u32 2147483647, %v347
    %vm459 = vcmp.le.f32.partialorder %v458, 0.7853982
    %vm460 = vcmp.lt.s32.totalorder %v347, 0
    %v461 = vand.u32 %v347, 2139095040
    %v462 = vshrl.u32 %v461, 23
    %v463 = vsub.s32 %v462, 127
    %v464 = vand.u32 2147483647, %v347
    %v465 = vand.u32 %v464, 8388607
    %v466 = vor.u32 %v465, 8388608
    %v467 = vsub.s32 0, %v466
    %v468 = vadd.s32 %v463, 1
    %vm469 = vcmp.gt.s32.totalorder %v468, 0
    %v470 = vsel %vm469, %v468, 0
    %v471 = vshrl.u32 %v470, 5
    %v472 = vand.u32 %v470, 31
    %v473 = vsub.s32 32, %v472
    %v474 = vshrl.u32 683565275, %v473
    %v475 = vshll.u32 683565275, %v472
    %v476 = vshrl.u32 2475754826, %v473
    %v477 = vor.u32 %v475, %v476
    %v478 = vshll.u32 2475754826, %v472
    %v479 = vshrl.u32 2131351028, %v473
    %v480 = vor.u32 %v478, %v479
    %v481 = vshll.u32 2131351028, %v472
    %v482 = vshrl.u32 2102212464, %v473
    %v483 = vor.u32 %v481, %v482
    %v484 = vshll.u32 2102212464, %v472
    %v485 = vshrl.u32 920167782, %v473
    %v486 = vor.u32 %v484, %v485
    %v487 = vshll.u32 920167782, %v472
    %v488 = vshrl.u32 1326507024, %v473
    %v489 = vor.u32 %v487, %v488
    %vm490 = vcmp.lt.s32.totalorder %v471, 1
    %vm491 = vcmp.lt.s32.totalorder %v471, 2
    %vm492 = vcmp.lt.s32.totalorder %v471, 3
    %vm493 = vcmp.lt.s32.totalorder %v471, 4
    %v494 = vsel %vm490, %v474, %v477
    %v495 = vsel %vm493, %v483, 2102212464
    %v496 = vsel %vm492, %v480, %v495
    %v497 = vsel %vm491, %v494, %v496
    %v498 = vsel %vm490, %v477, %v480
    %v499 = vsel %vm493, %v486, 920167782
    %v500 = vsel %vm492, %v483, %v499
    %v501 = vsel %vm491, %v498, %v500
    %v502 = vsel %vm490, %v480, %v483
    %v503 = vsel %vm493, %v489, 1326507024
    %v504 = vsel %vm492, %v486, %v503
    %v505 = vsel %vm491, %v502, %v504
    %v506 = vshll.u32 %v466, 8
    %v507 = vmul.u32.u64.compose %v506, %v505
    %v508 = vextract.low.u32 %v507
    %v509 = vextract.high.u32 %v507
    %v510 = vmul.u32.u64.compose %v506, %v501
    %v511 = vextract.low.u32 %v510
    %v512 = vextract.high.u32 %v510
    %v513 = vmul.u32 %v506, %v497
    %v514 = vadd.s32 %v509, %v511
    %vm515 = vc.u32 %v509, %v511
    %v516 = vadd.s32 %v512, 1
    %v517 = vsel %vm515, %v516, %v512
    %v518 = vadd.s32 %v513, %v517
    %v519 = vadd.s32 %v518, 536870912
    %v520 = vshrl.u32 %v519, 30
    %v521 = vshll.u32 %v520, 30
    %v522 = vsub.s32 %v518, %v521
    %vm523 = vcmp.lt.s32.totalorder %v522, 0
    %v524 = vsub.s32 0, %v522
    %v525 = vsel %vm523, %v524, %v522
    %v526 = vclz %v525
    %v527 = vsub.s32 %v526, 2
    %vm528 = vcmp.gt.s32.totalorder 0, %v527
    %v529 = vsel %vm528, 0, %v527
    %v530 = vsub.s32 32, %v529
    %v531 = vshll.u32 %v522, %v529
    %v532 = vshrl.u32 %v514, %v530
    %v533 = vor.u32 %v531, %v532
    %v534 = vsub.s32 4294967266, %v529
    %v535 = vadd.s32 %v534, 127
    %v536 = vshll.u32 %v535, 23
    %v537 = vor.u32 4788187, %v536
    %v538 = vand.u32 2147483647, %v537
    %v540 = vcvt.s32.f32 %v533
    %v541 = vmul.f32 %v540, %v538
    %v542 = vxor.u32 %v541, 2147483648
    %v543 = vsel %vm460, %v542, %v541
    %v544 = vsub.s32 4, %v520
    %v545 = vsel %vm460, %v544, %v520
    %v546 = vsel %vm459, %v347, %v543
    %v547 = vsel %vm459, 0, %v545
    %v548 = vcosq.f32.pop %v546
    %v549 = vsinq.f32.pop %v546
    %vm550 = vweird.f32 %v347
    %v551 = vadd.s32 %v547, 3
    %v552 = vand.u32 %v551, 3
    %vm553 = vcmp.lt.s32.totalorder %v552, 2
    %vm554 = vcmp.eq.s32.totalorder %v552, 0
    %v555 = vxor.u32 %v549, 2147483648
    %v556 = vsel %vm554, %v548, %v555
    %vm557 = vcmp.eq.s32.totalorder %v552, 2
    %v558 = vxor.u32 %v548, 2147483648
    %v559 = vsel %vm557, %v558, %v549
    %v560 = vsel %vm553, %v556, %v559
    %v561 = vsel %vm550, nan, %v560
    %v562 = vand.u32 2147483647, %v348
    %vm563 = vcmp.le.f32.partialorder %v562, 0.7853982
    %vm564 = vcmp.lt.s32.totalorder %v348, 0
    %v565 = vand.u32 %v348, 2139095040
    %v566 = vshrl.u32 %v565, 23
    %v567 = vsub.s32 %v566, 127
    %v568 = vand.u32 2147483647, %v348
    %v569 = vand.u32 %v568, 8388607
    %v570 = vor.u32 %v569, 8388608
    %v571 = vsub.s32 0, %v570
    %v572 = vadd.s32 %v567, 1
    %vm573 = vcmp.gt.s32.totalorder %v572, 0
    %v574 = vsel %vm573, %v572, 0
    %v575 = vshrl.u32 %v574, 5
    %v576 = vand.u32 %v574, 31
    %v577 = vsub.s32 32, %v576
    %v578 = vshrl.u32 683565275, %v577
    %v579 = vshll.u32 683565275, %v576
    %v580 = vshrl.u32 2475754826, %v577
    %v581 = vor.u32 %v579, %v580
    %v582 = vshll.u32 2475754826, %v576
    %v583 = vshrl.u32 2131351028, %v577
    %v584 = vor.u32 %v582, %v583
    %v585 = vshll.u32 2131351028, %v576
    %v586 = vshrl.u32 2102212464, %v577
    %v587 = vor.u32 %v585, %v586
    %v588 = vshll.u32 2102212464, %v576
    %v589 = vshrl.u32 920167782, %v577
    %v590 = vor.u32 %v588, %v589
    %v591 = vshll.u32 920167782, %v576
    %v592 = vshrl.u32 1326507024, %v577
    %v593 = vor.u32 %v591, %v592
    %vm594 = vcmp.lt.s32.totalorder %v575, 1
    %vm595 = vcmp.lt.s32.totalorder %v575, 2
    %vm596 = vcmp.lt.s32.totalorder %v575, 3
    %vm597 = vcmp.lt.s32.totalorder %v575, 4
    %v598 = vsel %vm594, %v578, %v581
    %v599 = vsel %vm597, %v587, 2102212464
    %v600 = vsel %vm596, %v584, %v599
    %v601 = vsel %vm595, %v598, %v600
    %v602 = vsel %vm594, %v581, %v584
    %v603 = vsel %vm597, %v590, 920167782
    %v604 = vsel %vm596, %v587, %v603
    %v605 = vsel %vm595, %v602, %v604
    %v606 = vsel %vm594, %v584, %v587
    %v607 = vsel %vm597, %v593, 1326507024
    %v608 = vsel %vm596, %v590, %v607
    %v609 = vsel %vm595, %v606, %v608
    %v610 = vshll.u32 %v570, 8
    %v611 = vmul.u32.u64.compose %v610, %v609
    %v612 = vextract.low.u32 %v611
    %v613 = vextract.high.u32 %v611
    %v614 = vmul.u32.u64.compose %v610, %v605
    %v615 = vextract.low.u32 %v614
    %v616 = vextract.high.u32 %v614
    %v617 = vmul.u32 %v610, %v601
    %v618 = vadd.s32 %v613, %v615
    %vm619 = vc.u32 %v613, %v615
    %v620 = vadd.s32 %v616, 1
    %v621 = vsel %vm619, %v620, %v616
    %v622 = vadd.s32 %v617, %v621
    %v623 = vadd.s32 %v622, 536870912
    %v624 = vshrl.u32 %v623, 30
    %v625 = vshll.u32 %v624, 30
    %v626 = vsub.s32 %v622, %v625
    %vm627 = vcmp.lt.s32.totalorder %v626, 0
    %v628 = vsub.s32 0, %v626
    %v629 = vsel %vm627, %v628, %v626
    %v630 = vclz %v629
    %v631 = vsub.s32 %v630, 2
    %vm632 = vcmp.gt.s32.totalorder 0, %v631
    %v633 = vsel %vm632, 0, %v631
    %v634 = vsub.s32 32, %v633
    %v635 = vshll.u32 %v626, %v633
    %v636 = vshrl.u32 %v618, %v634
    %v637 = vor.u32 %v635, %v636
    %v638 = vsub.s32 4294967266, %v633
    %v639 = vadd.s32 %v638, 127
    %v640 = vshll.u32 %v639, 23
    %v641 = vor.u32 4788187, %v640
    %v642 = vand.u32 2147483647, %v641
    %v644 = vcvt.s32.f32 %v637
    %v645 = vmul.f32 %v644, %v642
    %v646 = vxor.u32 %v645, 2147483648
    %v647 = vsel %vm564, %v646, %v645
    %v648 = vsub.s32 4, %v624
    %v649 = vsel %vm564, %v648, %v624
    %v650 = vsel %vm563, %v348, %v647
    %v651 = vsel %vm563, 0, %v649
    %v652 = vcosq.f32.pop %v650
    %v653 = vsinq.f32.pop %v650
    %vm654 = vweird.f32 %v348
    %v655 = vadd.s32 %v651, 3
    %v656 = vand.u32 %v655, 3
    %vm657 = vcmp.lt.s32.totalorder %v656, 2
    %vm658 = vcmp.eq.s32.totalorder %v656, 0
    %v659 = vxor.u32 %v653, 2147483648
    %v660 = vsel %vm658, %v652, %v659
    %vm661 = vcmp.eq.s32.totalorder %v656, 2
    %v662 = vxor.u32 %v652, 2147483648
    %v663 = vsel %vm661, %v662, %v653
    %v664 = vsel %vm657, %v660, %v663
    %v665 = vsel %vm654, nan, %v664
    %v666 = vand.u32 2147483647, %v349
    %vm667 = vcmp.le.f32.partialorder %v666, 0.7853982
    %vm668 = vcmp.lt.s32.totalorder %v349, 0
    %v669 = vand.u32 %v349, 2139095040
    %v670 = vshrl.u32 %v669, 23
    %v671 = vsub.s32 %v670, 127
    %v672 = vand.u32 2147483647, %v349
    %v673 = vand.u32 %v672, 8388607
    %v674 = vor.u32 %v673, 8388608
    %v675 = vsub.s32 0, %v674
    %v676 = vadd.s32 %v671, 1
    %vm677 = vcmp.gt.s32.totalorder %v676, 0
    %v678 = vsel %vm677, %v676, 0
    %v679 = vshrl.u32 %v678, 5
    %v680 = vand.u32 %v678, 31
    %v681 = vsub.s32 32, %v680
    %v682 = vshrl.u32 683565275, %v681
    %v683 = vshll.u32 683565275, %v680
    %v684 = vshrl.u32 2475754826, %v681
    %v685 = vor.u32 %v683, %v684
    %v686 = vshll.u32 2475754826, %v680
    %v687 = vshrl.u32 2131351028, %v681
    %v688 = vor.u32 %v686, %v687
    %v689 = vshll.u32 2131351028, %v680
    %v690 = vshrl.u32 2102212464, %v681
    %v691 = vor.u32 %v689, %v690
    %v692 = vshll.u32 2102212464, %v680
    %v693 = vshrl.u32 920167782, %v681
    %v694 = vor.u32 %v692, %v693
    %v695 = vshll.u32 920167782, %v680
    %v696 = vshrl.u32 1326507024, %v681
    %v697 = vor.u32 %v695, %v696
    %vm698 = vcmp.lt.s32.totalorder %v679, 1
    %vm699 = vcmp.lt.s32.totalorder %v679, 2
    %vm700 = vcmp.lt.s32.totalorder %v679, 3
    %vm701 = vcmp.lt.s32.totalorder %v679, 4
    %v702 = vsel %vm698, %v682, %v685
    %v703 = vsel %vm701, %v691, 2102212464
    %v704 = vsel %vm700, %v688, %v703
    %v705 = vsel %vm699, %v702, %v704
    %v706 = vsel %vm698, %v685, %v688
    %v707 = vsel %vm701, %v694, 920167782
    %v708 = vsel %vm700, %v691, %v707
    %v709 = vsel %vm699, %v706, %v708
    %v710 = vsel %vm698, %v688, %v691
    %v711 = vsel %vm701, %v697, 1326507024
    %v712 = vsel %vm700, %v694, %v711
    %v713 = vsel %vm699, %v710, %v712
    %v714 = vshll.u32 %v674, 8
    %v715 = vmul.u32.u64.compose %v714, %v713
    %v716 = vextract.low.u32 %v715
    %v717 = vextract.high.u32 %v715
    %v718 = vmul.u32.u64.compose %v714, %v709
    %v719 = vextract.low.u32 %v718
    %v720 = vextract.high.u32 %v718
    %v721 = vmul.u32 %v714, %v705
    %v722 = vadd.s32 %v717, %v719
    %vm723 = vc.u32 %v717, %v719
    %v724 = vadd.s32 %v720, 1
    %v725 = vsel %vm723, %v724, %v720
    %v726 = vadd.s32 %v721, %v725
    %v727 = vadd.s32 %v726, 536870912
    %v728 = vshrl.u32 %v727, 30
    %v729 = vshll.u32 %v728, 30
    %v730 = vsub.s32 %v726, %v729
    %vm731 = vcmp.lt.s32.totalorder %v730, 0
    %v732 = vsub.s32 0, %v730
    %v733 = vsel %vm731, %v732, %v730
    %v734 = vclz %v733
    %v735 = vsub.s32 %v734, 2
    %vm736 = vcmp.gt.s32.totalorder 0, %v735
    %v737 = vsel %vm736, 0, %v735
    %v738 = vsub.s32 32, %v737
    %v739 = vshll.u32 %v730, %v737
    %v740 = vshrl.u32 %v722, %v738
    %v741 = vor.u32 %v739, %v740
    %v742 = vsub.s32 4294967266, %v737
    %v743 = vadd.s32 %v742, 127
    %v744 = vshll.u32 %v743, 23
    %v745 = vor.u32 4788187, %v744
    %v746 = vand.u32 2147483647, %v745
    %v748 = vcvt.s32.f32 %v741
    %v749 = vmul.f32 %v748, %v746
    %v750 = vxor.u32 %v749, 2147483648
    %v751 = vsel %vm668, %v750, %v749
    %v752 = vsub.s32 4, %v728
    %v753 = vsel %vm668, %v752, %v728
    %v754 = vsel %vm667, %v349, %v751
    %v755 = vsel %vm667, 0, %v753
    %v756 = vcosq.f32.pop %v754
    %v757 = vsinq.f32.pop %v754
    %vm758 = vweird.f32 %v349
    %v759 = vadd.s32 %v755, 3
    %v760 = vand.u32 %v759, 3
    %vm761 = vcmp.lt.s32.totalorder %v760, 2
    %vm762 = vcmp.eq.s32.totalorder %v760, 0
    %v763 = vxor.u32 %v757, 2147483648
    %v764 = vsel %vm762, %v756, %v763
    %vm765 = vcmp.eq.s32.totalorder %v760, 2
    %v766 = vxor.u32 %v756, 2147483648
    %v767 = vsel %vm765, %v766, %v757
    %v768 = vsel %vm761, %v764, %v767
    %v769 = vsel %vm758, nan, %v768
    %v770 = vand.u32 2147483647, %v350
    %vm771 = vcmp.le.f32.partialorder %v770, 0.7853982
    %vm772 = vcmp.lt.s32.totalorder %v350, 0
    %v773 = vand.u32 %v350, 2139095040
    %v774 = vshrl.u32 %v773, 23
    %v775 = vsub.s32 %v774, 127
    %v776 = vand.u32 2147483647, %v350
    %v777 = vand.u32 %v776, 8388607
    %v778 = vor.u32 %v777, 8388608
    %v779 = vsub.s32 0, %v778
    %v780 = vadd.s32 %v775, 1
    %vm781 = vcmp.gt.s32.totalorder %v780, 0
    %v782 = vsel %vm781, %v780, 0
    %v783 = vshrl.u32 %v782, 5
    %v784 = vand.u32 %v782, 31
    %v785 = vsub.s32 32, %v784
    %v786 = vshrl.u32 683565275, %v785
    %v787 = vshll.u32 683565275, %v784
    %v788 = vshrl.u32 2475754826, %v785
    %v789 = vor.u32 %v787, %v788
    %v790 = vshll.u32 2475754826, %v784
    %v791 = vshrl.u32 2131351028, %v785
    %v792 = vor.u32 %v790, %v791
    %v793 = vshll.u32 2131351028, %v784
    %v794 = vshrl.u32 2102212464, %v785
    %v795 = vor.u32 %v793, %v794
    %v796 = vshll.u32 2102212464, %v784
    %v797 = vshrl.u32 920167782, %v785
    %v798 = vor.u32 %v796, %v797
    %v799 = vshll.u32 920167782, %v784
    %v800 = vshrl.u32 1326507024, %v785
    %v801 = vor.u32 %v799, %v800
    %vm802 = vcmp.lt.s32.totalorder %v783, 1
    %vm803 = vcmp.lt.s32.totalorder %v783, 2
    %vm804 = vcmp.lt.s32.totalorder %v783, 3
    %vm805 = vcmp.lt.s32.totalorder %v783, 4
    %v806 = vsel %vm802, %v786, %v789
    %v807 = vsel %vm805, %v795, 2102212464
    %v808 = vsel %vm804, %v792, %v807
    %v809 = vsel %vm803, %v806, %v808
    %v810 = vsel %vm802, %v789, %v792
    %v811 = vsel %vm805, %v798, 920167782
    %v812 = vsel %vm804, %v795, %v811
    %v813 = vsel %vm803, %v810, %v812
    %v814 = vsel %vm802, %v792, %v795
    %v815 = vsel %vm805, %v801, 1326507024
    %v816 = vsel %vm804, %v798, %v815
    %v817 = vsel %vm803, %v814, %v816
    %v818 = vshll.u32 %v778, 8
    %v819 = vmul.u32.u64.compose %v818, %v817
    %v820 = vextract.low.u32 %v819
    %v821 = vextract.high.u32 %v819
    %v822 = vmul.u32.u64.compose %v818, %v813
    %v823 = vextract.low.u32 %v822
    %v824 = vextract.high.u32 %v822
    %v825 = vmul.u32 %v818, %v809
    %v826 = vadd.s32 %v821, %v823
    %vm827 = vc.u32 %v821, %v823
    %v828 = vadd.s32 %v824, 1
    %v829 = vsel %vm827, %v828, %v824
    %v830 = vadd.s32 %v825, %v829
    %v831 = vadd.s32 %v830, 536870912
    %v832 = vshrl.u32 %v831, 30
    %v833 = vshll.u32 %v832, 30
    %v834 = vsub.s32 %v830, %v833
    %vm835 = vcmp.lt.s32.totalorder %v834, 0
    %v836 = vsub.s32 0, %v834
    %v837 = vsel %vm835, %v836, %v834
    %v838 = vclz %v837
    %v839 = vsub.s32 %v838, 2
    %vm840 = vcmp.gt.s32.totalorder 0, %v839
    %v841 = vsel %vm840, 0, %v839
    %v842 = vsub.s32 32, %v841
    %v843 = vshll.u32 %v834, %v841
    %v844 = vshrl.u32 %v826, %v842
    %v845 = vor.u32 %v843, %v844
    %v846 = vsub.s32 4294967266, %v841
    %v847 = vadd.s32 %v846, 127
    %v848 = vshll.u32 %v847, 23
    %v849 = vor.u32 4788187, %v848
    %v850 = vand.u32 2147483647, %v849
    %v852 = vcvt.s32.f32 %v845
    %v853 = vmul.f32 %v852, %v850
    %v854 = vxor.u32 %v853, 2147483648
    %v855 = vsel %vm772, %v854, %v853
    %v856 = vsub.s32 4, %v832
    %v857 = vsel %vm772, %v856, %v832
    %v858 = vsel %vm771, %v350, %v855
    %v859 = vsel %vm771, 0, %v857
    %v860 = vcosq.f32.pop %v858
    %v861 = vsinq.f32.pop %v858
    %vm862 = vweird.f32 %v350
    %v863 = vadd.s32 %v859, 3
    %v864 = vand.u32 %v863, 3
    %vm865 = vcmp.lt.s32.totalorder %v864, 2
    %vm866 = vcmp.eq.s32.totalorder %v864, 0
    %v867 = vxor.u32 %v861, 2147483648
    %v868 = vsel %vm866, %v860, %v867
    %vm869 = vcmp.eq.s32.totalorder %v864, 2
    %v870 = vxor.u32 %v860, 2147483648
    %v871 = vsel %vm869, %v870, %v861
    %v872 = vsel %vm865, %v868, %v871
    %v873 = vsel %vm862, nan, %v872
    %v874 = vand.u32 2147483647, %v351
    %vm875 = vcmp.le.f32.partialorder %v874, 0.7853982
    %vm876 = vcmp.lt.s32.totalorder %v351, 0
    %v877 = vand.u32 %v351, 2139095040
    %v878 = vshrl.u32 %v877, 23
    %v879 = vsub.s32 %v878, 127
    %v880 = vand.u32 2147483647, %v351
    %v881 = vand.u32 %v880, 8388607
    %v882 = vor.u32 %v881, 8388608
    %v883 = vsub.s32 0, %v882
    %v884 = vadd.s32 %v879, 1
    %vm885 = vcmp.gt.s32.totalorder %v884, 0
    %v886 = vsel %vm885, %v884, 0
    %v887 = vshrl.u32 %v886, 5
    %v888 = vand.u32 %v886, 31
    %v889 = vsub.s32 32, %v888
    %v890 = vshrl.u32 683565275, %v889
    %v891 = vshll.u32 683565275, %v888
    %v892 = vshrl.u32 2475754826, %v889
    %v893 = vor.u32 %v891, %v892
    %v894 = vshll.u32 2475754826, %v888
    %v895 = vshrl.u32 2131351028, %v889
    %v896 = vor.u32 %v894, %v895
    %v897 = vshll.u32 2131351028, %v888
    %v898 = vshrl.u32 2102212464, %v889
    %v899 = vor.u32 %v897, %v898
    %v900 = vshll.u32 2102212464, %v888
    %v901 = vshrl.u32 920167782, %v889
    %v902 = vor.u32 %v900, %v901
    %v903 = vshll.u32 920167782, %v888
    %v904 = vshrl.u32 1326507024, %v889
    %v905 = vor.u32 %v903, %v904
    %vm906 = vcmp.lt.s32.totalorder %v887, 1
    %vm907 = vcmp.lt.s32.totalorder %v887, 2
    %vm908 = vcmp.lt.s32.totalorder %v887, 3
    %vm909 = vcmp.lt.s32.totalorder %v887, 4
    %v910 = vsel %vm906, %v890, %v893
    %v911 = vsel %vm909, %v899, 2102212464
    %v912 = vsel %vm908, %v896, %v911
    %v913 = vsel %vm907, %v910, %v912
    %v914 = vsel %vm906, %v893, %v896
    %v915 = vsel %vm909, %v902, 920167782
    %v916 = vsel %vm908, %v899, %v915
    %v917 = vsel %vm907, %v914, %v916
    %v918 = vsel %vm906, %v896, %v899
    %v919 = vsel %vm909, %v905, 1326507024
    %v920 = vsel %vm908, %v902, %v919
    %v921 = vsel %vm907, %v918, %v920
    %v922 = vshll.u32 %v882, 8
    %v923 = vmul.u32.u64.compose %v922, %v921
    %v924 = vextract.low.u32 %v923
    %v925 = vextract.high.u32 %v923
    %v926 = vmul.u32.u64.compose %v922, %v917
    %v927 = vextract.low.u32 %v926
    %v928 = vextract.high.u32 %v926
    %v929 = vmul.u32 %v922, %v913
    %v930 = vadd.s32 %v925, %v927
    %vm931 = vc.u32 %v925, %v927
    %v932 = vadd.s32 %v928, 1
    %v933 = vsel %vm931, %v932, %v928
    %v934 = vadd.s32 %v929, %v933
    %v935 = vadd.s32 %v934, 536870912
    %v936 = vshrl.u32 %v935, 30
    %v937 = vshll.u32 %v936, 30
    %v938 = vsub.s32 %v934, %v937
    %vm939 = vcmp.lt.s32.totalorder %v938, 0
    %v940 = vsub.s32 0, %v938
    %v941 = vsel %vm939, %v940, %v938
    %v942 = vclz %v941
    %v943 = vsub.s32 %v942, 2
    %vm944 = vcmp.gt.s32.totalorder 0, %v943
    %v945 = vsel %vm944, 0, %v943
    %v946 = vsub.s32 32, %v945
    %v947 = vshll.u32 %v938, %v945
    %v948 = vshrl.u32 %v930, %v946
    %v949 = vor.u32 %v947, %v948
    %v950 = vsub.s32 4294967266, %v945
    %v951 = vadd.s32 %v950, 127
    %v952 = vshll.u32 %v951, 23
    %v953 = vor.u32 4788187, %v952
    %v954 = vand.u32 2147483647, %v953
    %v956 = vcvt.s32.f32 %v949
    %v957 = vmul.f32 %v956, %v954
    %v958 = vxor.u32 %v957, 2147483648
    %v959 = vsel %vm876, %v958, %v957
    %v960 = vsub.s32 4, %v936
    %v961 = vsel %vm876, %v960, %v936
    %v962 = vsel %vm875, %v351, %v959
    %v963 = vsel %vm875, 0, %v961
    %v964 = vcosq.f32.pop %v962
    %v965 = vsinq.f32.pop %v962
    %vm966 = vweird.f32 %v351
    %v967 = vadd.s32 %v963, 3
    %v968 = vand.u32 %v967, 3
    %vm969 = vcmp.lt.s32.totalorder %v968, 2
    %vm970 = vcmp.eq.s32.totalorder %v968, 0
    %v971 = vxor.u32 %v965, 2147483648
    %v972 = vsel %vm970, %v964, %v971
    %vm973 = vcmp.eq.s32.totalorder %v968, 2
    %v974 = vxor.u32 %v964, 2147483648
    %v975 = vsel %vm973, %v974, %v965
    %v976 = vsel %vm969, %v972, %v975
    %v977 = vsel %vm966, nan, %v976
    %v978 = vand.u32 2147483647, %v352
    %vm979 = vcmp.le.f32.partialorder %v978, 0.7853982
    %vm980 = vcmp.lt.s32.totalorder %v352, 0
    %v981 = vand.u32 %v352, 2139095040
    %v982 = vshrl.u32 %v981, 23
    %v983 = vsub.s32 %v982, 127
    %v984 = vand.u32 2147483647, %v352
    %v985 = vand.u32 %v984, 8388607
    %v986 = vor.u32 %v985, 8388608
    %v987 = vsub.s32 0, %v986
    %v988 = vadd.s32 %v983, 1
    %vm989 = vcmp.gt.s32.totalorder %v988, 0
    %v990 = vsel %vm989, %v988, 0
    %v991 = vshrl.u32 %v990, 5
    %v992 = vand.u32 %v990, 31
    %v993 = vsub.s32 32, %v992
    %v994 = vshrl.u32 683565275, %v993
    %v995 = vshll.u32 683565275, %v992
    %v996 = vshrl.u32 2475754826, %v993
    %v997 = vor.u32 %v995, %v996
    %v998 = vshll.u32 2475754826, %v992
    %v999 = vshrl.u32 2131351028, %v993
    %v1000 = vor.u32 %v998, %v999
    %v1001 = vshll.u32 2131351028, %v992
    %v1002 = vshrl.u32 2102212464, %v993
    %v1003 = vor.u32 %v1001, %v1002
    %v1004 = vshll.u32 2102212464, %v992
    %v1005 = vshrl.u32 920167782, %v993
    %v1006 = vor.u32 %v1004, %v1005
    %v1007 = vshll.u32 920167782, %v992
    %v1008 = vshrl.u32 1326507024, %v993
    %v1009 = vor.u32 %v1007, %v1008
    %vm1010 = vcmp.lt.s32.totalorder %v991, 1
    %vm1011 = vcmp.lt.s32.totalorder %v991, 2
    %vm1012 = vcmp.lt.s32.totalorder %v991, 3
    %vm1013 = vcmp.lt.s32.totalorder %v991, 4
    %v1014 = vsel %vm1010, %v994, %v997
    %v1015 = vsel %vm1013, %v1003, 2102212464
    %v1016 = vsel %vm1012, %v1000, %v1015
    %v1017 = vsel %vm1011, %v1014, %v1016
    %v1018 = vsel %vm1010, %v997, %v1000
    %v1019 = vsel %vm1013, %v1006, 920167782
    %v1020 = vsel %vm1012, %v1003, %v1019
    %v1021 = vsel %vm1011, %v1018, %v1020
    %v1022 = vsel %vm1010, %v1000, %v1003
    %v1023 = vsel %vm1013, %v1009, 1326507024
    %v1024 = vsel %vm1012, %v1006, %v1023
    %v1025 = vsel %vm1011, %v1022, %v1024
    %v1026 = vshll.u32 %v986, 8
    %v1027 = vmul.u32.u64.compose %v1026, %v1025
    %v1028 = vextract.low.u32 %v1027
    %v1029 = vextract.high.u32 %v1027
    %v1030 = vmul.u32.u64.compose %v1026, %v1021
    %v1031 = vextract.low.u32 %v1030
    %v1032 = vextract.high.u32 %v1030
    %v1033 = vmul.u32 %v1026, %v1017
    %v1034 = vadd.s32 %v1029, %v1031
    %vm1035 = vc.u32 %v1029, %v1031
    %v1036 = vadd.s32 %v1032, 1
    %v1037 = vsel %vm1035, %v1036, %v1032
    %v1038 = vadd.s32 %v1033, %v1037
    %v1039 = vadd.s32 %v1038, 536870912
    %v1040 = vshrl.u32 %v1039, 30
    %v1041 = vshll.u32 %v1040, 30
    %v1042 = vsub.s32 %v1038, %v1041
    %vm1043 = vcmp.lt.s32.totalorder %v1042, 0
    %v1044 = vsub.s32 0, %v1042
    %v1045 = vsel %vm1043, %v1044, %v1042
    %v1046 = vclz %v1045
    %v1047 = vsub.s32 %v1046, 2
    %vm1048 = vcmp.gt.s32.totalorder 0, %v1047
    %v1049 = vsel %vm1048, 0, %v1047
    %v1050 = vsub.s32 32, %v1049
    %v1051 = vshll.u32 %v1042, %v1049
    %v1052 = vshrl.u32 %v1034, %v1050
    %v1053 = vor.u32 %v1051, %v1052
    %v1054 = vsub.s32 4294967266, %v1049
    %v1055 = vadd.s32 %v1054, 127
    %v1056 = vshll.u32 %v1055, 23
    %v1057 = vor.u32 4788187, %v1056
    %v1058 = vand.u32 2147483647, %v1057
    %v1060 = vcvt.s32.f32 %v1053
    %v1061 = vmul.f32 %v1060, %v1058
    %v1062 = vxor.u32 %v1061, 2147483648
    %v1063 = vsel %vm980, %v1062, %v1061
    %v1064 = vsub.s32 4, %v1040
    %v1065 = vsel %vm980, %v1064, %v1040
    %v1066 = vsel %vm979, %v352, %v1063
    %v1067 = vsel %vm979, 0, %v1065
    %v1068 = vcosq.f32.pop %v1066
    %v1069 = vsinq.f32.pop %v1066
    %vm1070 = vweird.f32 %v352
    %v1071 = vadd.s32 %v1067, 3
    %v1072 = vand.u32 %v1071, 3
    %vm1073 = vcmp.lt.s32.totalorder %v1072, 2
    %vm1074 = vcmp.eq.s32.totalorder %v1072, 0
    %v1075 = vxor.u32 %v1069, 2147483648
    %v1076 = vsel %vm1074, %v1068, %v1075
    %vm1077 = vcmp.eq.s32.totalorder %v1072, 2
    %v1078 = vxor.u32 %v1068, 2147483648
    %v1079 = vsel %vm1077, %v1078, %v1069
    %v1080 = vsel %vm1073, %v1076, %v1079
    %v1081 = vsel %vm1070, nan, %v1080
    %v1082 = vand.u32 2147483647, %v353
    %vm1083 = vcmp.le.f32.partialorder %v1082, 0.7853982
    %vm1084 = vcmp.lt.s32.totalorder %v353, 0
    %v1085 = vand.u32 %v353, 2139095040
    %v1086 = vshrl.u32 %v1085, 23
    %v1087 = vsub.s32 %v1086, 127
    %v1088 = vand.u32 2147483647, %v353
    %v1089 = vand.u32 %v1088, 8388607
    %v1090 = vor.u32 %v1089, 8388608
    %v1091 = vsub.s32 0, %v1090
    %v1092 = vadd.s32 %v1087, 1
    %vm1093 = vcmp.gt.s32.totalorder %v1092, 0
    %v1094 = vsel %vm1093, %v1092, 0
    %v1095 = vshrl.u32 %v1094, 5
    %v1096 = vand.u32 %v1094, 31
    %v1097 = vsub.s32 32, %v1096
    %v1098 = vshrl.u32 683565275, %v1097
    %v1099 = vshll.u32 683565275, %v1096
    %v1100 = vshrl.u32 2475754826, %v1097
    %v1101 = vor.u32 %v1099, %v1100
    %v1102 = vshll.u32 2475754826, %v1096
    %v1103 = vshrl.u32 2131351028, %v1097
    %v1104 = vor.u32 %v1102, %v1103
    %v1105 = vshll.u32 2131351028, %v1096
    %v1106 = vshrl.u32 2102212464, %v1097
    %v1107 = vor.u32 %v1105, %v1106
    %v1108 = vshll.u32 2102212464, %v1096
    %v1109 = vshrl.u32 920167782, %v1097
    %v1110 = vor.u32 %v1108, %v1109
    %v1111 = vshll.u32 920167782, %v1096
    %v1112 = vshrl.u32 1326507024, %v1097
    %v1113 = vor.u32 %v1111, %v1112
    %vm1114 = vcmp.lt.s32.totalorder %v1095, 1
    %vm1115 = vcmp.lt.s32.totalorder %v1095, 2
    %vm1116 = vcmp.lt.s32.totalorder %v1095, 3
    %vm1117 = vcmp.lt.s32.totalorder %v1095, 4
    %v1118 = vsel %vm1114, %v1098, %v1101
    %v1119 = vsel %vm1117, %v1107, 2102212464
    %v1120 = vsel %vm1116, %v1104, %v1119
    %v1121 = vsel %vm1115, %v1118, %v1120
    %v1122 = vsel %vm1114, %v1101, %v1104
    %v1123 = vsel %vm1117, %v1110, 920167782
    %v1124 = vsel %vm1116, %v1107, %v1123
    %v1125 = vsel %vm1115, %v1122, %v1124
    %v1126 = vsel %vm1114, %v1104, %v1107
    %v1127 = vsel %vm1117, %v1113, 1326507024
    %v1128 = vsel %vm1116, %v1110, %v1127
    %v1129 = vsel %vm1115, %v1126, %v1128
    %v1130 = vshll.u32 %v1090, 8
    %v1131 = vmul.u32.u64.compose %v1130, %v1129
    %v1132 = vextract.low.u32 %v1131
    %v1133 = vextract.high.u32 %v1131
    %v1134 = vmul.u32.u64.compose %v1130, %v1125
    %v1135 = vextract.low.u32 %v1134
    %v1136 = vextract.high.u32 %v1134
    %v1137 = vmul.u32 %v1130, %v1121
    %v1138 = vadd.s32 %v1133, %v1135
    %vm1139 = vc.u32 %v1133, %v1135
    %v1140 = vadd.s32 %v1136, 1
    %v1141 = vsel %vm1139, %v1140, %v1136
    %v1142 = vadd.s32 %v1137, %v1141
    %v1143 = vadd.s32 %v1142, 536870912
    %v1144 = vshrl.u32 %v1143, 30
    %v1145 = vshll.u32 %v1144, 30
    %v1146 = vsub.s32 %v1142, %v1145
    %vm1147 = vcmp.lt.s32.totalorder %v1146, 0
    %v1148 = vsub.s32 0, %v1146
    %v1149 = vsel %vm1147, %v1148, %v1146
    %v1150 = vclz %v1149
    %v1151 = vsub.s32 %v1150, 2
    %vm1152 = vcmp.gt.s32.totalorder 0, %v1151
    %v1153 = vsel %vm1152, 0, %v1151
    %v1154 = vsub.s32 32, %v1153
    %v1155 = vshll.u32 %v1146, %v1153
    %v1156 = vshrl.u32 %v1138, %v1154
    %v1157 = vor.u32 %v1155, %v1156
    %v1158 = vsub.s32 4294967266, %v1153
    %v1159 = vadd.s32 %v1158, 127
    %v1160 = vshll.u32 %v1159, 23
    %v1161 = vor.u32 4788187, %v1160
    %v1162 = vand.u32 2147483647, %v1161
    %v1164 = vcvt.s32.f32 %v1157
    %v1165 = vmul.f32 %v1164, %v1162
    %v1166 = vxor.u32 %v1165, 2147483648
    %v1167 = vsel %vm1084, %v1166, %v1165
    %v1168 = vsub.s32 4, %v1144
    %v1169 = vsel %vm1084, %v1168, %v1144
    %v1170 = vsel %vm1083, %v353, %v1167
    %v1171 = vsel %vm1083, 0, %v1169
    %v1172 = vcosq.f32.pop %v1170
    %v1173 = vsinq.f32.pop %v1170
    %vm1174 = vweird.f32 %v353
    %v1175 = vadd.s32 %v1171, 3
    %v1176 = vand.u32 %v1175, 3
    %vm1177 = vcmp.lt.s32.totalorder %v1176, 2
    %vm1178 = vcmp.eq.s32.totalorder %v1176, 0
    %v1179 = vxor.u32 %v1173, 2147483648
    %v1180 = vsel %vm1178, %v1172, %v1179
    %vm1181 = vcmp.eq.s32.totalorder %v1176, 2
    %v1182 = vxor.u32 %v1172, 2147483648
    %v1183 = vsel %vm1181, %v1182, %v1173
    %v1184 = vsel %vm1177, %v1180, %v1183
    %v1185 = vsel %vm1174, nan, %v1184
    %v1186 = vpack.c.bf16 %v561, %v457
    %v1187 = vpack.c.bf16 %v769, %v665
    %v1188 = vpack.c.bf16 %v977, %v873
    %v1189 = vpack.c.bf16 %v1185, %v1081
    %v1190 = vld [vmem:[#allocation3] sm:$0xff]
    %v1191 = vld [vmem:[#allocation3 + $0x8] sm:$0xff]
    %v1192 = vld [vmem:[#allocation3 + $0x10] sm:$0xff]
    %v1193 = vld [vmem:[#allocation3 + $0x18] sm:$0xff]
    %v1194 = vld [vmem:[#allocation3 + $0x20] sm:$0xff]
    %v1195 = vld [vmem:[#allocation3 + $0x28] sm:$0xff]
    %v1196 = vld [vmem:[#allocation3 + $0x30] sm:$0xff]
    %v1197 = vld [vmem:[#allocation3 + $0x38] sm:$0xff]
    %v1198 = vld [vmem:[#allocation3 + $0x40] sm:$0xff]
    %v1199 = vld [vmem:[#allocation3 + $0x48] sm:$0xff]
    %v1200 = vld [vmem:[#allocation3 + $0x50] sm:$0xff]
    %v1201 = vld [vmem:[#allocation3 + $0x58] sm:$0xff]
    %v1202 = vld [vmem:[#allocation3 + $0x60] sm:$0xff]
    %v1203 = vld [vmem:[#allocation3 + $0x68] sm:$0xff]
    %v1204 = vld [vmem:[#allocation3 + $0x70] sm:$0xff]
    %v1205 = vld [vmem:[#allocation3 + $0x78] sm:$0xff]
    %v1206 = vld [vmem:[#allocation3 + $0x80] sm:$0xff]
    %v1207 = vld [vmem:[#allocation3 + $0x88] sm:$0xff]
    %v1208 = vld [vmem:[#allocation3 + $0x90] sm:$0xff]
    %v1209 = vld [vmem:[#allocation3 + $0x98] sm:$0xff]
    %v1210 = vld [vmem:[#allocation3 + $0xa0] sm:$0xff]
    %v1211 = vld [vmem:[#allocation3 + $0xa8] sm:$0xff]
    %v1212 = vld [vmem:[#allocation3 + $0xb0] sm:$0xff]
    %v1213 = vld [vmem:[#allocation3 + $0xb8] sm:$0xff]
    %v1214 = vld [vmem:[#allocation3 + $0xc0] sm:$0xff]
    %v1215 = vld [vmem:[#allocation3 + $0xc8] sm:$0xff]
    %v1216 = vld [vmem:[#allocation3 + $0xd0] sm:$0xff]
    %v1217 = vld [vmem:[#allocation3 + $0xd8] sm:$0xff]
    %v1218 = vld [vmem:[#allocation3 + $0xe0] sm:$0xff]
    %v1219 = vld [vmem:[#allocation3 + $0xe8] sm:$0xff]
    %v1220 = vld [vmem:[#allocation3 + $0xf0] sm:$0xff]
    %v1221 = vld [vmem:[#allocation3 + $0xf8] sm:$0xff]
    %v1254 = vunpack.c.l.b16 %v1190
    %v1255 = vunpack.c.h.b16 %v1190
    %v1256 = vunpack.c.l.b16 %v1191
    %v1257 = vunpack.c.h.b16 %v1191
    %v1258 = vunpack.c.l.b16 %v1192
    %v1259 = vunpack.c.h.b16 %v1192
    %v1260 = vunpack.c.l.b16 %v1193
    %v1261 = vunpack.c.h.b16 %v1193
    %v1262 = vunpack.c.l.b16 %v1194
    %v1263 = vunpack.c.h.b16 %v1194
    %v1264 = vunpack.c.l.b16 %v1195
    %v1265 = vunpack.c.h.b16 %v1195
    %v1266 = vunpack.c.l.b16 %v1196
    %v1267 = vunpack.c.h.b16 %v1196
    %v1268 = vunpack.c.l.b16 %v1197
    %v1269 = vunpack.c.h.b16 %v1197
    %v1270 = vunpack.c.l.b16 %v1198
    %v1271 = vunpack.c.h.b16 %v1198
    %v1272 = vunpack.c.l.b16 %v1199
    %v1273 = vunpack.c.h.b16 %v1199
    %v1274 = vunpack.c.l.b16 %v1200
    %v1275 = vunpack.c.h.b16 %v1200
    %v1276 = vunpack.c.l.b16 %v1201
    %v1277 = vunpack.c.h.b16 %v1201
    %v1278 = vunpack.c.l.b16 %v1202
    %v1279 = vunpack.c.h.b16 %v1202
    %v1280 = vunpack.c.l.b16 %v1203
    %v1281 = vunpack.c.h.b16 %v1203
    %v1282 = vunpack.c.l.b16 %v1204
    %v1283 = vunpack.c.h.b16 %v1204
    %v1284 = vunpack.c.l.b16 %v1205
    %v1285 = vunpack.c.h.b16 %v1205
    %v1286 = vunpack.c.l.b16 %v1206
    %v1287 = vunpack.c.h.b16 %v1206
    %v1288 = vunpack.c.l.b16 %v1207
    %v1289 = vunpack.c.h.b16 %v1207
    %v1290 = vunpack.c.l.b16 %v1208
    %v1291 = vunpack.c.h.b16 %v1208
    %v1292 = vunpack.c.l.b16 %v1209
    %v1293 = vunpack.c.h.b16 %v1209
    %v1294 = vunpack.c.l.b16 %v1210
    %v1295 = vunpack.c.h.b16 %v1210
    %v1296 = vunpack.c.l.b16 %v1211
    %v1297 = vunpack.c.h.b16 %v1211
    %v1298 = vunpack.c.l.b16 %v1212
    %v1299 = vunpack.c.h.b16 %v1212
    %v1300 = vunpack.c.l.b16 %v1213
    %v1301 = vunpack.c.h.b16 %v1213
    %v1302 = vunpack.c.l.b16 %v1214
    %v1303 = vunpack.c.h.b16 %v1214
    %v1304 = vunpack.c.l.b16 %v1215
    %v1305 = vunpack.c.h.b16 %v1215
    %v1306 = vunpack.c.l.b16 %v1216
    %v1307 = vunpack.c.h.b16 %v1216
    %v1308 = vunpack.c.l.b16 %v1217
    %v1309 = vunpack.c.h.b16 %v1217
    %v1310 = vunpack.c.l.b16 %v1218
    %v1311 = vunpack.c.h.b16 %v1218
    %v1312 = vunpack.c.l.b16 %v1219
    %v1313 = vunpack.c.h.b16 %v1219
    %v1314 = vunpack.c.l.b16 %v1220
    %v1315 = vunpack.c.h.b16 %v1220
    %v1316 = vunpack.c.l.b16 %v1221
    %v1317 = vunpack.c.h.b16 %v1221
    %v1318 = vpack.c.b16 %v1258, %v1254
    %v1319 = vpack.c.b16 %v1259, %v1255
    %v1320 = vpack.c.b16 %v1260, %v1256
    %v1321 = vpack.c.b16 %v1261, %v1257
    %v1322 = vpack.c.b16 %v1266, %v1262
    %v1323 = vpack.c.b16 %v1267, %v1263
    %v1324 = vpack.c.b16 %v1268, %v1264
    %v1325 = vpack.c.b16 %v1269, %v1265
    %v1326 = vpack.c.b16 %v1274, %v1270
    %v1327 = vpack.c.b16 %v1275, %v1271
    %v1328 = vpack.c.b16 %v1276, %v1272
    %v1329 = vpack.c.b16 %v1277, %v1273
    %v1330 = vpack.c.b16 %v1282, %v1278
    %v1331 = vpack.c.b16 %v1283, %v1279
    %v1332 = vpack.c.b16 %v1284, %v1280
    %v1333 = vpack.c.b16 %v1285, %v1281
    %v1334 = vpack.c.b16 %v1290, %v1286
    %v1335 = vpack.c.b16 %v1291, %v1287
    %v1336 = vpack.c.b16 %v1292, %v1288
    %v1337 = vpack.c.b16 %v1293, %v1289
    %v1338 = vpack.c.b16 %v1298, %v1294
    %v1339 = vpack.c.b16 %v1299, %v1295
    %v1340 = vpack.c.b16 %v1300, %v1296
    %v1341 = vpack.c.b16 %v1301, %v1297
    %v1342 = vpack.c.b16 %v1306, %v1302
    %v1343 = vpack.c.b16 %v1307, %v1303
    %v1344 = vpack.c.b16 %v1308, %v1304
    %v1345 = vpack.c.b16 %v1309, %v1305
    %v1346 = vpack.c.b16 %v1314, %v1310
    %v1347 = vpack.c.b16 %v1315, %v1311
    %v1348 = vpack.c.b16 %v1316, %v1312
    %v1349 = vpack.c.b16 %v1317, %v1313
    %1382 = vmatprep.subr.bf16.mxu0 %v1347
    %1383 = vmatpush1.bf16.msra.mxu0 %v1346
    %1384 = vmatprep.subr.bf16.mxu0 %v1343
    %1385 = vmatpush1.bf16.msra.mxu0 %v1342
    %1386 = vmatprep.subr.bf16.mxu0 %v1339
    %1387 = vmatpush1.bf16.msra.mxu0 %v1338
    %1388 = vmatprep.subr.bf16.mxu0 %v1335
    %1389 = vmatpush1.bf16.msra.mxu0 %v1334
    %1390 = vmatprep.subr.bf16.mxu0 %v1331
    %1391 = vmatpush1.bf16.msra.mxu0 %v1330
    %1392 = vmatprep.subr.bf16.mxu0 %v1327
    %1393 = vmatpush1.bf16.msra.mxu0 %v1326
    %1394 = vmatprep.subr.bf16.mxu0 %v1323
    %1395 = vmatpush1.bf16.msra.mxu0 %v1322
    %1396 = vmatprep.subr.bf16.mxu0 %v1319
    %1397 = vmatpush1.bf16.msra.mxu0 %v1318
    %1398 = vmatprep.subr.bf16.mxu0 0
    %1399 = vmatpush2.bf16.msra.mxu0 0
    %1400 = vmatprep.subr.bf16.mxu0 0
    %1401 = vmatpush2.bf16.msra.mxu0 0
    %1402 = vmatprep.subr.bf16.mxu0 0
    %1403 = vmatpush2.bf16.msra.mxu0 0
    %1404 = vmatprep.subr.bf16.mxu0 0
    %1405 = vmatpush2.bf16.msra.mxu0 0
    %1406 = vmatprep.subr.bf16.mxu0 0
    %1407 = vmatpush2.bf16.msra.mxu0 0
    %1408 = vmatprep.subr.bf16.mxu0 0
    %1409 = vmatpush2.bf16.msra.mxu0 0
    %1410 = vmatprep.subr.bf16.mxu0 0
    %1411 = vmatpush2.bf16.msra.mxu0 0
    %1412 = vmatprep.subr.bf16.mxu0 0
    %1413 = vmatpush2.bf16.msra.mxu0 0
    %1414 = vmatprep.mubr.bf16.mxu0 0
    %1415 = vmatmul.mubr.bf16.gmra.mxu0 %v1186
    %v1416 = vpop.f32.mrf.mxu0
    %v1417 = vadd.f32 %v165, %v1416
    %v1418 = vpop.f32.mrf.mxu0
    %v1419 = vadd.f32 %v236, %v1418
    %v1420 = vpop.f32.mrf.mxu0
    %v1421 = vadd.f32 %v169, %v1420
    %v1422 = vpop.f32.mrf.mxu0
    %v1423 = vadd.f32 %v240, %v1422
    %1424 = vmatprep.mubr.bf16.mxu0 0
    %1425 = vmatmul.mubr.bf16.gmra.mxu0 %v1187
    %v1426 = vpop.f32.mrf.mxu0
    %v1427 = vadd.f32 %v175, %v1426
    %v1428 = vpop.f32.mrf.mxu0
    %v1429 = vadd.f32 %v246, %v1428
    %v1430 = vpop.f32.mrf.mxu0
    %v1431 = vadd.f32 %v179, %v1430
    %v1432 = vpop.f32.mrf.mxu0
    %v1433 = vadd.f32 %v250, %v1432
    %1434 = vmatprep.mubr.bf16.mxu0 0
    %1435 = vmatmul.mubr.bf16.gmra.mxu0 %v1188
    %v1436 = vpop.f32.mrf.mxu0
    %v1437 = vadd.f32 %v185, %v1436
    %v1438 = vpop.f32.mrf.mxu0
    %v1439 = vadd.f32 %v256, %v1438
    %v1440 = vpop.f32.mrf.mxu0
    %v1441 = vadd.f32 %v189, %v1440
    %v1442 = vpop.f32.mrf.mxu0
    %v1443 = vadd.f32 %v260, %v1442
    %1444 = vmatprep.mubr.bf16.mxu0 0
    %1445 = vmatmul.mubr.bf16.gmra.mxu0 %v1189
    %v1446 = vpop.f32.mrf.mxu0
    %v1447 = vadd.f32 %v195, %v1446
    %v1448 = vpop.f32.mrf.mxu0
    %v1449 = vadd.f32 %v266, %v1448
    %v1450 = vpop.f32.mrf.mxu0
    %v1451 = vadd.f32 %v199, %v1450
    %v1452 = vpop.f32.mrf.mxu0
    %v1453 = vadd.f32 %v270, %v1452
    %1454 = vdwg.mxu0
    %1455 = vmatprep.subr.bf16.mxu0 %v1349
    %1456 = vmatpush1.bf16.msra.mxu0 %v1348
    %1457 = vmatprep.subr.bf16.mxu0 %v1345
    %1458 = vmatpush1.bf16.msra.mxu0 %v1344
    %1459 = vmatprep.subr.bf16.mxu0 %v1341
    %1460 = vmatpush1.bf16.msra.mxu0 %v1340
    %1461 = vmatprep.subr.bf16.mxu0 %v1337
    %1462 = vmatpush1.bf16.msra.mxu0 %v1336
    %1463 = vmatprep.subr.bf16.mxu0 %v1333
    %1464 = vmatpush1.bf16.msra.mxu0 %v1332
    %1465 = vmatprep.subr.bf16.mxu0 %v1329
    %1466 = vmatpush1.bf16.msra.mxu0 %v1328
    %1467 = vmatprep.subr.bf16.mxu0 %v1325
    %1468 = vmatpush1.bf16.msra.mxu0 %v1324
    %1469 = vmatprep.subr.bf16.mxu0 %v1321
    %1470 = vmatpush1.bf16.msra.mxu0 %v1320
    %1471 = vmatprep.subr.bf16.mxu0 0
    %1472 = vmatpush2.bf16.msra.mxu0 0
    %1473 = vmatprep.subr.bf16.mxu0 0
    %1474 = vmatpush2.bf16.msra.mxu0 0
    %1475 = vmatprep.subr.bf16.mxu0 0
    %1476 = vmatpush2.bf16.msra.mxu0 0
    %1477 = vmatprep.subr.bf16.mxu0 0
    %1478 = vmatpush2.bf16.msra.mxu0 0
    %1479 = vmatprep.subr.bf16.mxu0 0
    %1480 = vmatpush2.bf16.msra.mxu0 0
    %1481 = vmatprep.subr.bf16.mxu0 0
    %1482 = vmatpush2.bf16.msra.mxu0 0
    %1483 = vmatprep.subr.bf16.mxu0 0
    %1484 = vmatpush2.bf16.msra.mxu0 0
    %1485 = vmatprep.subr.bf16.mxu0 0
    %1486 = vmatpush2.bf16.msra.mxu0 0
    %1487 = vmatprep.mubr.bf16.mxu0 0
    %1488 = vmatmul.mubr.bf16.gmra.mxu0 %v1186
    %v1489 = vpop.f32.mrf.mxu0
    %v1490 = vadd.f32 %v238, %v1489
    %v1491 = vpop.f32.mrf.mxu0
    %v1492 = vadd.f32 %v309, %v1491
    %v1493 = vpop.f32.mrf.mxu0
    %v1494 = vadd.f32 %v242, %v1493
    %v1495 = vpop.f32.mrf.mxu0
    %v1496 = vadd.f32 %v312, %v1495
    %1497 = vmatprep.mubr.bf16.mxu0 0
    %1498 = vmatmul.mubr.bf16.gmra.mxu0 %v1187
    %v1499 = vpop.f32.mrf.mxu0
    %v1500 = vadd.f32 %v248, %v1499
    %v1501 = vpop.f32.mrf.mxu0
    %v1502 = vadd.f32 %v317, %v1501
    %v1503 = vpop.f32.mrf.mxu0
    %v1504 = vadd.f32 %v252, %v1503
    %v1505 = vpop.f32.mrf.mxu0
    %v1506 = vadd.f32 %v320, %v1505
    %1507 = vmatprep.mubr.bf16.mxu0 0
    %1508 = vmatmul.mubr.bf16.gmra.mxu0 %v1188
    %v1509 = vpop.f32.mrf.mxu0
    %v1510 = vadd.f32 %v258, %v1509
    %v1511 = vpop.f32.mrf.mxu0
    %v1512 = vadd.f32 %v325, %v1511
    %v1513 = vpop.f32.mrf.mxu0
    %v1514 = vadd.f32 %v262, %v1513
    %v1515 = vpop.f32.mrf.mxu0
    %v1516 = vadd.f32 %v328, %v1515
    %1517 = vmatprep.mubr.bf16.mxu0 0
    %1518 = vmatmul.mubr.bf16.gmra.mxu0 %v1189
    %v1519 = vpop.f32.mrf.mxu0
    %v1520 = vadd.f32 %v268, %v1519
    %v1521 = vpop.f32.mrf.mxu0
    %v1522 = vadd.f32 %v333, %v1521
    %v1523 = vpop.f32.mrf.mxu0
    %v1524 = vadd.f32 %v272, %v1523
    %v1525 = vpop.f32.mrf.mxu0
    %v1526 = vadd.f32 %v336, %v1525
    %1527 = vdwg.mxu0
    %v1528 = vld [vmem:[%s4] sm:$0xf]
    %v1530 = vlaneseq
    %v1531 = vshrl.u32 %v1530, 7
    %v1532 = vsub.s32 0, %v1531
    %v1533 = vrot.slane %v1528, %v1532
    %v1534 = vlaneseq
    %v1535 = vshrl.u32 %v1534, 7
    %v1536 = vsub.s32 1, %v1535
    %v1537 = vrot.slane %v1528, %v1536
    %v1538 = vlaneseq
    %v1539 = vshrl.u32 %v1538, 7
    %v1540 = vsub.s32 2, %v1539
    %v1541 = vrot.slane %v1528, %v1540
    %v1542 = vlaneseq
    %v1543 = vshrl.u32 %v1542, 7
    %v1544 = vsub.s32 3, %v1543
    %v1545 = vrot.slane %v1528, %v1544
    %v1550 = vadd.f32 %v1417, %v1533
    %v1551 = vadd.f32 %v1419, %v1537
    %v1552 = vadd.f32 %v1490, %v1541
    %v1553 = vadd.f32 %v1492, %v1545
    %v1554 = vadd.f32 %v1421, %v1533
    %v1555 = vadd.f32 %v1423, %v1537
    %v1556 = vadd.f32 %v1494, %v1541
    %v1557 = vadd.f32 %v1496, %v1545
    %v1558 = vadd.f32 %v1427, %v1533
    %v1559 = vadd.f32 %v1429, %v1537
    %v1560 = vadd.f32 %v1500, %v1541
    %v1561 = vadd.f32 %v1502, %v1545
    %v1562 = vadd.f32 %v1431, %v1533
    %v1563 = vadd.f32 %v1433, %v1537
    %v1564 = vadd.f32 %v1504, %v1541
    %v1565 = vadd.f32 %v1506, %v1545
    %v1566 = vadd.f32 %v1437, %v1533
    %v1567 = vadd.f32 %v1439, %v1537
    %v1568 = vadd.f32 %v1510, %v1541
    %v1569 = vadd.f32 %v1512, %v1545
    %v1570 = vadd.f32 %v1441, %v1533
    %v1571 = vadd.f32 %v1443, %v1537
    %v1572 = vadd.f32 %v1514, %v1541
    %v1573 = vadd.f32 %v1516, %v1545
    %v1574 = vadd.f32 %v1447, %v1533
    %v1575 = vadd.f32 %v1449, %v1537
    %v1576 = vadd.f32 %v1520, %v1541
    %v1577 = vadd.f32 %v1522, %v1545
    %v1578 = vadd.f32 %v1451, %v1533
    %v1579 = vadd.f32 %v1453, %v1537
    %v1580 = vadd.f32 %v1524, %v1541
    %v1581 = vadd.f32 %v1526, %v1545
    %1582 = vst [vmem:[#allocation2] sm:$0xff] %v1550
    %1583 = vst [vmem:[#allocation2 + $0x8] sm:$0xff] %v1551
    %1584 = vst [vmem:[#allocation2 + $0x10] sm:$0xff] %v1552
    %1585 = vst [vmem:[#allocation2 + $0x18] sm:$0xff] %v1553
    %1586 = vst [vmem:[#allocation2 + $0x20] sm:$0xff] %v1554
    %1587 = vst [vmem:[#allocation2 + $0x28] sm:$0xff] %v1555
    %1588 = vst [vmem:[#allocation2 + $0x30] sm:$0xff] %v1556
    %1589 = vst [vmem:[#allocation2 + $0x38] sm:$0xff] %v1557
    %1590 = vst [vmem:[#allocation2 + $0x40] sm:$0xff] %v1558
    %1591 = vst [vmem:[#allocation2 + $0x48] sm:$0xff] %v1559
    %1592 = vst [vmem:[#allocation2 + $0x50] sm:$0xff] %v1560
    %1593 = vst [vmem:[#allocation2 + $0x58] sm:$0xff] %v1561
    %1594 = vst [vmem:[#allocation2 + $0x60] sm:$0xff] %v1562
    %1595 = vst [vmem:[#allocation2 + $0x68] sm:$0xff] %v1563
    %1596 = vst [vmem:[#allocation2 + $0x70] sm:$0xff] %v1564
    %1597 = vst [vmem:[#allocation2 + $0x78] sm:$0xff] %v1565
    %1598 = vst [vmem:[#allocation2 + $0x80] sm:$0xff] %v1566
    %1599 = vst [vmem:[#allocation2 + $0x88] sm:$0xff] %v1567
    %1600 = vst [vmem:[#allocation2 + $0x90] sm:$0xff] %v1568
    %1601 = vst [vmem:[#allocation2 + $0x98] sm:$0xff] %v1569
    %1602 = vst [vmem:[#allocation2 + $0xa0] sm:$0xff] %v1570
    %1603 = vst [vmem:[#allocation2 + $0xa8] sm:$0xff] %v1571
    %1604 = vst [vmem:[#allocation2 + $0xb0] sm:$0xff] %v1572
    %1605 = vst [vmem:[#allocation2 + $0xb8] sm:$0xff] %v1573
    %1606 = vst [vmem:[#allocation2 + $0xc0] sm:$0xff] %v1574
    %1607 = vst [vmem:[#allocation2 + $0xc8] sm:$0xff] %v1575
    %1608 = vst [vmem:[#allocation2 + $0xd0] sm:$0xff] %v1576
    %1609 = vst [vmem:[#allocation2 + $0xd8] sm:$0xff] %v1577
    %1610 = vst [vmem:[#allocation2 + $0xe0] sm:$0xff] %v1578
    %1611 = vst [vmem:[#allocation2 + $0xe8] sm:$0xff] %v1579
    %1612 = vst [vmem:[#allocation2 + $0xf0] sm:$0xff] %v1580
    %1613 = vst [vmem:[#allocation2 + $0xf8] sm:$0xff] %v1581
    %v1614 = vld [vmem:[#allocation6] sm:$0xff]
    %v1615 = vld [vmem:[#allocation6 + $0x8] sm:$0xff]
    %v1616 = vld [vmem:[#allocation6 + $0x10] sm:$0xff]
    %v1617 = vld [vmem:[#allocation6 + $0x18] sm:$0xff]
    %v1618 = vld [vmem:[#allocation6 + $0x20] sm:$0xff]
    %v1619 = vld [vmem:[#allocation6 + $0x28] sm:$0xff]
    %v1620 = vld [vmem:[#allocation6 + $0x30] sm:$0xff]
    %v1621 = vld [vmem:[#allocation6 + $0x38] sm:$0xff]
    %v1622 = vld [vmem:[#allocation6 + $0x40] sm:$0xff]
    %v1623 = vld [vmem:[#allocation6 + $0x48] sm:$0xff]
    %v1624 = vld [vmem:[#allocation6 + $0x50] sm:$0xff]
    %v1625 = vld [vmem:[#allocation6 + $0x58] sm:$0xff]
    %v1626 = vld [vmem:[#allocation6 + $0x60] sm:$0xff]
    %v1627 = vld [vmem:[#allocation6 + $0x68] sm:$0xff]
    %v1628 = vld [vmem:[#allocation6 + $0x70] sm:$0xff]
    %v1629 = vld [vmem:[#allocation6 + $0x78] sm:$0xff]
    %v1630 = vld [vmem:[#allocation6 + $0x80] sm:$0xff]
    %v1631 = vld [vmem:[#allocation6 + $0x88] sm:$0xff]
    %v1632 = vld [vmem:[#allocation6 + $0x90] sm:$0xff]
    %v1633 = vld [vmem:[#allocation6 + $0x98] sm:$0xff]
    %v1634 = vld [vmem:[#allocation6 + $0xa0] sm:$0xff]
    %v1635 = vld [vmem:[#allocation6 + $0xa8] sm:$0xff]
    %v1636 = vld [vmem:[#allocation6 + $0xb0] sm:$0xff]
    %v1637 = vld [vmem:[#allocation6 + $0xb8] sm:$0xff]
    %v1638 = vld [vmem:[#allocation6 + $0xc0] sm:$0xff]
    %v1639 = vld [vmem:[#allocation6 + $0xc8] sm:$0xff]
    %v1640 = vld [vmem:[#allocation6 + $0xd0] sm:$0xff]
    %v1641 = vld [vmem:[#allocation6 + $0xd8] sm:$0xff]
    %v1642 = vld [vmem:[#allocation6 + $0xe0] sm:$0xff]
    %v1643 = vld [vmem:[#allocation6 + $0xe8] sm:$0xff]
    %v1644 = vld [vmem:[#allocation6 + $0xf0] sm:$0xff]
    %v1645 = vld [vmem:[#allocation6 + $0xf8] sm:$0xff]
    %v1646 = vld [vmem:[#allocation2] sm:$0xff]
    %v1647 = vld [vmem:[#allocation2 + $0x8] sm:$0xff]
    %v1648 = vld [vmem:[#allocation2 + $0x10] sm:$0xff]
    %v1649 = vld [vmem:[#allocation2 + $0x18] sm:$0xff]
    %v1682 = vunpack.c.l.b16 %v1614
    %v1683 = vunpack.c.h.b16 %v1614
    %v1684 = vunpack.c.l.b16 %v1615
    %v1685 = vunpack.c.h.b16 %v1615
    %v1686 = vunpack.c.l.b16 %v1616
    %v1687 = vunpack.c.h.b16 %v1616
    %v1688 = vunpack.c.l.b16 %v1617
    %v1689 = vunpack.c.h.b16 %v1617
    %v1690 = vunpack.c.l.b16 %v1618
    %v1691 = vunpack.c.h.b16 %v1618
    %v1692 = vunpack.c.l.b16 %v1619
    %v1693 = vunpack.c.h.b16 %v1619
    %v1694 = vunpack.c.l.b16 %v1620
    %v1695 = vunpack.c.h.b16 %v1620
    %v1696 = vunpack.c.l.b16 %v1621
    %v1697 = vunpack.c.h.b16 %v1621
    %v1698 = vunpack.c.l.b16 %v1622
    %v1699 = vunpack.c.h.b16 %v1622
    %v1700 = vunpack.c.l.b16 %v1623
    %v1701 = vunpack.c.h.b16 %v1623
    %v1702 = vunpack.c.l.b16 %v1624
    %v1703 = vunpack.c.h.b16 %v1624
    %v1704 = vunpack.c.l.b16 %v1625
    %v1705 = vunpack.c.h.b16 %v1625
    %v1706 = vunpack.c.l.b16 %v1626
    %v1707 = vunpack.c.h.b16 %v1626
    %v1708 = vunpack.c.l.b16 %v1627
    %v1709 = vunpack.c.h.b16 %v1627
    %v1710 = vunpack.c.l.b16 %v1628
    %v1711 = vunpack.c.h.b16 %v1628
    %v1712 = vunpack.c.l.b16 %v1629
    %v1713 = vunpack.c.h.b16 %v1629
    %v1714 = vunpack.c.l.b16 %v1630
    %v1715 = vunpack.c.h.b16 %v1630
    %v1716 = vunpack.c.l.b16 %v1631
    %v1717 = vunpack.c.h.b16 %v1631
    %v1718 = vunpack.c.l.b16 %v1632
    %v1719 = vunpack.c.h.b16 %v1632
    %v1720 = vunpack.c.l.b16 %v1633
    %v1721 = vunpack.c.h.b16 %v1633
    %v1722 = vunpack.c.l.b16 %v1634
    %v1723 = vunpack.c.h.b16 %v1634
    %v1724 = vunpack.c.l.b16 %v1635
    %v1725 = vunpack.c.h.b16 %v1635
    %v1726 = vunpack.c.l.b16 %v1636
    %v1727 = vunpack.c.h.b16 %v1636
    %v1728 = vunpack.c.l.b16 %v1637
    %v1729 = vunpack.c.h.b16 %v1637
    %v1730 = vunpack.c.l.b16 %v1638
    %v1731 = vunpack.c.h.b16 %v1638
    %v1732 = vunpack.c.l.b16 %v1639
    %v1733 = vunpack.c.h.b16 %v1639
    %v1734 = vunpack.c.l.b16 %v1640
    %v1735 = vunpack.c.h.b16 %v1640
    %v1736 = vunpack.c.l.b16 %v1641
    %v1737 = vunpack.c.h.b16 %v1641
    %v1738 = vunpack.c.l.b16 %v1642
    %v1739 = vunpack.c.h.b16 %v1642
    %v1740 = vunpack.c.l.b16 %v1643
    %v1741 = vunpack.c.h.b16 %v1643
    %v1742 = vunpack.c.l.b16 %v1644
    %v1743 = vunpack.c.h.b16 %v1644
    %v1744 = vunpack.c.l.b16 %v1645
    %v1745 = vunpack.c.h.b16 %v1645
    %v1746 = vpack.c.b16 %v1686, %v1682
    %v1747 = vpack.c.b16 %v1687, %v1683
    %v1748 = vpack.c.b16 %v1688, %v1684
    %v1749 = vpack.c.b16 %v1689, %v1685
    %v1750 = vpack.c.b16 %v1694, %v1690
    %v1751 = vpack.c.b16 %v1695, %v1691
    %v1752 = vpack.c.b16 %v1696, %v1692
    %v1753 = vpack.c.b16 %v1697, %v1693
    %v1754 = vpack.c.b16 %v1702, %v1698
    %v1755 = vpack.c.b16 %v1703, %v1699
    %v1756 = vpack.c.b16 %v1704, %v1700
    %v1757 = vpack.c.b16 %v1705, %v1701
    %v1758 = vpack.c.b16 %v1710, %v1706
    %v1759 = vpack.c.b16 %v1711, %v1707
    %v1760 = vpack.c.b16 %v1712, %v1708
    %v1761 = vpack.c.b16 %v1713, %v1709
    %v1762 = vpack.c.b16 %v1718, %v1714
    %v1763 = vpack.c.b16 %v1719, %v1715
    %v1764 = vpack.c.b16 %v1720, %v1716
    %v1765 = vpack.c.b16 %v1721, %v1717
    %v1766 = vpack.c.b16 %v1726, %v1722
    %v1767 = vpack.c.b16 %v1727, %v1723
    %v1768 = vpack.c.b16 %v1728, %v1724
    %v1769 = vpack.c.b16 %v1729, %v1725
    %v1770 = vpack.c.b16 %v1734, %v1730
    %v1771 = vpack.c.b16 %v1735, %v1731
    %v1772 = vpack.c.b16 %v1736, %v1732
    %v1773 = vpack.c.b16 %v1737, %v1733
    %v1774 = vpack.c.b16 %v1742, %v1738
    %v1775 = vpack.c.b16 %v1743, %v1739
    %v1776 = vpack.c.b16 %v1744, %v1740
    %v1777 = vpack.c.b16 %v1745, %v1741
    %1810 = vmatprep.subr.bf16.mxu0 %v1775
    %1811 = vmatpush1.bf16.msra.mxu0 %v1774
    %1812 = vmatprep.subr.bf16.mxu0 %v1771
    %1813 = vmatpush1.bf16.msra.mxu0 %v1770
    %1814 = vmatprep.subr.bf16.mxu0 %v1767
    %1815 = vmatpush1.bf16.msra.mxu0 %v1766
    %1816 = vmatprep.subr.bf16.mxu0 %v1763
    %1817 = vmatpush1.bf16.msra.mxu0 %v1762
    %1818 = vmatprep.subr.bf16.mxu0 %v1759
    %1819 = vmatpush1.bf16.msra.mxu0 %v1758
    %1820 = vmatprep.subr.bf16.mxu0 %v1755
    %1821 = vmatpush1.bf16.msra.mxu0 %v1754
    %1822 = vmatprep.subr.bf16.mxu0 %v1751
    %1823 = vmatpush1.bf16.msra.mxu0 %v1750
    %1824 = vmatprep.subr.bf16.mxu0 %v1747
    %1825 = vmatpush1.bf16.msra.mxu0 %v1746
    %1826 = vmatprep.subr.bf16.mxu0 0
    %1827 = vmatpush2.bf16.msra.mxu0 0
    %1828 = vmatprep.subr.bf16.mxu0 0
    %1829 = vmatpush2.bf16.msra.mxu0 0
    %1830 = vmatprep.subr.bf16.mxu0 0
    %1831 = vmatpush2.bf16.msra.mxu0 0
    %1832 = vmatprep.subr.bf16.mxu0 0
    %1833 = vmatpush2.bf16.msra.mxu0 0
    %1834 = vmatprep.subr.bf16.mxu0 0
    %1835 = vmatpush2.bf16.msra.mxu0 0
    %1836 = vmatprep.subr.bf16.mxu0 0
    %1837 = vmatpush2.bf16.msra.mxu0 0
    %1838 = vmatprep.subr.bf16.mxu0 0
    %1839 = vmatpush2.bf16.msra.mxu0 0
    %1840 = vmatprep.subr.bf16.mxu0 0
    %1841 = vmatpush2.bf16.msra.mxu0 0
    %1842 = vmatprep.mubr.bf16.mxu0 0
    %1843 = vmatmul.mubr.bf16.gmra.mxu0 0
    %v1844 = vpop.f32.mrf.mxu0
    %v1845 = vadd.f32 0.0, %v1844
    %v1846 = vpop.f32.mrf.mxu0
    %v1847 = vadd.f32 0.0, %v1846
    %v1848 = vpop.f32.mrf.mxu0
    %v1849 = vpop.f32.mrf.mxu0
    %1850 = vdwg.mxu0
    %1851 = vmatprep.subr.bf16.mxu0 %v1777
    %1852 = vmatpush1.bf16.msra.mxu0 %v1776
    %1853 = vmatprep.subr.bf16.mxu0 %v1773
    %1854 = vmatpush1.bf16.msra.mxu0 %v1772
    %1855 = vmatprep.subr.bf16.mxu0 %v1769
    %1856 = vmatpush1.bf16.msra.mxu0 %v1768
    %1857 = vmatprep.subr.bf16.mxu0 %v1765
    %1858 = vmatpush1.bf16.msra.mxu0 %v1764
    %1859 = vmatprep.subr.bf16.mxu0 %v1761
    %1860 = vmatpush1.bf16.msra.mxu0 %v1760
    %1861 = vmatprep.subr.bf16.mxu0 %v1757
    %1862 = vmatpush1.bf16.msra.mxu0 %v1756
    %1863 = vmatprep.subr.bf16.mxu0 %v1753
    %1864 = vmatpush1.bf16.msra.mxu0 %v1752
    %1865 = vmatprep.subr.bf16.mxu0 %v1749
    %1866 = vmatpush1.bf16.msra.mxu0 %v1748
    %1867 = vmatprep.subr.bf16.mxu0 0
    %1868 = vmatpush2.bf16.msra.mxu0 0
    %1869 = vmatprep.subr.bf16.mxu0 0
    %1870 = vmatpush2.bf16.msra.mxu0 0
    %1871 = vmatprep.subr.bf16.mxu0 0
    %1872 = vmatpush2.bf16.msra.mxu0 0
    %1873 = vmatprep.subr.bf16.mxu0 0
    %1874 = vmatpush2.bf16.msra.mxu0 0
    %1875 = vmatprep.subr.bf16.mxu0 0
    %1876 = vmatpush2.bf16.msra.mxu0 0
    %1877 = vmatprep.subr.bf16.mxu0 0
    %1878 = vmatpush2.bf16.msra.mxu0 0
    %1879 = vmatprep.subr.bf16.mxu0 0
    %1880 = vmatpush2.bf16.msra.mxu0 0
    %1881 = vmatprep.subr.bf16.mxu0 0
    %1882 = vmatpush2.bf16.msra.mxu0 0
    %1883 = vmatprep.mubr.bf16.mxu0 0
    %1884 = vmatmul.mubr.bf16.gmra.mxu0 0
    %v1885 = vpop.f32.mrf.mxu0
    %v1886 = vadd.f32 0.0, %v1885
    %v1887 = vpop.f32.mrf.mxu0
    %v1888 = vadd.f32 0.0, %v1887
    %v1889 = vpop.f32.mrf.mxu0
    %v1890 = vpop.f32.mrf.mxu0
    %1891 = vdwg.mxu0
    %v1892 = vadd.f32 %v1646, %v1845
    %v1893 = vadd.f32 %v1647, %v1847
    %v1894 = vadd.f32 %v1648, %v1886
    %v1895 = vadd.f32 %v1649, %v1888
    %v1896 = vtanh.pop %v1892
    %v1897 = vtanh.pop %v1893
    %v1898 = vtanh.pop %v1894
    %v1899 = vtanh.pop %v1895
    %v1900 = vmul.f32 %v1896, 0.5
    %v1901 = vadd.f32 %v1900, 0.5
    %v1902 = vmul.f32 %v1897, 0.5
    %v1903 = vadd.f32 %v1902, 0.5
    %v1904 = vmul.f32 %v1899, 0.5
    %v1905 = vadd.f32 %v1904, 0.5
    %v1906 = vmul.f32 %v1903, 0.0
    %v1907 = vmul.f32 %v1901, %v1898
    %v1908 = vadd.f32 %v1906, %v1907
    %v1909 = vtanh.pop %v1908
    %v1910 = vmul.f32 %v1905, %v1909
    %s1911 = scalar_lea.vmem [#allocation2], 32
    %v1912 = vld [vmem:[%s1911] sm:$0xff]
    %v1913 = vld [vmem:[%s1911 + $0x8] sm:$0xff]
    %v1914 = vld [vmem:[%s1911 + $0x10] sm:$0xff]
    %v1915 = vld [vmem:[%s1911 + $0x18] sm:$0xff]
    %v1916 = vpack.c.bf16 %v1910, %v1910
    %1917 = vmatprep.subr.bf16.mxu0 %v1775
    %1918 = vmatpush1.bf16.msra.mxu0 %v1774
    %1919 = vmatprep.subr.bf16.mxu0 %v1771
    %1920 = vmatpush1.bf16.msra.mxu0 %v1770
    %1921 = vmatprep.subr.bf16.mxu0 %v1767
    %1922 = vmatpush1.bf16.msra.mxu0 %v1766
    %1923 = vmatprep.subr.bf16.mxu0 %v1763
    %1924 = vmatpush1.bf16.msra.mxu0 %v1762
    %1925 = vmatprep.subr.bf16.mxu0 %v1759
    %1926 = vmatpush1.bf16.msra.mxu0 %v1758
    %1927 = vmatprep.subr.bf16.mxu0 %v1755
    %1928 = vmatpush1.bf16.msra.mxu0 %v1754
    %1929 = vmatprep.subr.bf16.mxu0 %v1751
    %1930 = vmatpush1.bf16.msra.mxu0 %v1750
    %1931 = vmatprep.subr.bf16.mxu0 %v1747
    %1932 = vmatpush1.bf16.msra.mxu0 %v1746
    %1933 = vmatprep.subr.bf16.mxu0 0
    %1934 = vmatpush2.bf16.msra.mxu0 0
    %1935 = vmatprep.subr.bf16.mxu0 0
    %1936 = vmatpush2.bf16.msra.mxu0 0
    %1937 = vmatprep.subr.bf16.mxu0 0
    %1938 = vmatpush2.bf16.msra.mxu0 0
    %1939 = vmatprep.subr.bf16.mxu0 0
    %1940 = vmatpush2.bf16.msra.mxu0 0
    %1941 = vmatprep.subr.bf16.mxu0 0
    %1942 = vmatpush2.bf16.msra.mxu0 0
    %1943 = vmatprep.subr.bf16.mxu0 0
    %1944 = vmatpush2.bf16.msra.mxu0 0
    %1945 = vmatprep.subr.bf16.mxu0 0
    %1946 = vmatpush2.bf16.msra.mxu0 0
    %1947 = vmatprep.subr.bf16.mxu0 0
    %1948 = vmatpush2.bf16.msra.mxu0 0
    %1949 = vmatprep.mubr.bf16.mxu0 0
    %1950 = vmatmul.mubr.bf16.gmra.mxu0 %v1916
    %v1951 = vpop.f32.mrf.mxu0
    %v1952 = vadd.f32 0.0, %v1951
    %v1953 = vpop.f32.mrf.mxu0
    %v1954 = vadd.f32 0.0, %v1953
    %v1955 = vpop.f32.mrf.mxu0
    %v1956 = vpop.f32.mrf.mxu0
    %1957 = vdwg.mxu0
    %1958 = vmatprep.subr.bf16.mxu0 %v1777
    %1959 = vmatpush1.bf16.msra.mxu0 %v1776
    %1960 = vmatprep.subr.bf16.mxu0 %v1773
    %1961 = vmatpush1.bf16.msra.mxu0 %v1772
    %1962 = vmatprep.subr.bf16.mxu0 %v1769
    %1963 = vmatpush1.bf16.msra.mxu0 %v1768
    %1964 = vmatprep.subr.bf16.mxu0 %v1765
    %1965 = vmatpush1.bf16.msra.mxu0 %v1764
    %1966 = vmatprep.subr.bf16.mxu0 %v1761
    %1967 = vmatpush1.bf16.msra.mxu0 %v1760
    %1968 = vmatprep.subr.bf16.mxu0 %v1757
    %1969 = vmatpush1.bf16.msra.mxu0 %v1756
    %1970 = vmatprep.subr.bf16.mxu0 %v1753
    %1971 = vmatpush1.bf16.msra.mxu0 %v1752
    %1972 = vmatprep.subr.bf16.mxu0 %v1749
    %1973 = vmatpush1.bf16.msra.mxu0 %v1748
    %1974 = vmatprep.subr.bf16.mxu0 0
    %1975 = vmatpush2.bf16.msra.mxu0 0
    %1976 = vmatprep.subr.bf16.mxu0 0
    %1977 = vmatpush2.bf16.msra.mxu0 0
    %1978 = vmatprep.subr.bf16.mxu0 0
    %1979 = vmatpush2.bf16.msra.mxu0 0
    %1980 = vmatprep.subr.bf16.mxu0 0
    %1981 = vmatpush2.bf16.msra.mxu0 0
    %1982 = vmatprep.subr.bf16.mxu0 0
    %1983 = vmatpush2.bf16.msra.mxu0 0
    %1984 = vmatprep.subr.bf16.mxu0 0
    %1985 = vmatpush2.bf16.msra.mxu0 0
    %1986 = vmatprep.subr.bf16.mxu0 0
    %1987 = vmatpush2.bf16.msra.mxu0 0
    %1988 = vmatprep.subr.bf16.mxu0 0
    %1989 = vmatpush2.bf16.msra.mxu0 0
    %1990 = vmatprep.mubr.bf16.mxu0 0
    %1991 = vmatmul.mubr.bf16.gmra.mxu0 %v1916
    %v1992 = vpop.f32.mrf.mxu0
    %v1993 = vadd.f32 0.0, %v1992
    %v1994 = vpop.f32.mrf.mxu0
    %v1995 = vadd.f32 0.0, %v1994
    %v1996 = vpop.f32.mrf.mxu0
    %v1997 = vpop.f32.mrf.mxu0
    %1998 = vdwg.mxu0
    %v1999 = vadd.f32 %v1912, %v1952
    %v2000 = vadd.f32 %v1913, %v1954
    %v2001 = vadd.f32 %v1914, %v1993
    %v2002 = vadd.f32 %v1915, %v1995
    %v2003 = vtanh.pop %v1999
    %v2004 = vtanh.pop %v2000
    %v2005 = vtanh.pop %v2001
    %v2006 = vtanh.pop %v2002
    %v2007 = vmul.f32 %v2003, 0.5
    %v2008 = vadd.f32 %v2007, 0.5
    %v2009 = vmul.f32 %v2004, 0.5
    %v2010 = vadd.f32 %v2009, 0.5
    %v2011 = vmul.f32 %v2006, 0.5
    %v2012 = vadd.f32 %v2011, 0.5
    %v2013 = vmul.f32 %v2010, %v1908
    %v2014 = vmul.f32 %v2008, %v2005
    %v2015 = vadd.f32 %v2013, %v2014
    %v2016 = vtanh.pop %v2015
    %v2017 = vmul.f32 %v2012, %v2016
    %s2018 = scalar_lea.vmem [#allocation2], 64
    %v2019 = vld [vmem:[%s2018] sm:$0xff]
    %v2020 = vld [vmem:[%s2018 + $0x8] sm:$0xff]
    %v2021 = vld [vmem:[%s2018 + $0x10] sm:$0xff]
    %v2022 = vld [vmem:[%s2018 + $0x18] sm:$0xff]
    %v2023 = vpack.c.bf16 %v2017, %v2017
    %2024 = vmatprep.subr.bf16.mxu0 %v1775
    %2025 = vmatpush1.bf16.msra.mxu0 %v1774
    %2026 = vmatprep.subr.bf16.mxu0 %v1771
    %2027 = vmatpush1.bf16.msra.mxu0 %v1770
    %2028 = vmatprep.subr.bf16.mxu0 %v1767
    %2029 = vmatpush1.bf16.msra.mxu0 %v1766
    %2030 = vmatprep.subr.bf16.mxu0 %v1763
    %2031 = vmatpush1.bf16.msra.mxu0 %v1762
    %2032 = vmatprep.subr.bf16.mxu0 %v1759
    %2033 = vmatpush1.bf16.msra.mxu0 %v1758
    %2034 = vmatprep.subr.bf16.mxu0 %v1755
    %2035 = vmatpush1.bf16.msra.mxu0 %v1754
    %2036 = vmatprep.subr.bf16.mxu0 %v1751
    %2037 = vmatpush1.bf16.msra.mxu0 %v1750
    %2038 = vmatprep.subr.bf16.mxu0 %v1747
    %2039 = vmatpush1.bf16.msra.mxu0 %v1746
    %2040 = vmatprep.subr.bf16.mxu0 0
    %2041 = vmatpush2.bf16.msra.mxu0 0
    %2042 = vmatprep.subr.bf16.mxu0 0
    %2043 = vmatpush2.bf16.msra.mxu0 0
    %2044 = vmatprep.subr.bf16.mxu0 0
    %2045 = vmatpush2.bf16.msra.mxu0 0
    %2046 = vmatprep.subr.bf16.mxu0 0
    %2047 = vmatpush2.bf16.msra.mxu0 0
    %2048 = vmatprep.subr.bf16.mxu0 0
    %2049 = vmatpush2.bf16.msra.mxu0 0
    %2050 = vmatprep.subr.bf16.mxu0 0
    %2051 = vmatpush2.bf16.msra.mxu0 0
    %2052 = vmatprep.subr.bf16.mxu0 0
    %2053 = vmatpush2.bf16.msra.mxu0 0
    %2054 = vmatprep.subr.bf16.mxu0 0
    %2055 = vmatpush2.bf16.msra.mxu0 0
    %2056 = vmatprep.mubr.bf16.mxu0 0
    %2057 = vmatmul.mubr.bf16.gmra.mxu0 %v2023
    %v2058 = vpop.f32.mrf.mxu0
    %v2059 = vadd.f32 0.0, %v2058
    %v2060 = vpop.f32.mrf.mxu0
    %v2061 = vadd.f32 0.0, %v2060
    %v2062 = vpop.f32.mrf.mxu0
    %v2063 = vpop.f32.mrf.mxu0
    %2064 = vdwg.mxu0
    %2065 = vmatprep.subr.bf16.mxu0 %v1777
    %2066 = vmatpush1.bf16.msra.mxu0 %v1776
    %2067 = vmatprep.subr.bf16.mxu0 %v1773
    %2068 = vmatpush1.bf16.msra.mxu0 %v1772
    %2069 = vmatprep.subr.bf16.mxu0 %v1769
    %2070 = vmatpush1.bf16.msra.mxu0 %v1768
    %2071 = vmatprep.subr.bf16.mxu0 %v1765
    %2072 = vmatpush1.bf16.msra.mxu0 %v1764
    %2073 = vmatprep.subr.bf16.mxu0 %v1761
    %2074 = vmatpush1.bf16.msra.mxu0 %v1760
    %2075 = vmatprep.subr.bf16.mxu0 %v1757
    %2076 = vmatpush1.bf16.msra.mxu0 %v1756
    %2077 = vmatprep.subr.bf16.mxu0 %v1753
    %2078 = vmatpush1.bf16.msra.mxu0 %v1752
    %2079 = vmatprep.subr.bf16.mxu0 %v1749
    %2080 = vmatpush1.bf16.msra.mxu0 %v1748
    %2081 = vmatprep.subr.bf16.mxu0 0
    %2082 = vmatpush2.bf16.msra.mxu0 0
    %2083 = vmatprep.subr.bf16.mxu0 0
    %2084 = vmatpush2.bf16.msra.mxu0 0
    %2085 = vmatprep.subr.bf16.mxu0 0
    %2086 = vmatpush2.bf16.msra.mxu0 0
    %2087 = vmatprep.subr.bf16.mxu0 0
    %2088 = vmatpush2.bf16.msra.mxu0 0
    %2089 = vmatprep.subr.bf16.mxu0 0
    %2090 = vmatpush2.bf16.msra.mxu0 0
    %2091 = vmatprep.subr.bf16.mxu0 0
    %2092 = vmatpush2.bf16.msra.mxu0 0
    %2093 = vmatprep.subr.bf16.mxu0 0
    %2094 = vmatpush2.bf16.msra.mxu0 0
    %2095 = vmatprep.subr.bf16.mxu0 0
    %2096 = vmatpush2.bf16.msra.mxu0 0
    %2097 = vmatprep.mubr.bf16.mxu0 0
    %2098 = vmatmul.mubr.bf16.gmra.mxu0 %v2023
    %v2099 = vpop.f32.mrf.mxu0
    %v2100 = vadd.f32 0.0, %v2099
    %v2101 = vpop.f32.mrf.mxu0
    %v2102 = vadd.f32 0.0, %v2101
    %v2103 = vpop.f32.mrf.mxu0
    %v2104 = vpop.f32.mrf.mxu0
    %2105 = vdwg.mxu0
    %v2106 = vadd.f32 %v2019, %v2059
    %v2107 = vadd.f32 %v2020, %v2061
    %v2108 = vadd.f32 %v2021, %v2100
    %v2109 = vadd.f32 %v2022, %v2102
    %v2110 = vtanh.pop %v2106
    %v2111 = vtanh.pop %v2107
    %v2112 = vtanh.pop %v2108
    %v2113 = vtanh.pop %v2109
    %v2114 = vmul.f32 %v2110, 0.5
    %v2115 = vadd.f32 %v2114, 0.5
    %v2116 = vmul.f32 %v2111, 0.5
    %v2117 = vadd.f32 %v2116, 0.5
    %v2118 = vmul.f32 %v2113, 0.5
    %v2119 = vadd.f32 %v2118, 0.5
    %v2120 = vmul.f32 %v2117, %v2015
    %v2121 = vmul.f32 %v2115, %v2112
    %v2122 = vadd.f32 %v2120, %v2121
    %v2123 = vtanh.pop %v2122
    %v2124 = vmul.f32 %v2119, %v2123
    %s2125 = scalar_lea.vmem [#allocation2], 96
    %v2126 = vld [vmem:[%s2125] sm:$0xff]
    %v2127 = vld [vmem:[%s2125 + $0x8] sm:$0xff]
    %v2128 = vld [vmem:[%s2125 + $0x10] sm:$0xff]
    %v2129 = vld [vmem:[%s2125 + $0x18] sm:$0xff]
    %v2130 = vpack.c.bf16 %v2124, %v2124
    %2131 = vmatprep.subr.bf16.mxu0 %v1775
    %2132 = vmatpush1.bf16.msra.mxu0 %v1774
    %2133 = vmatprep.subr.bf16.mxu0 %v1771
    %2134 = vmatpush1.bf16.msra.mxu0 %v1770
    %2135 = vmatprep.subr.bf16.mxu0 %v1767
    %2136 = vmatpush1.bf16.msra.mxu0 %v1766
    %2137 = vmatprep.subr.bf16.mxu0 %v1763
    %2138 = vmatpush1.bf16.msra.mxu0 %v1762
    %2139 = vmatprep.subr.bf16.mxu0 %v1759
    %2140 = vmatpush1.bf16.msra.mxu0 %v1758
    %2141 = vmatprep.subr.bf16.mxu0 %v1755
    %2142 = vmatpush1.bf16.msra.mxu0 %v1754
    %2143 = vmatprep.subr.bf16.mxu0 %v1751
    %2144 = vmatpush1.bf16.msra.mxu0 %v1750
    %2145 = vmatprep.subr.bf16.mxu0 %v1747
    %2146 = vmatpush1.bf16.msra.mxu0 %v1746
    %2147 = vmatprep.subr.bf16.mxu0 0
    %2148 = vmatpush2.bf16.msra.mxu0 0
    %2149 = vmatprep.subr.bf16.mxu0 0
    %2150 = vmatpush2.bf16.msra.mxu0 0
    %2151 = vmatprep.subr.bf16.mxu0 0
    %2152 = vmatpush2.bf16.msra.mxu0 0
    %2153 = vmatprep.subr.bf16.mxu0 0
    %2154 = vmatpush2.bf16.msra.mxu0 0
    %2155 = vmatprep.subr.bf16.mxu0 0
    %2156 = vmatpush2.bf16.msra.mxu0 0
    %2157 = vmatprep.subr.bf16.mxu0 0
    %2158 = vmatpush2.bf16.msra.mxu0 0
    %2159 = vmatprep.subr.bf16.mxu0 0
    %2160 = vmatpush2.bf16.msra.mxu0 0
    %2161 = vmatprep.subr.bf16.mxu0 0
    %2162 = vmatpush2.bf16.msra.mxu0 0
    %2163 = vmatprep.mubr.bf16.mxu0 0
    %2164 = vmatmul.mubr.bf16.gmra.mxu0 %v2130
    %v2165 = vpop.f32.mrf.mxu0
    %v2166 = vadd.f32 0.0, %v2165
    %v2167 = vpop.f32.mrf.mxu0
    %v2168 = vadd.f32 0.0, %v2167
    %v2169 = vpop.f32.mrf.mxu0
    %v2170 = vpop.f32.mrf.mxu0
    %2171 = vdwg.mxu0
    %2172 = vmatprep.subr.bf16.mxu0 %v1777
    %2173 = vmatpush1.bf16.msra.mxu0 %v1776
    %2174 = vmatprep.subr.bf16.mxu0 %v1773
    %2175 = vmatpush1.bf16.msra.mxu0 %v1772
    %2176 = vmatprep.subr.bf16.mxu0 %v1769
    %2177 = vmatpush1.bf16.msra.mxu0 %v1768
    %2178 = vmatprep.subr.bf16.mxu0 %v1765
    %2179 = vmatpush1.bf16.msra.mxu0 %v1764
    %2180 = vmatprep.subr.bf16.mxu0 %v1761
    %2181 = vmatpush1.bf16.msra.mxu0 %v1760
    %2182 = vmatprep.subr.bf16.mxu0 %v1757
    %2183 = vmatpush1.bf16.msra.mxu0 %v1756
    %2184 = vmatprep.subr.bf16.mxu0 %v1753
    %2185 = vmatpush1.bf16.msra.mxu0 %v1752
    %2186 = vmatprep.subr.bf16.mxu0 %v1749
    %2187 = vmatpush1.bf16.msra.mxu0 %v1748
    %2188 = vmatprep.subr.bf16.mxu0 0
    %2189 = vmatpush2.bf16.msra.mxu0 0
    %2190 = vmatprep.subr.bf16.mxu0 0
    %2191 = vmatpush2.bf16.msra.mxu0 0
    %2192 = vmatprep.subr.bf16.mxu0 0
    %2193 = vmatpush2.bf16.msra.mxu0 0
    %2194 = vmatprep.subr.bf16.mxu0 0
    %2195 = vmatpush2.bf16.msra.mxu0 0
    %2196 = vmatprep.subr.bf16.mxu0 0
    %2197 = vmatpush2.bf16.msra.mxu0 0
    %2198 = vmatprep.subr.bf16.mxu0 0
    %2199 = vmatpush2.bf16.msra.mxu0 0
    %2200 = vmatprep.subr.bf16.mxu0 0
    %2201 = vmatpush2.bf16.msra.mxu0 0
    %2202 = vmatprep.subr.bf16.mxu0 0
    %2203 = vmatpush2.bf16.msra.mxu0 0
    %2204 = vmatprep.mubr.bf16.mxu0 0
    %2205 = vmatmul.mubr.bf16.gmra.mxu0 %v2130
    %v2206 = vpop.f32.mrf.mxu0
    %v2207 = vadd.f32 0.0, %v2206
    %v2208 = vpop.f32.mrf.mxu0
    %v2209 = vadd.f32 0.0, %v2208
    %v2210 = vpop.f32.mrf.mxu0
    %v2211 = vpop.f32.mrf.mxu0
    %2212 = vdwg.mxu0
    %v2213 = vadd.f32 %v2126, %v2166
    %v2214 = vadd.f32 %v2127, %v2168
    %v2215 = vadd.f32 %v2128, %v2207
    %v2216 = vadd.f32 %v2129, %v2209
    %v2217 = vtanh.pop %v2213
    %v2218 = vtanh.pop %v2214
    %v2219 = vtanh.pop %v2215
    %v2220 = vtanh.pop %v2216
    %v2221 = vmul.f32 %v2217, 0.5
    %v2222 = vadd.f32 %v2221, 0.5
    %v2223 = vmul.f32 %v2218, 0.5
    %v2224 = vadd.f32 %v2223, 0.5
    %v2225 = vmul.f32 %v2220, 0.5
    %v2226 = vadd.f32 %v2225, 0.5
    %v2227 = vmul.f32 %v2224, %v2122
    %v2228 = vmul.f32 %v2222, %v2219
    %v2229 = vadd.f32 %v2227, %v2228
    %v2230 = vtanh.pop %v2229
    %v2231 = vmul.f32 %v2226, %v2230
    %s2232 = scalar_lea.vmem [#allocation2], 128
    %v2233 = vld [vmem:[%s2232] sm:$0xff]
    %v2234 = vld [vmem:[%s2232 + $0x8] sm:$0xff]
    %v2235 = vld [vmem:[%s2232 + $0x10] sm:$0xff]
    %v2236 = vld [vmem:[%s2232 + $0x18] sm:$0xff]
    %v2237 = vpack.c.bf16 %v2231, %v2231
    %2238 = vmatprep.subr.bf16.mxu0 %v1775
    %2239 = vmatpush1.bf16.msra.mxu0 %v1774
    %2240 = vmatprep.subr.bf16.mxu0 %v1771
    %2241 = vmatpush1.bf16.msra.mxu0 %v1770
    %2242 = vmatprep.subr.bf16.mxu0 %v1767
    %2243 = vmatpush1.bf16.msra.mxu0 %v1766
    %2244 = vmatprep.subr.bf16.mxu0 %v1763
    %2245 = vmatpush1.bf16.msra.mxu0 %v1762
    %2246 = vmatprep.subr.bf16.mxu0 %v1759
    %2247 = vmatpush1.bf16.msra.mxu0 %v1758
    %2248 = vmatprep.subr.bf16.mxu0 %v1755
    %2249 = vmatpush1.bf16.msra.mxu0 %v1754
    %2250 = vmatprep.subr.bf16.mxu0 %v1751
    %2251 = vmatpush1.bf16.msra.mxu0 %v1750
    %2252 = vmatprep.subr.bf16.mxu0 %v1747
    %2253 = vmatpush1.bf16.msra.mxu0 %v1746
    %2254 = vmatprep.subr.bf16.mxu0 0
    %2255 = vmatpush2.bf16.msra.mxu0 0
    %2256 = vmatprep.subr.bf16.mxu0 0
    %2257 = vmatpush2.bf16.msra.mxu0 0
    %2258 = vmatprep.subr.bf16.mxu0 0
    %2259 = vmatpush2.bf16.msra.mxu0 0
    %2260 = vmatprep.subr.bf16.mxu0 0
    %2261 = vmatpush2.bf16.msra.mxu0 0
    %2262 = vmatprep.subr.bf16.mxu0 0
    %2263 = vmatpush2.bf16.msra.mxu0 0
    %2264 = vmatprep.subr.bf16.mxu0 0
    %2265 = vmatpush2.bf16.msra.mxu0 0
    %2266 = vmatprep.subr.bf16.mxu0 0
    %2267 = vmatpush2.bf16.msra.mxu0 0
    %2268 = vmatprep.subr.bf16.mxu0 0
    %2269 = vmatpush2.bf16.msra.mxu0 0
    %2270 = vmatprep.mubr.bf16.mxu0 0
    %2271 = vmatmul.mubr.bf16.gmra.mxu0 %v2237
    %v2272 = vpop.f32.mrf.mxu0
    %v2273 = vadd.f32 0.0, %v2272
    %v2274 = vpop.f32.mrf.mxu0
    %v2275 = vadd.f32 0.0, %v2274
    %v2276 = vpop.f32.mrf.mxu0
    %v2277 = vpop.f32.mrf.mxu0
    %2278 = vdwg.mxu0
    %2279 = vmatprep.subr.bf16.mxu0 %v1777
    %2280 = vmatpush1.bf16.msra.mxu0 %v1776
    %2281 = vmatprep.subr.bf16.mxu0 %v1773
    %2282 = vmatpush1.bf16.msra.mxu0 %v1772
    %2283 = vmatprep.subr.bf16.mxu0 %v1769
    %2284 = vmatpush1.bf16.msra.mxu0 %v1768
    %2285 = vmatprep.subr.bf16.mxu0 %v1765
    %2286 = vmatpush1.bf16.msra.mxu0 %v1764
    %2287 = vmatprep.subr.bf16.mxu0 %v1761
    %2288 = vmatpush1.bf16.msra.mxu0 %v1760
    %2289 = vmatprep.subr.bf16.mxu0 %v1757
    %2290 = vmatpush1.bf16.msra.mxu0 %v1756
    %2291 = vmatprep.subr.bf16.mxu0 %v1753
    %2292 = vmatpush1.bf16.msra.mxu0 %v1752
    %2293 = vmatprep.subr.bf16.mxu0 %v1749
    %2294 = vmatpush1.bf16.msra.mxu0 %v1748
    %2295 = vmatprep.subr.bf16.mxu0 0
    %2296 = vmatpush2.bf16.msra.mxu0 0
    %2297 = vmatprep.subr.bf16.mxu0 0
    %2298 = vmatpush2.bf16.msra.mxu0 0
    %2299 = vmatprep.subr.bf16.mxu0 0
    %2300 = vmatpush2.bf16.msra.mxu0 0
    %2301 = vmatprep.subr.bf16.mxu0 0
    %2302 = vmatpush2.bf16.msra.mxu0 0
    %2303 = vmatprep.subr.bf16.mxu0 0
    %2304 = vmatpush2.bf16.msra.mxu0 0
    %2305 = vmatprep.subr.bf16.mxu0 0
    %2306 = vmatpush2.bf16.msra.mxu0 0
    %2307 = vmatprep.subr.bf16.mxu0 0
    %2308 = vmatpush2.bf16.msra.mxu0 0
    %2309 = vmatprep.subr.bf16.mxu0 0
    %2310 = vmatpush2.bf16.msra.mxu0 0
    %2311 = vmatprep.mubr.bf16.mxu0 0
    %2312 = vmatmul.mubr.bf16.gmra.mxu0 %v2237
    %v2313 = vpop.f32.mrf.mxu0
    %v2314 = vadd.f32 0.0, %v2313
    %v2315 = vpop.f32.mrf.mxu0
    %v2316 = vadd.f32 0.0, %v2315
    %v2317 = vpop.f32.mrf.mxu0
    %v2318 = vpop.f32.mrf.mxu0
    %2319 = vdwg.mxu0
    %v2320 = vadd.f32 %v2233, %v2273
    %v2321 = vadd.f32 %v2234, %v2275
    %v2322 = vadd.f32 %v2235, %v2314
    %v2323 = vadd.f32 %v2236, %v2316
    %v2324 = vtanh.pop %v2320
    %v2325 = vtanh.pop %v2321
    %v2326 = vtanh.pop %v2322
    %v2327 = vtanh.pop %v2323
    %v2328 = vmul.f32 %v2324, 0.5
    %v2329 = vadd.f32 %v2328, 0.5
    %v2330 = vmul.f32 %v2325, 0.5
    %v2331 = vadd.f32 %v2330, 0.5
    %v2332 = vmul.f32 %v2327, 0.5
    %v2333 = vadd.f32 %v2332, 0.5
    %v2334 = vmul.f32 %v2331, %v2229
    %v2335 = vmul.f32 %v2329, %v2326
    %v2336 = vadd.f32 %v2334, %v2335
    %v2337 = vtanh.pop %v2336
    %v2338 = vmul.f32 %v2333, %v2337
    %s2339 = scalar_lea.vmem [#allocation2], 160
    %v2340 = vld [vmem:[%s2339] sm:$0xff]
    %v2341 = vld [vmem:[%s2339 + $0x8] sm:$0xff]
    %v2342 = vld [vmem:[%s2339 + $0x10] sm:$0xff]
    %v2343 = vld [vmem:[%s2339 + $0x18] sm:$0xff]
    %v2344 = vpack.c.bf16 %v2338, %v2338
    %2345 = vmatprep.subr.bf16.mxu0 %v1775
    %2346 = vmatpush1.bf16.msra.mxu0 %v1774
    %2347 = vmatprep.subr.bf16.mxu0 %v1771
    %2348 = vmatpush1.bf16.msra.mxu0 %v1770
    %2349 = vmatprep.subr.bf16.mxu0 %v1767
    %2350 = vmatpush1.bf16.msra.mxu0 %v1766
    %2351 = vmatprep.subr.bf16.mxu0 %v1763
    %2352 = vmatpush1.bf16.msra.mxu0 %v1762
    %2353 = vmatprep.subr.bf16.mxu0 %v1759
    %2354 = vmatpush1.bf16.msra.mxu0 %v1758
    %2355 = vmatprep.subr.bf16.mxu0 %v1755
    %2356 = vmatpush1.bf16.msra.mxu0 %v1754
    %2357 = vmatprep.subr.bf16.mxu0 %v1751
    %2358 = vmatpush1.bf16.msra.mxu0 %v1750
    %2359 = vmatprep.subr.bf16.mxu0 %v1747
    %2360 = vmatpush1.bf16.msra.mxu0 %v1746
    %2361 = vmatprep.subr.bf16.mxu0 0
    %2362 = vmatpush2.bf16.msra.mxu0 0
    %2363 = vmatprep.subr.bf16.mxu0 0
    %2364 = vmatpush2.bf16.msra.mxu0 0
    %2365 = vmatprep.subr.bf16.mxu0 0
    %2366 = vmatpush2.bf16.msra.mxu0 0
    %2367 = vmatprep.subr.bf16.mxu0 0
    %2368 = vmatpush2.bf16.msra.mxu0 0
    %2369 = vmatprep.subr.bf16.mxu0 0
    %2370 = vmatpush2.bf16.msra.mxu0 0
    %2371 = vmatprep.subr.bf16.mxu0 0
    %2372 = vmatpush2.bf16.msra.mxu0 0
    %2373 = vmatprep.subr.bf16.mxu0 0
    %2374 = vmatpush2.bf16.msra.mxu0 0
    %2375 = vmatprep.subr.bf16.mxu0 0
    %2376 = vmatpush2.bf16.msra.mxu0 0
    %2377 = vmatprep.mubr.bf16.mxu0 0
    %2378 = vmatmul.mubr.bf16.gmra.mxu0 %v2344
    %v2379 = vpop.f32.mrf.mxu0
    %v2380 = vadd.f32 0.0, %v2379
    %v2381 = vpop.f32.mrf.mxu0
    %v2382 = vadd.f32 0.0, %v2381
    %v2383 = vpop.f32.mrf.mxu0
    %v2384 = vpop.f32.mrf.mxu0
    %2385 = vdwg.mxu0
    %2386 = vmatprep.subr.bf16.mxu0 %v1777
    %2387 = vmatpush1.bf16.msra.mxu0 %v1776
    %2388 = vmatprep.subr.bf16.mxu0 %v1773
    %2389 = vmatpush1.bf16.msra.mxu0 %v1772
    %2390 = vmatprep.subr.bf16.mxu0 %v1769
    %2391 = vmatpush1.bf16.msra.mxu0 %v1768
    %2392 = vmatprep.subr.bf16.mxu0 %v1765
    %2393 = vmatpush1.bf16.msra.mxu0 %v1764
    %2394 = vmatprep.subr.bf16.mxu0 %v1761
    %2395 = vmatpush1.bf16.msra.mxu0 %v1760
    %2396 = vmatprep.subr.bf16.mxu0 %v1757
    %2397 = vmatpush1.bf16.msra.mxu0 %v1756
    %2398 = vmatprep.subr.bf16.mxu0 %v1753
    %2399 = vmatpush1.bf16.msra.mxu0 %v1752
    %2400 = vmatprep.subr.bf16.mxu0 %v1749
    %2401 = vmatpush1.bf16.msra.mxu0 %v1748
    %2402 = vmatprep.subr.bf16.mxu0 0
    %2403 = vmatpush2.bf16.msra.mxu0 0
    %2404 = vmatprep.subr.bf16.mxu0 0
    %2405 = vmatpush2.bf16.msra.mxu0 0
    %2406 = vmatprep.subr.bf16.mxu0 0
    %2407 = vmatpush2.bf16.msra.mxu0 0
    %2408 = vmatprep.subr.bf16.mxu0 0
    %2409 = vmatpush2.bf16.msra.mxu0 0
    %2410 = vmatprep.subr.bf16.mxu0 0
    %2411 = vmatpush2.bf16.msra.mxu0 0
    %2412 = vmatprep.subr.bf16.mxu0 0
    %2413 = vmatpush2.bf16.msra.mxu0 0
    %2414 = vmatprep.subr.bf16.mxu0 0
    %2415 = vmatpush2.bf16.msra.mxu0 0
    %2416 = vmatprep.subr.bf16.mxu0 0
    %2417 = vmatpush2.bf16.msra.mxu0 0
    %2418 = vmatprep.mubr.bf16.mxu0 0
    %2419 = vmatmul.mubr.bf16.gmra.mxu0 %v2344
    %v2420 = vpop.f32.mrf.mxu0
    %v2421 = vadd.f32 0.0, %v2420
    %v2422 = vpop.f32.mrf.mxu0
    %v2423 = vadd.f32 0.0, %v2422
    %v2424 = vpop.f32.mrf.mxu0
    %v2425 = vpop.f32.mrf.mxu0
    %2426 = vdwg.mxu0
    %v2427 = vadd.f32 %v2340, %v2380
    %v2428 = vadd.f32 %v2341, %v2382
    %v2429 = vadd.f32 %v2342, %v2421
    %v2430 = vadd.f32 %v2343, %v2423
    %v2431 = vtanh.pop %v2427
    %v2432 = vtanh.pop %v2428
    %v2433 = vtanh.pop %v2429
    %v2434 = vtanh.pop %v2430
    %v2435 = vmul.f32 %v2431, 0.5
    %v2436 = vadd.f32 %v2435, 0.5
    %v2437 = vmul.f32 %v2432, 0.5
    %v2438 = vadd.f32 %v2437, 0.5
    %v2439 = vmul.f32 %v2434, 0.5
    %v2440 = vadd.f32 %v2439, 0.5
    %v2441 = vmul.f32 %v2438, %v2336
    %v2442 = vmul.f32 %v2436, %v2433
    %v2443 = vadd.f32 %v2441, %v2442
    %v2444 = vtanh.pop %v2443
    %v2445 = vmul.f32 %v2440, %v2444
    %s2446 = scalar_lea.vmem [#allocation2], 192
    %v2447 = vld [vmem:[%s2446] sm:$0xff]
    %v2448 = vld [vmem:[%s2446 + $0x8] sm:$0xff]
    %v2449 = vld [vmem:[%s2446 + $0x10] sm:$0xff]
    %v2450 = vld [vmem:[%s2446 + $0x18] sm:$0xff]
    %v2451 = vpack.c.bf16 %v2445, %v2445
    %2452 = vmatprep.subr.bf16.mxu0 %v1775
    %2453 = vmatpush1.bf16.msra.mxu0 %v1774
    %2454 = vmatprep.subr.bf16.mxu0 %v1771
    %2455 = vmatpush1.bf16.msra.mxu0 %v1770
    %2456 = vmatprep.subr.bf16.mxu0 %v1767
    %2457 = vmatpush1.bf16.msra.mxu0 %v1766
    %2458 = vmatprep.subr.bf16.mxu0 %v1763
    %2459 = vmatpush1.bf16.msra.mxu0 %v1762
    %2460 = vmatprep.subr.bf16.mxu0 %v1759
    %2461 = vmatpush1.bf16.msra.mxu0 %v1758
    %2462 = vmatprep.subr.bf16.mxu0 %v1755
    %2463 = vmatpush1.bf16.msra.mxu0 %v1754
    %2464 = vmatprep.subr.bf16.mxu0 %v1751
    %2465 = vmatpush1.bf16.msra.mxu0 %v1750
    %2466 = vmatprep.subr.bf16.mxu0 %v1747
    %2467 = vmatpush1.bf16.msra.mxu0 %v1746
    %2468 = vmatprep.subr.bf16.mxu0 0
    %2469 = vmatpush2.bf16.msra.mxu0 0
    %2470 = vmatprep.subr.bf16.mxu0 0
    %2471 = vmatpush2.bf16.msra.mxu0 0
    %2472 = vmatprep.subr.bf16.mxu0 0
    %2473 = vmatpush2.bf16.msra.mxu0 0
    %2474 = vmatprep.subr.bf16.mxu0 0
    %2475 = vmatpush2.bf16.msra.mxu0 0
    %2476 = vmatprep.subr.bf16.mxu0 0
    %2477 = vmatpush2.bf16.msra.mxu0 0
    %2478 = vmatprep.subr.bf16.mxu0 0
    %2479 = vmatpush2.bf16.msra.mxu0 0
    %2480 = vmatprep.subr.bf16.mxu0 0
    %2481 = vmatpush2.bf16.msra.mxu0 0
    %2482 = vmatprep.subr.bf16.mxu0 0
    %2483 = vmatpush2.bf16.msra.mxu0 0
    %2484 = vmatprep.mubr.bf16.mxu0 0
    %2485 = vmatmul.mubr.bf16.gmra.mxu0 %v2451
    %v2486 = vpop.f32.mrf.mxu0
    %v2487 = vadd.f32 0.0, %v2486
    %v2488 = vpop.f32.mrf.mxu0
    %v2489 = vadd.f32 0.0, %v2488
    %v2490 = vpop.f32.mrf.mxu0
    %v2491 = vpop.f32.mrf.mxu0
    %2492 = vdwg.mxu0
    %2493 = vmatprep.subr.bf16.mxu0 %v1777
    %2494 = vmatpush1.bf16.msra.mxu0 %v1776
    %2495 = vmatprep.subr.bf16.mxu0 %v1773
    %2496 = vmatpush1.bf16.msra.mxu0 %v1772
    %2497 = vmatprep.subr.bf16.mxu0 %v1769
    %2498 = vmatpush1.bf16.msra.mxu0 %v1768
    %2499 = vmatprep.subr.bf16.mxu0 %v1765
    %2500 = vmatpush1.bf16.msra.mxu0 %v1764
    %2501 = vmatprep.subr.bf16.mxu0 %v1761
    %2502 = vmatpush1.bf16.msra.mxu0 %v1760
    %2503 = vmatprep.subr.bf16.mxu0 %v1757
    %2504 = vmatpush1.bf16.msra.mxu0 %v1756
    %2505 = vmatprep.subr.bf16.mxu0 %v1753
    %2506 = vmatpush1.bf16.msra.mxu0 %v1752
    %2507 = vmatprep.subr.bf16.mxu0 %v1749
    %2508 = vmatpush1.bf16.msra.mxu0 %v1748
    %2509 = vmatprep.subr.bf16.mxu0 0
    %2510 = vmatpush2.bf16.msra.mxu0 0
    %2511 = vmatprep.subr.bf16.mxu0 0
    %2512 = vmatpush2.bf16.msra.mxu0 0
    %2513 = vmatprep.subr.bf16.mxu0 0
    %2514 = vmatpush2.bf16.msra.mxu0 0
    %2515 = vmatprep.subr.bf16.mxu0 0
    %2516 = vmatpush2.bf16.msra.mxu0 0
    %2517 = vmatprep.subr.bf16.mxu0 0
    %2518 = vmatpush2.bf16.msra.mxu0 0
    %2519 = vmatprep.subr.bf16.mxu0 0
    %2520 = vmatpush2.bf16.msra.mxu0 0
    %2521 = vmatprep.subr.bf16.mxu0 0
    %2522 = vmatpush2.bf16.msra.mxu0 0
    %2523 = vmatprep.subr.bf16.mxu0 0
    %2524 = vmatpush2.bf16.msra.mxu0 0
    %2525 = vmatprep.mubr.bf16.mxu0 0
    %2526 = vmatmul.mubr.bf16.gmra.mxu0 %v2451
    %v2527 = vpop.f32.mrf.mxu0
    %v2528 = vadd.f32 0.0, %v2527
    %v2529 = vpop.f32.mrf.mxu0
    %v2530 = vadd.f32 0.0, %v2529
    %v2531 = vpop.f32.mrf.mxu0
    %v2532 = vpop.f32.mrf.mxu0
    %2533 = vdwg.mxu0
    %v2534 = vadd.f32 %v2447, %v2487
    %v2535 = vadd.f32 %v2448, %v2489
    %v2536 = vadd.f32 %v2449, %v2528
    %v2537 = vadd.f32 %v2450, %v2530
    %v2538 = vtanh.pop %v2534
    %v2539 = vtanh.pop %v2535
    %v2540 = vtanh.pop %v2536
    %v2541 = vtanh.pop %v2537
    %v2542 = vmul.f32 %v2538, 0.5
    %v2543 = vadd.f32 %v2542, 0.5
    %v2544 = vmul.f32 %v2539, 0.5
    %v2545 = vadd.f32 %v2544, 0.5
    %v2546 = vmul.f32 %v2541, 0.5
    %v2547 = vadd.f32 %v2546, 0.5
    %v2548 = vmul.f32 %v2545, %v2443
    %v2549 = vmul.f32 %v2543, %v2540
    %v2550 = vadd.f32 %v2548, %v2549
    %v2551 = vtanh.pop %v2550
    %v2552 = vmul.f32 %v2547, %v2551
    %s2553 = scalar_lea.vmem [#allocation2], 224
    %v2554 = vld [vmem:[%s2553] sm:$0xff]
    %v2555 = vld [vmem:[%s2553 + $0x8] sm:$0xff]
    %v2556 = vld [vmem:[%s2553 + $0x10] sm:$0xff]
    %v2557 = vld [vmem:[%s2553 + $0x18] sm:$0xff]
    %v2558 = vpack.c.bf16 %v2552, %v2552
    %2559 = vmatprep.subr.bf16.mxu0 %v1775
    %2560 = vmatpush1.bf16.msra.mxu0 %v1774
    %2561 = vmatprep.subr.bf16.mxu0 %v1771
    %2562 = vmatpush1.bf16.msra.mxu0 %v1770
    %2563 = vmatprep.subr.bf16.mxu0 %v1767
    %2564 = vmatpush1.bf16.msra.mxu0 %v1766
    %2565 = vmatprep.subr.bf16.mxu0 %v1763
    %2566 = vmatpush1.bf16.msra.mxu0 %v1762
    %2567 = vmatprep.subr.bf16.mxu0 %v1759
    %2568 = vmatpush1.bf16.msra.mxu0 %v1758
    %2569 = vmatprep.subr.bf16.mxu0 %v1755
    %2570 = vmatpush1.bf16.msra.mxu0 %v1754
    %2571 = vmatprep.subr.bf16.mxu0 %v1751
    %2572 = vmatpush1.bf16.msra.mxu0 %v1750
    %2573 = vmatprep.subr.bf16.mxu0 %v1747
    %2574 = vmatpush1.bf16.msra.mxu0 %v1746
    %2575 = vmatprep.subr.bf16.mxu0 0
    %2576 = vmatpush2.bf16.msra.mxu0 0
    %2577 = vmatprep.subr.bf16.mxu0 0
    %2578 = vmatpush2.bf16.msra.mxu0 0
    %2579 = vmatprep.subr.bf16.mxu0 0
    %2580 = vmatpush2.bf16.msra.mxu0 0
    %2581 = vmatprep.subr.bf16.mxu0 0
    %2582 = vmatpush2.bf16.msra.mxu0 0
    %2583 = vmatprep.subr.bf16.mxu0 0
    %2584 = vmatpush2.bf16.msra.mxu0 0
    %2585 = vmatprep.subr.bf16.mxu0 0
    %2586 = vmatpush2.bf16.msra.mxu0 0
    %2587 = vmatprep.subr.bf16.mxu0 0
    %2588 = vmatpush2.bf16.msra.mxu0 0
    %2589 = vmatprep.subr.bf16.mxu0 0
    %2590 = vmatpush2.bf16.msra.mxu0 0
    %2591 = vmatprep.mubr.bf16.mxu0 0
    %2592 = vmatmul.mubr.bf16.gmra.mxu0 %v2558
    %v2593 = vpop.f32.mrf.mxu0
    %v2594 = vadd.f32 0.0, %v2593
    %v2595 = vpop.f32.mrf.mxu0
    %v2596 = vadd.f32 0.0, %v2595
    %v2597 = vpop.f32.mrf.mxu0
    %v2598 = vpop.f32.mrf.mxu0
    %2599 = vdwg.mxu0
    %2600 = vmatprep.subr.bf16.mxu0 %v1777
    %2601 = vmatpush1.bf16.msra.mxu0 %v1776
    %2602 = vmatprep.subr.bf16.mxu0 %v1773
    %2603 = vmatpush1.bf16.msra.mxu0 %v1772
    %2604 = vmatprep.subr.bf16.mxu0 %v1769
    %2605 = vmatpush1.bf16.msra.mxu0 %v1768
    %2606 = vmatprep.subr.bf16.mxu0 %v1765
    %2607 = vmatpush1.bf16.msra.mxu0 %v1764
    %2608 = vmatprep.subr.bf16.mxu0 %v1761
    %2609 = vmatpush1.bf16.msra.mxu0 %v1760
    %2610 = vmatprep.subr.bf16.mxu0 %v1757
    %2611 = vmatpush1.bf16.msra.mxu0 %v1756
    %2612 = vmatprep.subr.bf16.mxu0 %v1753
    %2613 = vmatpush1.bf16.msra.mxu0 %v1752
    %2614 = vmatprep.subr.bf16.mxu0 %v1749
    %2615 = vmatpush1.bf16.msra.mxu0 %v1748
    %2616 = vmatprep.subr.bf16.mxu0 0
    %2617 = vmatpush2.bf16.msra.mxu0 0
    %2618 = vmatprep.subr.bf16.mxu0 0
    %2619 = vmatpush2.bf16.msra.mxu0 0
    %2620 = vmatprep.subr.bf16.mxu0 0
    %2621 = vmatpush2.bf16.msra.mxu0 0
    %2622 = vmatprep.subr.bf16.mxu0 0
    %2623 = vmatpush2.bf16.msra.mxu0 0
    %2624 = vmatprep.subr.bf16.mxu0 0
    %2625 = vmatpush2.bf16.msra.mxu0 0
    %2626 = vmatprep.subr.bf16.mxu0 0
    %2627 = vmatpush2.bf16.msra.mxu0 0
    %2628 = vmatprep.subr.bf16.mxu0 0
    %2629 = vmatpush2.bf16.msra.mxu0 0
    %2630 = vmatprep.subr.bf16.mxu0 0
    %2631 = vmatpush2.bf16.msra.mxu0 0
    %2632 = vmatprep.mubr.bf16.mxu0 0
    %2633 = vmatmul.mubr.bf16.gmra.mxu0 %v2558
    %v2634 = vpop.f32.mrf.mxu0
    %v2635 = vadd.f32 0.0, %v2634
    %v2636 = vpop.f32.mrf.mxu0
    %v2637 = vadd.f32 0.0, %v2636
    %v2638 = vpop.f32.mrf.mxu0
    %v2639 = vpop.f32.mrf.mxu0
    %2640 = vdwg.mxu0
    %v2641 = vadd.f32 %v2554, %v2594
    %v2642 = vadd.f32 %v2555, %v2596
    %v2643 = vadd.f32 %v2556, %v2635
    %v2644 = vadd.f32 %v2557, %v2637
    %v2645 = vtanh.pop %v2641
    %v2646 = vtanh.pop %v2642
    %v2647 = vtanh.pop %v2643
    %v2648 = vtanh.pop %v2644
    %v2649 = vmul.f32 %v2645, 0.5
    %v2650 = vadd.f32 %v2649, 0.5
    %v2651 = vmul.f32 %v2646, 0.5
    %v2652 = vadd.f32 %v2651, 0.5
    %v2653 = vmul.f32 %v2648, 0.5
    %v2654 = vadd.f32 %v2653, 0.5
    %v2655 = vmul.f32 %v2652, %v2550
    %v2656 = vmul.f32 %v2650, %v2647
    %v2657 = vadd.f32 %v2655, %v2656
    %v2658 = vtanh.pop %v2657
    %v2659 = vmul.f32 %v2654, %v2658
    %v2660 = vpack.c.bf16 %v2659, %v2659
    %v2661 = vld [vmem:[%s6] sm:$0xf]
    %v2662 = vld [vmem:[%s6 + $0x4] sm:$0xf]
    %v2663 = vld [vmem:[%s6 + $0x8] sm:$0xf]
    %v2664 = vld [vmem:[%s6 + $0xc] sm:$0xf]
    %v2665 = vld [vmem:[%s6 + $0x10] sm:$0xf]
    %v2666 = vld [vmem:[%s6 + $0x14] sm:$0xf]
    %v2667 = vld [vmem:[%s6 + $0x18] sm:$0xf]
    %v2668 = vld [vmem:[%s6 + $0x1c] sm:$0xf]
    %v2669 = vld [vmem:[%s6 + $0x20] sm:$0xf]
    %v2670 = vld [vmem:[%s6 + $0x24] sm:$0xf]
    %v2671 = vld [vmem:[%s6 + $0x28] sm:$0xf]
    %v2672 = vld [vmem:[%s6 + $0x2c] sm:$0xf]
    %v2673 = vld [vmem:[%s6 + $0x30] sm:$0xf]
    %v2674 = vld [vmem:[%s6 + $0x34] sm:$0xf]
    %v2675 = vld [vmem:[%s6 + $0x38] sm:$0xf]
    %v2676 = vld [vmem:[%s6 + $0x3c] sm:$0xf]
    %v2677 = vld [vmem:[%s7] sm:$0x1]
    %v2679 = vlaneseq
    %v2680 = vshrl.u32 %v2679, 7
    %v2681 = vsub.s32 0, %v2680
    %v2682 = vrot.slane %v2677, %v2681
    %v2700 = vunpack.c.l.b16 %v2661
    %v2701 = vunpack.c.l.b16 %v2662
    %v2702 = vunpack.c.l.b16 %v2663
    %v2703 = vunpack.c.l.b16 %v2664
    %v2704 = vunpack.c.l.b16 %v2665
    %v2705 = vunpack.c.l.b16 %v2666
    %v2706 = vunpack.c.l.b16 %v2667
    %v2707 = vunpack.c.l.b16 %v2668
    %v2708 = vunpack.c.l.b16 %v2669
    %v2709 = vunpack.c.l.b16 %v2670
    %v2710 = vunpack.c.l.b16 %v2671
    %v2711 = vunpack.c.l.b16 %v2672
    %v2712 = vunpack.c.l.b16 %v2673
    %v2713 = vunpack.c.l.b16 %v2674
    %v2714 = vunpack.c.l.b16 %v2675
    %v2715 = vunpack.c.l.b16 %v2676
    %v2716 = vpack.c.b16 %v2701, %v2700
    %v2717 = vpack.c.b16 %v2703, %v2702
    %v2718 = vpack.c.b16 %v2705, %v2704
    %v2719 = vpack.c.b16 %v2707, %v2706
    %v2720 = vpack.c.b16 %v2709, %v2708
    %v2721 = vpack.c.b16 %v2711, %v2710
    %v2722 = vpack.c.b16 %v2713, %v2712
    %v2723 = vpack.c.b16 %v2715, %v2714
    %2732 = vmatprep.subr.bf16.mxu0 0
    %2733 = vmatpush1.bf16.msra.mxu0 %v2723
    %2734 = vmatprep.subr.bf16.mxu0 0
    %2735 = vmatpush1.bf16.msra.mxu0 %v2722
    %2736 = vmatprep.subr.bf16.mxu0 0
    %2737 = vmatpush1.bf16.msra.mxu0 %v2721
    %2738 = vmatprep.subr.bf16.mxu0 0
    %2739 = vmatpush1.bf16.msra.mxu0 %v2720
    %2740 = vmatprep.subr.bf16.mxu0 0
    %2741 = vmatpush1.bf16.msra.mxu0 %v2719
    %2742 = vmatprep.subr.bf16.mxu0 0
    %2743 = vmatpush1.bf16.msra.mxu0 %v2718
    %2744 = vmatprep.subr.bf16.mxu0 0
    %2745 = vmatpush1.bf16.msra.mxu0 %v2717
    %2746 = vmatprep.subr.bf16.mxu0 0
    %2747 = vmatpush1.bf16.msra.mxu0 %v2716
    %2748 = vmatprep.subr.bf16.mxu0 0
    %2749 = vmatpush2.bf16.msra.mxu0 0
    %2750 = vmatprep.subr.bf16.mxu0 0
    %2751 = vmatpush2.bf16.msra.mxu0 0
    %2752 = vmatprep.subr.bf16.mxu0 0
    %2753 = vmatpush2.bf16.msra.mxu0 0
    %2754 = vmatprep.subr.bf16.mxu0 0
    %2755 = vmatpush2.bf16.msra.mxu0 0
    %2756 = vmatprep.subr.bf16.mxu0 0
    %2757 = vmatpush2.bf16.msra.mxu0 0
    %2758 = vmatprep.subr.bf16.mxu0 0
    %2759 = vmatpush2.bf16.msra.mxu0 0
    %2760 = vmatprep.subr.bf16.mxu0 0
    %2761 = vmatpush2.bf16.msra.mxu0 0
    %2762 = vmatprep.subr.bf16.mxu0 0
    %2763 = vmatpush2.bf16.msra.mxu0 0
    %2764 = vmatprep.mubr.bf16.mxu0 0
    %2765 = vmatmul.mubr.bf16.gmra.mxu0 %v2660
    %v2766 = vpop.f32.mrf.mxu0
    %v2767 = vadd.f32 %v2682, %v2766
    %v2768 = vpop.f32.mrf.mxu0
    %v2769 = vpop.f32.mrf.mxu0
    %v2770 = vpop.f32.mrf.mxu0
    %2771 = vdwg.mxu0
    %2772 = vst [vmem:[#allocation8] sm:$0xff] %v2767
    // Predicated region
    $region42: #{tpu_custom_call.1} parent=1 // pred_check
      _
    $region43: #{tpu_custom_call.1} parent=1 // pred_check_branch
      %2774 = sbr.rel (0) target = $region45
    $region44: #{tpu_custom_call.1} parent=1 // pred_region
      %s2776 = ssub.s32 128, 128
      %2777 = vsyncadd [#allocation5], %s2776
      %s2779 = sshll.u32 [#allocation8], 4
      %s2780 = int_to_ptr.vmem [resolvable:$true] %s2779
      %2782 = dma.vmem_to_hbm [thread:$0]  %s2780, 128, %s8, [#allocation5]
    $region45: #{tpu_custom_call.1} parent=1 // pred_fallthru
      _
    // Predicated region
    $region46: #{tpu_custom_call.1} parent=1 // pred_check
      _
    $region47: #{tpu_custom_call.1} parent=1 // pred_check_branch
      %2784 = sbr.rel (0) target = $region49
    $region48: #{tpu_custom_call.1} parent=1 // pred_region
      %2785 = dma.done [#allocation5], 128
    $region49: #{tpu_custom_call.1} parent=1 // pred_fallthru
      _
    %2786 = vsyncpa [#allocation4], 1
    %2787 = vsyncpa [#allocation7], 1
    %2788 = vsyncpa [#allocation5], 1

</llo_original>
